<compile_context>
chip_gen: v7x
topology: tpu7x:2x2x1
jax: 0.10.0
libtpu: 0.0.40
codegen_flags: <defaults>
</compile_context>

<pallas_src>
import numpy as np
import jax
import jax.numpy as jnp
from jax.experimental import pallas as pl
from jax.experimental.pallas import tpu as pltpu

# ----------------------------- configuration --------------------------------

IN_CHANNELS = [16, 32, 64, 128]      # per-stage encoder channels (stand-in)
EMBED_DIM = 32
NUM_CLASSES = 8
PATCHES = [4, 2, 2, 2]               # -> feature strides 4, 8, 16, 32
LN_EPS = 1e-5
BN_EPS = 1e-5
MIN_PALLAS_TOKENS = 128              # tiny encoder stages run in plain XLA


def _tpu_params():
    # every grid below is 1-D and fully data-parallel
    return pltpu.CompilerParams(dimension_semantics=("parallel",),
                                vmem_limit_bytes=32 * 1024 * 1024)


# ------------------------ bilinear interp (constants) ------------------------

def _interp_matrix(out_size, in_size):
    # PyTorch F.interpolate(mode='bilinear', align_corners=False) 1-D weights.
    i = np.arange(out_size, dtype=np.float64)
    src = (i + 0.5) * (in_size / out_size) - 0.5
    src = np.clip(src, 0.0, None)
    i0 = np.minimum(np.floor(src).astype(np.int64), in_size - 1)
    i1 = np.minimum(i0 + 1, in_size - 1)
    w1 = src - i0
    w0 = 1.0 - w1
    m = np.zeros((out_size, in_size), dtype=np.float32)
    m[np.arange(out_size), i0] += w0.astype(np.float32)
    m[np.arange(out_size), i1] += w1.astype(np.float32)
    assert np.allclose(m.sum(axis=1), 1.0)   # row-stochastic (bias fold relies on it)
    return m


def _bilinear_kron(out_hw, in_hw):
    # small combined 2-D upsample matrix, used only for the in-head
    # stride-8/16/32 -> stride-4 upsamples (tiny at these feature sizes).
    # TODO(synk): for very large inputs these should also become separable.
    rh = _interp_matrix(out_hw[0], in_hw[0])
    rw = _interp_matrix(out_hw[1], in_hw[1])
    return np.kron(rh, rw).astype(np.float32)


# ----------------------------- Pallas kernels -------------------------------

def _patch_embed_ln_kernel(x_ref, w_ref, b_ref, g_ref, beta_ref, o_ref):
    # fused strided patch-embedding matmul + bias + LayerNorm (one HBM trip);
    # x/w arrive bf16, accumulation and the LN epilogue are f32.
    y = jnp.dot(x_ref[...], w_ref[...],
                preferred_element_type=jnp.float32) + b_ref[...]
    mu = jnp.mean(y, axis=-1, keepdims=True)
    var = jnp.mean(jnp.square(y - mu), axis=-1, keepdims=True)
    y = (y - mu) * jax.lax.rsqrt(var + LN_EPS) * g_ref[...] + beta_ref[...]
    o_ref[...] = y.astype(o_ref.dtype)


def _head_kernel(c1_ref, c2_ref, c3_ref, c4_ref,
                 r2_ref, r3_ref, r4_ref,
                 w1_ref, w2_ref, w3_ref, w4_ref,
                 scale_ref, shift_ref, pwt_ref, pbt_ref, o_ref):
    # Entire SegFormerHead for one batch element:
    #   per-level (MLP o linear_fuse)-folded projection -> bilinear upsample to
    #   the stride-4 grid -> sum (concat-free linear_fuse) -> folded BN + ReLU
    #   -> (Dropout2d = identity in eval) -> linear_pred emitted transposed as
    #   (classes, S1): lane-dense, unpadded.
    f32 = jnp.float32
    bf16 = jnp.bfloat16

    def proj(c_ref, w_ref):
        # (S_l, C_l) @ (C_l, E)  -- weights already folded with the fuse block
        return jnp.dot(c_ref[0], w_ref[...], preferred_element_type=f32)

    def up(r_ref, a):
        # bilinear upsample to stride-4: (S1, S_l) @ (S_l, E)
        return jnp.dot(r_ref[...], a.astype(bf16), preferred_element_type=f32)

    pre = (proj(c1_ref, w1_ref)
           + up(r2_ref, proj(c2_ref, w2_ref))
           + up(r3_ref, proj(c3_ref, w3_ref))
           + up(r4_ref, proj(c4_ref, w4_ref)))                       # (S1, E)
    fused = jnp.maximum(pre * scale_ref[...] + shift_ref[...], 0.0)  # BN + ReLU

    # linear_pred, transposed:  (classes, E) x (S1, E)^T -> (classes, S1)
    logits_t = jax.lax.dot_general(
        pwt_ref[...], fused.astype(bf16),
        dimension_numbers=(((1,), (1,)), ((), ())),
        preferred_element_type=f32) + pbt_ref[...]
    o_ref[0] = logits_t


def _resize_kernel(x_ref, rwt_ref, rhb_ref, o_ref):
    # separable bilinear upsample of one batch element's logits to (C, H, W):
    #   width pass : (classes*th, tw) @ (tw, W)              -- one dense matmul
    #   height pass: batched over classes, (H, th) @ (th, W) -- batched matmul
    f32 = jnp.float32
    bf16 = jnp.bfloat16
    zw = jnp.dot(x_ref[0].astype(bf16), rwt_ref[...],
                 preferred_element_type=f32)                  # (classes*th, W)
    c, _, th = rhb_ref.shape
    zw3 = zw.reshape(c, th, zw.shape[-1]).astype(bf16)        # (classes, th, W)
    out = jax.lax.dot_general(
        rhb_ref[...], zw3,
        dimension_numbers=(((2,), (1,)), ((0,), (0,))),
        preferred_element_type=f32)                           # (classes, H, W)
    o_ref[0] = out


# ----------------------------- kernel wrappers -------------------------------

def _full_spec(shape):
    zeros = (0,) * len(shape)
    return pl.BlockSpec(shape, lambda i, _z=zeros: _z)


def _pick_token_tile(t, cap=512):
    # largest multiple-of-8 divisor of t not exceeding `cap` (bounded VMEM),
    # falling back to t itself only for awkward token counts.
    for tm in range(min(cap, t), 0, -1):
        if t % tm == 0 and (tm % 8 == 0 or tm == t):
            return tm
    return t


def patch_embed_ln(tokens, w, b, gamma, beta):
    # tokens: (t, k) bf16; w: (k, cout) bf16; b/gamma/beta: (1, cout) f32
    t, k = tokens.shape
    cout = w.shape[1]
    tm = _pick_token_tile(t)
    return pl.pallas_call(
        _patch_embed_ln_kernel,
        out_shape=jax.ShapeDtypeStruct((t, cout), jnp.bfloat16),
        grid=(t // tm,),
        in_specs=[
            pl.BlockSpec((tm, k), lambda i: (i, 0)),
            _full_spec((k, cout)),
            _full_spec((1, cout)),
            _full_spec((1, cout)),
            _full_spec((1, cout)),
        ],
        out_specs=pl.BlockSpec((tm, cout), lambda i: (i, 0)),
        compiler_params=_tpu_params(),
    )(tokens, w, b, gamma, beta)


def segformer_head(feats, params):
    # feats: NHWC bf16 features at strides 4/8/16/32
    bf16 = jnp.bfloat16
    n, th, tw, _ = feats[0].shape
    s1 = th * tw
    c1, c2, c3, c4 = [f.reshape(f.shape[0], f.shape[1] * f.shape[2], f.shape[3])
                      for f in feats]

    # stride-8/16/32 -> stride-4 upsample matrices (trace-time constants, bf16)
    r2, r3, r4 = [jnp.asarray(_bilinear_kron((th, tw), (f.shape[1], f.shape[2])),
                              dtype=bf16) for f in feats[1:]]

    e = EMBED_DIM
    fuse_w = params['fuse_w']                    # (4E, E); cat order [c4,c3,c2,c1]
    fw4, fw3, fw2, fw1 = (fuse_w[0:e], fuse_w[e:2 * e],
                          fuse_w[2 * e:3 * e], fuse_w[3 * e:4 * e])

    # fold linear_fuse into the per-level projection weights (trace time, bf16)
    w1, w2, w3, w4 = [jnp.dot(params['mlp'][i]['w'], fw).astype(bf16)
                      for i, fw in zip(range(4), (fw1, fw2, fw3, fw4))]

    # fold inference BatchNorm and the projection biases (routed through fuse_w)
    bn_scale = params['bn_gamma'] / jnp.sqrt(params['bn_var'] + BN_EPS)
    bn_shift = params['bn_beta'] - params['bn_mean'] * bn_scale
    b_cat = jnp.concatenate([params['mlp'][3]['b'], params['mlp'][2]['b'],
                             params['mlp'][1]['b'], params['mlp'][0]['b']], axis=1)
    shift = bn_shift + jnp.dot(b_cat, fuse_w) * bn_scale

    # linear_pred, pre-transposed (classes on rows: unpadded, lane-dense S1)
    pwt = params['pred_w'].T.astype(bf16)        # (classes, E)
    pbt = params['pred_b'].T                     # (classes, 1) f32

    out = pl.pallas_call(
        _head_kernel,
        out_shape=jax.ShapeDtypeStruct((n, NUM_CLASSES, s1), jnp.float32),
        grid=(n,),
        in_specs=[
            pl.BlockSpec((1,) + c1.shape[1:], lambda i: (i, 0, 0)),
            pl.BlockSpec((1,) + c2.shape[1:], lambda i: (i, 0, 0)),
            pl.BlockSpec((1,) + c3.shape[1:], lambda i: (i, 0, 0)),
            pl.BlockSpec((1,) + c4.shape[1:], lambda i: (i, 0, 0)),
            _full_spec(r2.shape), _full_spec(r3.shape), _full_spec(r4.shape),
            _full_spec(w1.shape), _full_spec(w2.shape),
            _full_spec(w3.shape), _full_spec(w4.shape),
            _full_spec(bn_scale.shape), _full_spec(shift.shape),
            _full_spec(pwt.shape), _full_spec(pbt.shape),
        ],
        out_specs=pl.BlockSpec((1, NUM_CLASSES, s1), lambda i: (i, 0, 0)),
        compiler_params=_tpu_params(),
    )(c1, c2, c3, c4, r2, r3, r4, w1, w2, w3, w4, bn_scale, shift, pwt, pbt)
    return out                                   # (N, classes, S1)


def bilinear_resize_nchw(logits, out_hw, in_hw):
    # logits: (N, classes, th*tw) f32 -> (N, classes, H, W) f32, separable.
    n, c, _ = logits.shape
    th, tw = in_hw
    height, width = out_hw
    x2 = logits.reshape(n, c * th, tw)                                # free reshape
    rwt = jnp.asarray(_interp_matrix(width, tw).T, dtype=jnp.bfloat16)   # (tw, W)
    rh = _interp_matrix(height, th)                                      # (H, th)
    rhb = jnp.asarray(np.broadcast_to(rh[None], (c, height, th)),
                      dtype=jnp.bfloat16)                                # (C, H, th)
    return pl.pallas_call(
        _resize_kernel,
        out_shape=jax.ShapeDtypeStruct((n, c, height, width), jnp.float32),
        grid=(n,),
        in_specs=[
            pl.BlockSpec((1, c * th, tw), lambda i: (i, 0, 0)),
            _full_spec(rwt.shape),
            _full_spec(rhb.shape),
        ],
        out_specs=pl.BlockSpec((1, c, height, width), lambda i: (i, 0, 0, 0)),
        compiler_params=_tpu_params(),
    )(x2, rwt, rhb)


# ------------------------------- model glue ----------------------------------

def _space_to_depth(x, p):
    # NHWC strided patch extraction (kernel = stride = p)
    n, h, w, c = x.shape
    hp, wp = h // p, w // p
    x = x.reshape(n, hp, p, wp, p, c).transpose(0, 1, 3, 2, 4, 5)
    return x.reshape(n * hp * wp, p * p * c), hp, wp


def _patch_embed_ln_xla(tokens, w, b, gamma, beta):
    # plain-XLA path for the tiny encoder stages (a dedicated pallas_call
    # would be dominated by dispatch overhead and masked stores).
    y = jnp.dot(tokens.astype(jnp.float32), w.astype(jnp.float32)) + b
    mu = jnp.mean(y, axis=-1, keepdims=True)
    var = jnp.mean(jnp.square(y - mu), axis=-1, keepdims=True)
    y = (y - mu) * jax.lax.rsqrt(var + LN_EPS) * gamma + beta
    return y.astype(jnp.bfloat16)


def encoder_forward(x_nhwc, params):
    # TODO(synk): stand-in for the undefined MixVisionTransformer encoder in the
    # reference (`self.encoder` / `self.in_channels` are never defined); a
    # deterministic patch-embed + LayerNorm pyramid with the same feature
    # strides [4, 8, 16, 32] is used instead.
    n = x_nhwc.shape[0]
    feats = []
    h = x_nhwc
    for st, patch in zip(params['encoder'], PATCHES):
        tokens, hp, wp = _space_to_depth(h, patch)
        tokens = tokens.astype(jnp.bfloat16)
        w = st['w'].astype(jnp.bfloat16)
        if tokens.shape[0] >= MIN_PALLAS_TOKENS:
            y = patch_embed_ln(tokens, w, st['b'], st['gamma'], st['beta'])
        else:
            y = _patch_embed_ln_xla(tokens, w, st['b'], st['gamma'], st['beta'])
        h = y.reshape(n, hp, wp, -1)
        feats.append(h)
    return feats   # strides 4, 8, 16, 32 (NHWC, bf16)


def seg_forward(x_nchw, params):
    # mirrors Seg.forward: returns (pred, _x[3])
    _, _, height, width = x_nchw.shape
    x = jnp.transpose(x_nchw, (0, 2, 3, 1))            # one-time NCHW -> NHWC
    feats = encoder_forward(x, params)

    th, tw = feats[0].shape[1], feats[0].shape[2]
    logits = segformer_head(feats, params)             # (N, classes, th*tw)

    # F.interpolate(..., mode='bilinear', align_corners=False) to input size,
    # as a separable width-then-height pair of matmuls (lands directly in NCHW).
    pred = bilinear_resize_nchw(logits, (height, width), (th, tw))

    c4 = jnp.transpose(feats[3], (0, 3, 1, 2)).astype(jnp.float32)   # = _x[3]
    return pred, c4


# -------------------------------- parameters ---------------------------------

def init_params(key):
    def w_init(k, shape):
        fan_in = shape[0]
        return (jax.random.normal(k, shape, jnp.float32)
                * (1.0 / np.sqrt(fan_in))).astype(jnp.float32)

    def b_init(k, c):
        return (0.02 * jax.random.normal(k, (1, c), jnp.float32)).astype(jnp.float32)

    keys = iter(jax.random.split(key, 32))
    p = {}

    enc = []
    cin = 3
    for cout, patch in zip(IN_CHANNELS, PATCHES):
        enc.append(dict(
            w=w_init(next(keys), (patch * patch * cin, cout)),
            b=b_init(next(keys), cout),
            gamma=jnp.ones((1, cout), jnp.float32),
            beta=jnp.zeros((1, cout), jnp.float32),
        ))
        cin = cout
    p['encoder'] = enc

    # SegFormerHead: per-level MLP (1x1 conv) projections
    p['mlp'] = [dict(w=w_init(next(keys), (c, EMBED_DIM)),
                     b=b_init(next(keys), EMBED_DIM)) for c in IN_CHANNELS]

    # linear_fuse: Conv2d(4E, E, 1, bias=False) + BatchNorm2d + ReLU
    p['fuse_w'] = w_init(next(keys), (4 * EMBED_DIM, EMBED_DIM))
    p['bn_gamma'] = jnp.ones((1, EMBED_DIM), jnp.float32)
    p['bn_beta'] = jnp.zeros((1, EMBED_DIM), jnp.float32)
    p['bn_mean'] = jnp.zeros((1, EMBED_DIM), jnp.float32)
    p['bn_var'] = jnp.ones((1, EMBED_DIM), jnp.float32)

    # linear_pred: Conv2d(E, num_classes, 1)
    p['pred_w'] = w_init(next(keys), (EMBED_DIM, NUM_CLASSES))
    p['pred_b'] = b_init(next(keys), NUM_CLASSES)

    # classifier: Conv2d(in_channels[-1], num_classes, 1, bias=False)
    # (defined in __init__, only used by _forward_cam)
    p['cls_w'] = w_init(next(keys), (IN_CHANNELS[-1], NUM_CLASSES))
    return p


# ----------------------------------- main -------------------------------------

if __name__ == "__main__":
    x = jax.random.normal(jax.random.PRNGKey(0), (2, 3, 64, 64), jnp.float32)
    params = init_params(jax.random.PRNGKey(42))

    fwd = jax.jit(seg_forward)
    pred, c4 = fwd(x, params)
    pred = jax.block_until_ready(pred)
    c4 = jax.block_until_ready(c4)

    assert pred.shape == (2, NUM_CLASSES, 64, 64), pred.shape
    assert c4.shape == (2, IN_CHANNELS[-1], 2, 2), c4.shape
    assert bool(jnp.all(jnp.isfinite(pred))) and bool(jnp.all(jnp.isfinite(c4)))
    print("KERNEL_OK")
</pallas_src>

<mosaic_0001>
module attributes {stable_mosaic.version = 11 : i64} {
  func.func @_patch_embed_ln_kernel(%arg0: i32, %arg1: memref<512x48xbf16, #tpu.memory_space<vmem>>, %arg2: memref<48x16xbf16, #tpu.memory_space<vmem>>, %arg3: memref<1x16xf32, #tpu.memory_space<vmem>>, %arg4: memref<1x16xf32, #tpu.memory_space<vmem>>, %arg5: memref<1x16xf32, #tpu.memory_space<vmem>>, %arg6: memref<512x16xbf16, #tpu.memory_space<vmem>>) attributes {dimension_semantics = [#tpu.dimension_semantics<parallel>], iteration_bounds = array<i64: 1>, scalar_prefetch = 0 : i64, scratch_operands = 0 : i64, tpu.core_type = #tpu.core_type<tc>, window_params = [{transform_indices = @transform_0, window_bounds = array<i64: 512, 48>}, {pipeline_mode = #tpu.pipeline_mode<synchronous>, transform_indices = @transform_1, window_bounds = array<i64: 48, 16>}, {pipeline_mode = #tpu.pipeline_mode<synchronous>, transform_indices = @transform_2, window_bounds = array<i64: 1, 16>}, {pipeline_mode = #tpu.pipeline_mode<synchronous>, transform_indices = @transform_3, window_bounds = array<i64: 1, 16>}, {pipeline_mode = #tpu.pipeline_mode<synchronous>, transform_indices = @transform_4, window_bounds = array<i64: 1, 16>}, {transform_indices = @transform_5, window_bounds = array<i64: 512, 16>}]} {
    %c0 = arith.constant 0 : index
    %c0_0 = arith.constant 0 : index
    %0 = vector.load %arg1[%c0, %c0_0] : memref<512x48xbf16, #tpu.memory_space<vmem>>, vector<512x48xbf16>
    %c0_1 = arith.constant 0 : index
    %c0_2 = arith.constant 0 : index
    %1 = vector.load %arg2[%c0_1, %c0_2] : memref<48x16xbf16, #tpu.memory_space<vmem>>, vector<48x16xbf16>
    %cst = arith.constant dense<0.000000e+00> : vector<512x16xf32>
    %2 = tpu.matmul %0, %1, %cst {dimension_numbers = #tpu.dot_dimension_numbers<[1], [0], [0], [1], [0, 0, 1, 1], [], []>} : vector<512x48xbf16>, vector<48x16xbf16>, vector<512x16xf32> -> vector<512x16xf32>
    %c0_3 = arith.constant 0 : index
    %c0_4 = arith.constant 0 : index
    %3 = vector.load %arg3[%c0_3, %c0_4] : memref<1x16xf32, #tpu.memory_space<vmem>>, vector<1x16xf32>
    %4 = vector.broadcast %3 : vector<1x16xf32> to vector<512x16xf32>
    %5 = arith.addf %2, %4 : vector<512x16xf32>
    %cst_5 = arith.constant dense<0.000000e+00> : vector<512xf32>
    %6 = vector.multi_reduction <add>, %5, %cst_5 [1] : vector<512x16xf32> to vector<512xf32>
    %7 = vector.shape_cast %6 : vector<512xf32> to vector<512x1xf32>
    %cst_6 = arith.constant 1.600000e+01 : f32
    %8 = vector.broadcast %cst_6 : f32 to vector<512x1xf32>
    %9 = arith.divf %7, %8 : vector<512x1xf32>
    %10 = vector.broadcast %9 : vector<512x1xf32> to vector<512x16xf32>
    %11 = arith.subf %5, %10 : vector<512x16xf32>
    %12 = arith.mulf %11, %11 : vector<512x16xf32>
    %cst_7 = arith.constant dense<0.000000e+00> : vector<512xf32>
    %13 = vector.multi_reduction <add>, %12, %cst_7 [1] : vector<512x16xf32> to vector<512xf32>
    %14 = vector.shape_cast %13 : vector<512xf32> to vector<512x1xf32>
    %cst_8 = arith.constant 1.600000e+01 : f32
    %15 = vector.broadcast %cst_8 : f32 to vector<512x1xf32>
    %16 = arith.divf %14, %15 : vector<512x1xf32>
    %17 = vector.broadcast %9 : vector<512x1xf32> to vector<512x16xf32>
    %18 = arith.subf %5, %17 : vector<512x16xf32>
    %cst_9 = arith.constant 9.99999974E-6 : f32
    %19 = vector.broadcast %cst_9 : f32 to vector<512x1xf32>
    %20 = arith.addf %16, %19 : vector<512x1xf32>
    %21 = math.rsqrt %20 : vector<512x1xf32>
    %22 = vector.broadcast %21 : vector<512x1xf32> to vector<512x16xf32>
    %23 = arith.mulf %18, %22 : vector<512x16xf32>
    %c0_10 = arith.constant 0 : index
    %c0_11 = arith.constant 0 : index
    %24 = vector.load %arg4[%c0_10, %c0_11] : memref<1x16xf32, #tpu.memory_space<vmem>>, vector<1x16xf32>
    %25 = vector.broadcast %24 : vector<1x16xf32> to vector<512x16xf32>
    %26 = arith.mulf %23, %25 : vector<512x16xf32>
    %c0_12 = arith.constant 0 : index
    %c0_13 = arith.constant 0 : index
    %27 = vector.load %arg5[%c0_12, %c0_13] : memref<1x16xf32, #tpu.memory_space<vmem>>, vector<1x16xf32>
    %28 = vector.broadcast %27 : vector<1x16xf32> to vector<512x16xf32>
    %29 = arith.addf %26, %28 : vector<512x16xf32>
    %30 = arith.truncf %29 : vector<512x16xf32> to vector<512x16xbf16>
    %c0_14 = arith.constant 0 : index
    %c0_15 = arith.constant 0 : index
    %31 = vector.load %arg6[%c0_14, %c0_15] : memref<512x16xbf16, #tpu.memory_space<vmem>>, vector<512x16xbf16>
    tpu.vector_store %arg6[%c0_14, %c0_15], %30 {strides = array<i32>} : memref<512x16xbf16, #tpu.memory_space<vmem>>, vector<512x16xbf16>,
    return
  }
  func.func @transform_0(%arg0: i32) -> (i32, i32) {
    %c0_i32 = arith.constant 0 : i32
    %c0_i32_0 = arith.constant 0 : i32
    return %arg0, %c0_i32 : i32, i32
  }
  func.func @transform_1(%arg0: i32) -> (i32, i32) {
    %c0_i32 = arith.constant 0 : i32
    %c0_i32_0 = arith.constant 0 : i32
    %c0_i32_1 = arith.constant 0 : i32
    return %c0_i32, %c0_i32_0 : i32, i32
  }
  func.func @transform_2(%arg0: i32) -> (i32, i32) {
    %c0_i32 = arith.constant 0 : i32
    %c0_i32_0 = arith.constant 0 : i32
    %c0_i32_1 = arith.constant 0 : i32
    return %c0_i32, %c0_i32_0 : i32, i32
  }
  func.func @transform_3(%arg0: i32) -> (i32, i32) {
    %c0_i32 = arith.constant 0 : i32
    %c0_i32_0 = arith.constant 0 : i32
    %c0_i32_1 = arith.constant 0 : i32
    return %c0_i32, %c0_i32_0 : i32, i32
  }
  func.func @transform_4(%arg0: i32) -> (i32, i32) {
    %c0_i32 = arith.constant 0 : i32
    %c0_i32_0 = arith.constant 0 : i32
    %c0_i32_1 = arith.constant 0 : i32
    return %c0_i32, %c0_i32_0 : i32, i32
  }
  func.func @transform_5(%arg0: i32) -> (i32, i32) {
    %c0_i32 = arith.constant 0 : i32
    %c0_i32_0 = arith.constant 0 : i32
    return %arg0, %c0_i32 : i32, i32
  }
}

module attributes {stable_mosaic.version = 11 : i64} {
  func.func @_patch_embed_ln_kernel(%arg0: i32, %arg1: memref<128x64xbf16, #tpu.memory_space<vmem>>, %arg2: memref<64x32xbf16, #tpu.memory_space<vmem>>, %arg3: memref<1x32xf32, #tpu.memory_space<vmem>>, %arg4: memref<1x32xf32, #tpu.memory_space<vmem>>, %arg5: memref<1x32xf32, #tpu.memory_space<vmem>>, %arg6: memref<128x32xbf16, #tpu.memory_space<vmem>>) attributes {dimension_semantics = [#tpu.dimension_semantics<parallel>], iteration_bounds = array<i64: 1>, scalar_prefetch = 0 : i64, scratch_operands = 0 : i64, tpu.core_type = #tpu.core_type<tc>, window_params = [{transform_indices = @transform_0, window_bounds = array<i64: 128, 64>}, {pipeline_mode = #tpu.pipeline_mode<synchronous>, transform_indices = @transform_1, window_bounds = array<i64: 64, 32>}, {pipeline_mode = #tpu.pipeline_mode<synchronous>, transform_indices = @transform_2, window_bounds = array<i64: 1, 32>}, {pipeline_mode = #tpu.pipeline_mode<synchronous>, transform_indices = @transform_3, window_bounds = array<i64: 1, 32>}, {pipeline_mode = #tpu.pipeline_mode<synchronous>, transform_indices = @transform_4, window_bounds = array<i64: 1, 32>}, {transform_indices = @transform_5, window_bounds = array<i64: 128, 32>}]} {
    %c0 = arith.constant 0 : index
    %c0_0 = arith.constant 0 : index
    %0 = vector.load %arg1[%c0, %c0_0] : memref<128x64xbf16, #tpu.memory_space<vmem>>, vector<128x64xbf16>
    %c0_1 = arith.constant 0 : index
    %c0_2 = arith.constant 0 : index
    %1 = vector.load %arg2[%c0_1, %c0_2] : memref<64x32xbf16, #tpu.memory_space<vmem>>, vector<64x32xbf16>
    %cst = arith.constant dense<0.000000e+00> : vector<128x32xf32>
    %2 = tpu.matmul %0, %1, %cst {dimension_numbers = #tpu.dot_dimension_numbers<[1], [0], [0], [1], [0, 0, 1, 1], [], []>} : vector<128x64xbf16>, vector<64x32xbf16>, vector<128x32xf32> -> vector<128x32xf32>
    %c0_3 = arith.constant 0 : index
    %c0_4 = arith.constant 0 : index
    %3 = vector.load %arg3[%c0_3, %c0_4] : memref<1x32xf32, #tpu.memory_space<vmem>>, vector<1x32xf32>
    %4 = vector.broadcast %3 : vector<1x32xf32> to vector<128x32xf32>
    %5 = arith.addf %2, %4 : vector<128x32xf32>
    %cst_5 = arith.constant dense<0.000000e+00> : vector<128xf32>
    %6 = vector.multi_reduction <add>, %5, %cst_5 [1] : vector<128x32xf32> to vector<128xf32>
    %7 = vector.shape_cast %6 : vector<128xf32> to vector<128x1xf32>
    %cst_6 = arith.constant 3.200000e+01 : f32
    %8 = vector.broadcast %cst_6 : f32 to vector<128x1xf32>
    %9 = arith.divf %7, %8 : vector<128x1xf32>
    %10 = vector.broadcast %9 : vector<128x1xf32> to vector<128x32xf32>
    %11 = arith.subf %5, %10 : vector<128x32xf32>
    %12 = arith.mulf %11, %11 : vector<128x32xf32>
    %cst_7 = arith.constant dense<0.000000e+00> : vector<128xf32>
    %13 = vector.multi_reduction <add>, %12, %cst_7 [1] : vector<128x32xf32> to vector<128xf32>
    %14 = vector.shape_cast %13 : vector<128xf32> to vector<128x1xf32>
    %cst_8 = arith.constant 3.200000e+01 : f32
    %15 = vector.broadcast %cst_8 : f32 to vector<128x1xf32>
    %16 = arith.divf %14, %15 : vector<128x1xf32>
    %17 = vector.broadcast %9 : vector<128x1xf32> to vector<128x32xf32>
    %18 = arith.subf %5, %17 : vector<128x32xf32>
    %cst_9 = arith.constant 9.99999974E-6 : f32
    %19 = vector.broadcast %cst_9 : f32 to vector<128x1xf32>
    %20 = arith.addf %16, %19 : vector<128x1xf32>
    %21 = math.rsqrt %20 : vector<128x1xf32>
    %22 = vector.broadcast %21 : vector<128x1xf32> to vector<128x32xf32>
    %23 = arith.mulf %18, %22 : vector<128x32xf32>
    %c0_10 = arith.constant 0 : index
    %c0_11 = arith.constant 0 : index
    %24 = vector.load %arg4[%c0_10, %c0_11] : memref<1x32xf32, #tpu.memory_space<vmem>>, vector<1x32xf32>
    %25 = vector.broadcast %24 : vector<1x32xf32> to vector<128x32xf32>
    %26 = arith.mulf %23, %25 : vector<128x32xf32>
    %c0_12 = arith.constant 0 : index
    %c0_13 = arith.constant 0 : index
    %27 = vector.load %arg5[%c0_12, %c0_13] : memref<1x32xf32, #tpu.memory_space<vmem>>, vector<1x32xf32>
    %28 = vector.broadcast %27 : vector<1x32xf32> to vector<128x32xf32>
    %29 = arith.addf %26, %28 : vector<128x32xf32>
    %30 = arith.truncf %29 : vector<128x32xf32> to vector<128x32xbf16>
    %c0_14 = arith.constant 0 : index
    %c0_15 = arith.constant 0 : index
    %31 = vector.load %arg6[%c0_14, %c0_15] : memref<128x32xbf16, #tpu.memory_space<vmem>>, vector<128x32xbf16>
    tpu.vector_store %arg6[%c0_14, %c0_15], %30 {strides = array<i32>} : memref<128x32xbf16, #tpu.memory_space<vmem>>, vector<128x32xbf16>,
    return
  }
  func.func @transform_0(%arg0: i32) -> (i32, i32) {
    %c0_i32 = arith.constant 0 : i32
    %c0_i32_0 = arith.constant 0 : i32
    return %arg0, %c0_i32 : i32, i32
  }
  func.func @transform_1(%arg0: i32) -> (i32, i32) {
    %c0_i32 = arith.constant 0 : i32
    %c0_i32_0 = arith.constant 0 : i32
    %c0_i32_1 = arith.constant 0 : i32
    return %c0_i32, %c0_i32_0 : i32, i32
  }
  func.func @transform_2(%arg0: i32) -> (i32, i32) {
    %c0_i32 = arith.constant 0 : i32
    %c0_i32_0 = arith.constant 0 : i32
    %c0_i32_1 = arith.constant 0 : i32
    return %c0_i32, %c0_i32_0 : i32, i32
  }
  func.func @transform_3(%arg0: i32) -> (i32, i32) {
    %c0_i32 = arith.constant 0 : i32
    %c0_i32_0 = arith.constant 0 : i32
    %c0_i32_1 = arith.constant 0 : i32
    return %c0_i32, %c0_i32_0 : i32, i32
  }
  func.func @transform_4(%arg0: i32) -> (i32, i32) {
    %c0_i32 = arith.constant 0 : i32
    %c0_i32_0 = arith.constant 0 : i32
    %c0_i32_1 = arith.constant 0 : i32
    return %c0_i32, %c0_i32_0 : i32, i32
  }
  func.func @transform_5(%arg0: i32) -> (i32, i32) {
    %c0_i32 = arith.constant 0 : i32
    %c0_i32_0 = arith.constant 0 : i32
    return %arg0, %c0_i32 : i32, i32
  }
}

module attributes {stable_mosaic.version = 11 : i64} {
  func.func @_head_kernel(%arg0: i32, %arg1: memref<1x256x16xbf16, #tpu.memory_space<vmem>>, %arg2: memref<1x64x32xbf16, #tpu.memory_space<vmem>>, %arg3: memref<1x16x64xbf16, #tpu.memory_space<vmem>>, %arg4: memref<1x4x128xbf16, #tpu.memory_space<vmem>>, %arg5: memref<256x64xbf16, #tpu.memory_space<vmem>>, %arg6: memref<256x16xbf16, #tpu.memory_space<vmem>>, %arg7: memref<256x4xbf16, #tpu.memory_space<vmem>>, %arg8: memref<16x32xbf16, #tpu.memory_space<vmem>>, %arg9: memref<32x32xbf16, #tpu.memory_space<vmem>>, %arg10: memref<64x32xbf16, #tpu.memory_space<vmem>>, %arg11: memref<128x32xbf16, #tpu.memory_space<vmem>>, %arg12: memref<1x32xf32, #tpu.memory_space<vmem>>, %arg13: memref<1x32xf32, #tpu.memory_space<vmem>>, %arg14: memref<8x32xbf16, #tpu.memory_space<vmem>>, %arg15: memref<8x1xf32, #tpu.memory_space<vmem>>, %arg16: memref<1x8x256xf32, #tpu.memory_space<vmem>>) attributes {dimension_semantics = [#tpu.dimension_semantics<parallel>], iteration_bounds = array<i64: 2>, scalar_prefetch = 0 : i64, scratch_operands = 0 : i64, tpu.core_type = #tpu.core_type<tc>, window_params = [{transform_indices = @transform_0, window_bounds = array<i64: 1, 256, 16>}, {transform_indices = @transform_1, window_bounds = array<i64: 1, 64, 32>}, {transform_indices = @transform_2, window_bounds = array<i64: 1, 16, 64>}, {transform_indices = @transform_3, window_bounds = array<i64: 1, 4, 128>}, {pipeline_mode = #tpu.pipeline_mode<synchronous>, transform_indices = @transform_4, window_bounds = array<i64: 256, 64>}, {pipeline_mode = #tpu.pipeline_mode<synchronous>, transform_indices = @transform_5, window_bounds = array<i64: 256, 16>}, {pipeline_mode = #tpu.pipeline_mode<synchronous>, transform_indices = @transform_6, window_bounds = array<i64: 256, 4>}, {pipeline_mode = #tpu.pipeline_mode<synchronous>, transform_indices = @transform_7, window_bounds = array<i64: 16, 32>}, {pipeline_mode = #tpu.pipeline_mode<synchronous>, transform_indices = @transform_8, window_bounds = array<i64: 32, 32>}, {pipeline_mode = #tpu.pipeline_mode<synchronous>, transform_indices = @transform_9, window_bounds = array<i64: 64, 32>}, {pipeline_mode = #tpu.pipeline_mode<synchronous>, transform_indices = @transform_10, window_bounds = array<i64: 128, 32>}, {pipeline_mode = #tpu.pipeline_mode<synchronous>, transform_indices = @transform_11, window_bounds = array<i64: 1, 32>}, {pipeline_mode = #tpu.pipeline_mode<synchronous>, transform_indices = @transform_12, window_bounds = array<i64: 1, 32>}, {pipeline_mode = #tpu.pipeline_mode<synchronous>, transform_indices = @transform_13, window_bounds = array<i64: 8, 32>}, {pipeline_mode = #tpu.pipeline_mode<synchronous>, transform_indices = @transform_14, window_bounds = array<i64: 8, 1>}, {transform_indices = @transform_15, window_bounds = array<i64: 1, 8, 256>}]} {
    %c0 = arith.constant 0 : index
    %c0_0 = arith.constant 0 : index
    %c0_1 = arith.constant 0 : index
    %0 = vector.load %arg1[%c0, %c0_0, %c0_1] : memref<1x256x16xbf16, #tpu.memory_space<vmem>>, vector<1x256x16xbf16>
    %1 = vector.shape_cast %0 : vector<1x256x16xbf16> to vector<256x16xbf16>
    %c0_2 = arith.constant 0 : index
    %c0_3 = arith.constant 0 : index
    %2 = vector.load %arg8[%c0_2, %c0_3] : memref<16x32xbf16, #tpu.memory_space<vmem>>, vector<16x32xbf16>
    %cst = arith.constant dense<0.000000e+00> : vector<256x32xf32>
    %3 = tpu.matmul %1, %2, %cst {dimension_numbers = #tpu.dot_dimension_numbers<[1], [0], [0], [1], [0, 0, 1, 1], [], []>} : vector<256x16xbf16>, vector<16x32xbf16>, vector<256x32xf32> -> vector<256x32xf32>
    %c0_4 = arith.constant 0 : index
    %c0_5 = arith.constant 0 : index
    %c0_6 = arith.constant 0 : index
    %4 = vector.load %arg2[%c0_4, %c0_5, %c0_6] : memref<1x64x32xbf16, #tpu.memory_space<vmem>>, vector<1x64x32xbf16>
    %5 = vector.shape_cast %4 : vector<1x64x32xbf16> to vector<64x32xbf16>
    %c0_7 = arith.constant 0 : index
    %c0_8 = arith.constant 0 : index
    %6 = vector.load %arg9[%c0_7, %c0_8] : memref<32x32xbf16, #tpu.memory_space<vmem>>, vector<32x32xbf16>
    %cst_9 = arith.constant dense<0.000000e+00> : vector<64x32xf32>
    %7 = tpu.matmul %5, %6, %cst_9 {dimension_numbers = #tpu.dot_dimension_numbers<[1], [0], [0], [1], [0, 0, 1, 1], [], []>} : vector<64x32xbf16>, vector<32x32xbf16>, vector<64x32xf32> -> vector<64x32xf32>
    %c0_10 = arith.constant 0 : index
    %c0_11 = arith.constant 0 : index
    %8 = vector.load %arg5[%c0_10, %c0_11] : memref<256x64xbf16, #tpu.memory_space<vmem>>, vector<256x64xbf16>
    %9 = arith.truncf %7 : vector<64x32xf32> to vector<64x32xbf16>
    %cst_12 = arith.constant dense<0.000000e+00> : vector<256x32xf32>
    %10 = tpu.matmul %8, %9, %cst_12 {dimension_numbers = #tpu.dot_dimension_numbers<[1], [0], [0], [1], [0, 0, 1, 1], [], []>} : vector<256x64xbf16>, vector<64x32xbf16>, vector<256x32xf32> -> vector<256x32xf32>
    %11 = arith.addf %3, %10 : vector<256x32xf32>
    %c0_13 = arith.constant 0 : index
    %c0_14 = arith.constant 0 : index
    %c0_15 = arith.constant 0 : index
    %12 = vector.load %arg3[%c0_13, %c0_14, %c0_15] : memref<1x16x64xbf16, #tpu.memory_space<vmem>>, vector<1x16x64xbf16>
    %13 = vector.shape_cast %12 : vector<1x16x64xbf16> to vector<16x64xbf16>
    %c0_16 = arith.constant 0 : index
    %c0_17 = arith.constant 0 : index
    %14 = vector.load %arg10[%c0_16, %c0_17] : memref<64x32xbf16, #tpu.memory_space<vmem>>, vector<64x32xbf16>
    %cst_18 = arith.constant dense<0.000000e+00> : vector<16x32xf32>
    %15 = tpu.matmul %13, %14, %cst_18 {dimension_numbers = #tpu.dot_dimension_numbers<[1], [0], [0], [1], [0, 0, 1, 1], [], []>} : vector<16x64xbf16>, vector<64x32xbf16>, vector<16x32xf32> -> vector<16x32xf32>
    %c0_19 = arith.constant 0 : index
    %c0_20 = arith.constant 0 : index
    %16 = vector.load %arg6[%c0_19, %c0_20] : memref<256x16xbf16, #tpu.memory_space<vmem>>, vector<256x16xbf16>
    %17 = arith.truncf %15 : vector<16x32xf32> to vector<16x32xbf16>
    %cst_21 = arith.constant dense<0.000000e+00> : vector<256x32xf32>
    %18 = tpu.matmul %16, %17, %cst_21 {dimension_numbers = #tpu.dot_dimension_numbers<[1], [0], [0], [1], [0, 0, 1, 1], [], []>} : vector<256x16xbf16>, vector<16x32xbf16>, vector<256x32xf32> -> vector<256x32xf32>
    %19 = arith.addf %11, %18 : vector<256x32xf32>
    %c0_22 = arith.constant 0 : index
    %c0_23 = arith.constant 0 : index
    %c0_24 = arith.constant 0 : index
    %20 = vector.load %arg4[%c0_22, %c0_23, %c0_24] : memref<1x4x128xbf16, #tpu.memory_space<vmem>>, vector<1x4x128xbf16>
    %21 = vector.shape_cast %20 : vector<1x4x128xbf16> to vector<4x128xbf16>
    %c0_25 = arith.constant 0 : index
    %c0_26 = arith.constant 0 : index
    %22 = vector.load %arg11[%c0_25, %c0_26] : memref<128x32xbf16, #tpu.memory_space<vmem>>, vector<128x32xbf16>
    %cst_27 = arith.constant dense<0.000000e+00> : vector<4x32xf32>
    %23 = tpu.matmul %21, %22, %cst_27 {dimension_numbers = #tpu.dot_dimension_numbers<[1], [0], [0], [1], [0, 0, 1, 1], [], []>} : vector<4x128xbf16>, vector<128x32xbf16>, vector<4x32xf32> -> vector<4x32xf32>
    %c0_28 = arith.constant 0 : index
    %c0_29 = arith.constant 0 : index
    %24 = vector.load %arg7[%c0_28, %c0_29] : memref<256x4xbf16, #tpu.memory_space<vmem>>, vector<256x4xbf16>
    %25 = arith.truncf %23 : vector<4x32xf32> to vector<4x32xbf16>
    %cst_30 = arith.constant dense<0.000000e+00> : vector<256x32xf32>
    %26 = tpu.matmul %24, %25, %cst_30 {dimension_numbers = #tpu.dot_dimension_numbers<[1], [0], [0], [1], [0, 0, 1, 1], [], []>} : vector<256x4xbf16>, vector<4x32xbf16>, vector<256x32xf32> -> vector<256x32xf32>
    %27 = arith.addf %19, %26 : vector<256x32xf32>
    %c0_31 = arith.constant 0 : index
    %c0_32 = arith.constant 0 : index
    %28 = vector.load %arg12[%c0_31, %c0_32] : memref<1x32xf32, #tpu.memory_space<vmem>>, vector<1x32xf32>
    %29 = vector.broadcast %28 : vector<1x32xf32> to vector<256x32xf32>
    %30 = arith.mulf %27, %29 : vector<256x32xf32>
    %c0_33 = arith.constant 0 : index
    %c0_34 = arith.constant 0 : index
    %31 = vector.load %arg13[%c0_33, %c0_34] : memref<1x32xf32, #tpu.memory_space<vmem>>, vector<1x32xf32>
    %32 = vector.broadcast %31 : vector<1x32xf32> to vector<256x32xf32>
    %33 = arith.addf %30, %32 : vector<256x32xf32>
    %cst_35 = arith.constant 0.000000e+00 : f32
    %34 = vector.broadcast %cst_35 : f32 to vector<256x32xf32>
    %35 = arith.maximumf %33, %34 : vector<256x32xf32>
    %c0_36 = arith.constant 0 : index
    %c0_37 = arith.constant 0 : index
    %36 = vector.load %arg14[%c0_36, %c0_37] : memref<8x32xbf16, #tpu.memory_space<vmem>>, vector<8x32xbf16>
    %37 = arith.truncf %35 : vector<256x32xf32> to vector<256x32xbf16>
    %cst_38 = arith.constant dense<0.000000e+00> : vector<8x256xf32>
    %38 = tpu.matmul %36, %37, %cst_38 {dimension_numbers = #tpu.dot_dimension_numbers<[1], [1], [0], [0], [0, 0, 1, 0], [], []>} : vector<8x32xbf16>, vector<256x32xbf16>, vector<8x256xf32> -> vector<8x256xf32>
    %c0_39 = arith.constant 0 : index
    %c0_40 = arith.constant 0 : index
    %39 = vector.load %arg15[%c0_39, %c0_40] : memref<8x1xf32, #tpu.memory_space<vmem>>, vector<8x1xf32>
    %40 = vector.broadcast %39 : vector<8x1xf32> to vector<8x256xf32>
    %41 = arith.addf %38, %40 : vector<8x256xf32>
    %c0_41 = arith.constant 0 : index
    %c0_42 = arith.constant 0 : index
    %c0_43 = arith.constant 0 : index
    %42 = vector.load %arg16[%c0_41, %c0_42, %c0_43] : memref<1x8x256xf32, #tpu.memory_space<vmem>>, vector<1x8x256xf32>
    %43 = vector.shape_cast %42 : vector<1x8x256xf32> to vector<8x256xf32>
    %44 = vector.shape_cast %41 : vector<8x256xf32> to vector<1x8x256xf32>
    tpu.vector_store %arg16[%c0_41, %c0_42, %c0_43], %44 {strides = array<i32>} : memref<1x8x256xf32, #tpu.memory_space<vmem>>, vector<1x8x256xf32>,
    return
  }
  func.func @transform_0(%arg0: i32) -> (i32, i32, i32) {
    %c0_i32 = arith.constant 0 : i32
    %c0_i32_0 = arith.constant 0 : i32
    %c0_i32_1 = arith.constant 0 : i32
    return %arg0, %c0_i32, %c0_i32_0 : i32, i32, i32
  }
  func.func @transform_1(%arg0: i32) -> (i32, i32, i32) {
    %c0_i32 = arith.constant 0 : i32
    %c0_i32_0 = arith.constant 0 : i32
    %c0_i32_1 = arith.constant 0 : i32
    return %arg0, %c0_i32, %c0_i32_0 : i32, i32, i32
  }
  func.func @transform_2(%arg0: i32) -> (i32, i32, i32) {
    %c0_i32 = arith.constant 0 : i32
    %c0_i32_0 = arith.constant 0 : i32
    %c0_i32_1 = arith.constant 0 : i32
    return %arg0, %c0_i32, %c0_i32_0 : i32, i32, i32
  }
  func.func @transform_3(%arg0: i32) -> (i32, i32, i32) {
    %c0_i32 = arith.constant 0 : i32
    %c0_i32_0 = arith.constant 0 : i32
    %c0_i32_1 = arith.constant 0 : i32
    return %arg0, %c0_i32, %c0_i32_0 : i32, i32, i32
  }
  func.func @transform_4(%arg0: i32) -> (i32, i32) {
    %c0_i32 = arith.constant 0 : i32
    %c0_i32_0 = arith.constant 0 : i32
    %c0_i32_1 = arith.constant 0 : i32
    return %c0_i32, %c0_i32_0 : i32, i32
  }
  func.func @transform_5(%arg0: i32) -> (i32, i32) {
    %c0_i32 = arith.constant 0 : i32
    %c0_i32_0 = arith.constant 0 : i32
    %c0_i32_1 = arith.constant 0 : i32
    return %c0_i32, %c0_i32_0 : i32, i32
  }
  func.func @transform_6(%arg0: i32) -> (i32, i32) {
    %c0_i32 = arith.constant 0 : i32
    %c0_i32_0 = arith.constant 0 : i32
    %c0_i32_1 = arith.constant 0 : i32
    return %c0_i32, %c0_i32_0 : i32, i32
  }
  func.func @transform_7(%arg0: i32) -> (i32, i32) {
    %c0_i32 = arith.constant 0 : i32
    %c0_i32_0 = arith.constant 0 : i32
    %c0_i32_1 = arith.constant 0 : i32
    return %c0_i32, %c0_i32_0 : i32, i32
  }
  func.func @transform_8(%arg0: i32) -> (i32, i32) {
    %c0_i32 = arith.constant 0 : i32
    %c0_i32_0 = arith.constant 0 : i32
    %c0_i32_1 = arith.constant 0 : i32
    return %c0_i32, %c0_i32_0 : i32, i32
  }
  func.func @transform_9(%arg0: i32) -> (i32, i32) {
    %c0_i32 = arith.constant 0 : i32
    %c0_i32_0 = arith.constant 0 : i32
    %c0_i32_1 = arith.constant 0 : i32
    return %c0_i32, %c0_i32_0 : i32, i32
  }
  func.func @transform_10(%arg0: i32) -> (i32, i32) {
    %c0_i32 = arith.constant 0 : i32
    %c0_i32_0 = arith.constant 0 : i32
    %c0_i32_1 = arith.constant 0 : i32
    return %c0_i32, %c0_i32_0 : i32, i32
  }
  func.func @transform_11(%arg0: i32) -> (i32, i32) {
    %c0_i32 = arith.constant 0 : i32
    %c0_i32_0 = arith.constant 0 : i32
    %c0_i32_1 = arith.constant 0 : i32
    return %c0_i32, %c0_i32_0 : i32, i32
  }
  func.func @transform_12(%arg0: i32) -> (i32, i32) {
    %c0_i32 = arith.constant 0 : i32
    %c0_i32_0 = arith.constant 0 : i32
    %c0_i32_1 = arith.constant 0 : i32
    return %c0_i32, %c0_i32_0 : i32, i32
  }
  func.func @transform_13(%arg0: i32) -> (i32, i32) {
    %c0_i32 = arith.constant 0 : i32
    %c0_i32_0 = arith.constant 0 : i32
    %c0_i32_1 = arith.constant 0 : i32
    return %c0_i32, %c0_i32_0 : i32, i32
  }
  func.func @transform_14(%arg0: i32) -> (i32, i32) {
    %c0_i32 = arith.constant 0 : i32
    %c0_i32_0 = arith.constant 0 : i32
    %c0_i32_1 = arith.constant 0 : i32
    return %c0_i32, %c0_i32_0 : i32, i32
  }
  func.func @transform_15(%arg0: i32) -> (i32, i32, i32) {
    %c0_i32 = arith.constant 0 : i32
    %c0_i32_0 = arith.constant 0 : i32
    %c0_i32_1 = arith.constant 0 : i32
    return %arg0, %c0_i32, %c0_i32_0 : i32, i32, i32
  }
}

module attributes {stable_mosaic.version = 11 : i64} {
  func.func @_resize_kernel(%arg0: i32, %arg1: memref<1x128x16xf32, #tpu.memory_space<vmem>>, %arg2: memref<16x64xbf16, #tpu.memory_space<vmem>>, %arg3: memref<8x64x16xbf16, #tpu.memory_space<vmem>>, %arg4: memref<1x8x64x64xf32, #tpu.memory_space<vmem>>) attributes {dimension_semantics = [#tpu.dimension_semantics<parallel>], iteration_bounds = array<i64: 2>, scalar_prefetch = 0 : i64, scratch_operands = 0 : i64, tpu.core_type = #tpu.core_type<tc>, window_params = [{transform_indices = @transform_0, window_bounds = array<i64: 1, 128, 16>}, {pipeline_mode = #tpu.pipeline_mode<synchronous>, transform_indices = @transform_1, window_bounds = array<i64: 16, 64>}, {pipeline_mode = #tpu.pipeline_mode<synchronous>, transform_indices = @transform_2, window_bounds = array<i64: 8, 64, 16>}, {transform_indices = @transform_3, window_bounds = array<i64: 1, 8, 64, 64>}]} {
    %c0 = arith.constant 0 : index
    %c0_0 = arith.constant 0 : index
    %c0_1 = arith.constant 0 : index
    %0 = vector.load %arg1[%c0, %c0_0, %c0_1] : memref<1x128x16xf32, #tpu.memory_space<vmem>>, vector<1x128x16xf32>
    %1 = vector.shape_cast %0 : vector<1x128x16xf32> to vector<128x16xf32>
    %2 = arith.truncf %1 : vector<128x16xf32> to vector<128x16xbf16>
    %c0_2 = arith.constant 0 : index
    %c0_3 = arith.constant 0 : index
    %3 = vector.load %arg2[%c0_2, %c0_3] : memref<16x64xbf16, #tpu.memory_space<vmem>>, vector<16x64xbf16>
    %cst = arith.constant dense<0.000000e+00> : vector<128x64xf32>
    %4 = tpu.matmul %2, %3, %cst {dimension_numbers = #tpu.dot_dimension_numbers<[1], [0], [0], [1], [0, 0, 1, 1], [], []>} : vector<128x16xbf16>, vector<16x64xbf16>, vector<128x64xf32> -> vector<128x64xf32>
    %5 = vector.shape_cast %4 : vector<128x64xf32> to vector<8x16x64xf32>
    %6 = arith.truncf %5 : vector<8x16x64xf32> to vector<8x16x64xbf16>
    %c0_4 = arith.constant 0 : index
    %c0_5 = arith.constant 0 : index
    %c0_6 = arith.constant 0 : index
    %7 = vector.load %arg3[%c0_4, %c0_5, %c0_6] : memref<8x64x16xbf16, #tpu.memory_space<vmem>>, vector<8x64x16xbf16>
    %cst_7 = arith.constant dense<0.000000e+00> : vector<8x64x64xf32>
    %8 = tpu.matmul %7, %6, %cst_7 {dimension_numbers = #tpu.dot_dimension_numbers<[2], [1], [1], [2], [0, 0, 0, 1, 1, 2], [0], [0]>} : vector<8x64x16xbf16>, vector<8x16x64xbf16>, vector<8x64x64xf32> -> vector<8x64x64xf32>
    %c0_8 = arith.constant 0 : index
    %c0_9 = arith.constant 0 : index
    %c0_10 = arith.constant 0 : index
    %c0_11 = arith.constant 0 : index
    %9 = vector.load %arg4[%c0_8, %c0_9, %c0_10, %c0_11] : memref<1x8x64x64xf32, #tpu.memory_space<vmem>>, vector<1x8x64x64xf32>
    %10 = vector.shape_cast %9 : vector<1x8x64x64xf32> to vector<8x64x64xf32>
    %11 = vector.shape_cast %8 : vector<8x64x64xf32> to vector<1x8x64x64xf32>
    tpu.vector_store %arg4[%c0_8, %c0_9, %c0_10, %c0_11], %11 {strides = array<i32>} : memref<1x8x64x64xf32, #tpu.memory_space<vmem>>, vector<1x8x64x64xf32>,
    return
  }
  func.func @transform_0(%arg0: i32) -> (i32, i32, i32) {
    %c0_i32 = arith.constant 0 : i32
    %c0_i32_0 = arith.constant 0 : i32
    %c0_i32_1 = arith.constant 0 : i32
    return %arg0, %c0_i32, %c0_i32_0 : i32, i32, i32
  }
  func.func @transform_1(%arg0: i32) -> (i32, i32) {
    %c0_i32 = arith.constant 0 : i32
    %c0_i32_0 = arith.constant 0 : i32
    %c0_i32_1 = arith.constant 0 : i32
    return %c0_i32, %c0_i32_0 : i32, i32
  }
  func.func @transform_2(%arg0: i32) -> (i32, i32, i32) {
    %c0_i32 = arith.constant 0 : i32
    %c0_i32_0 = arith.constant 0 : i32
    %c0_i32_1 = arith.constant 0 : i32
    %c0_i32_2 = arith.constant 0 : i32
    return %c0_i32, %c0_i32_0, %c0_i32_1 : i32, i32, i32
  }
  func.func @transform_3(%arg0: i32) -> (i32, i32, i32, i32) {
    %c0_i32 = arith.constant 0 : i32
    %c0_i32_0 = arith.constant 0 : i32
    %c0_i32_1 = arith.constant 0 : i32
    %c0_i32_2 = arith.constant 0 : i32
    return %arg0, %c0_i32, %c0_i32_0, %c0_i32_1 : i32, i32, i32, i32
  }
}

</mosaic_0001>

<llo_original>
// kernel: seg_forward.4
$region0: #{seg_forward.4}
  #allocation0 [shape = 'u32[]', space=smem, size = 0x4, offset = 0x4, fixed_abs, tag = 'smem constant byte address 0x4 - core index']
  #allocation1 [shape = 'u32[144,128]{1,0:T(1,128)}', space=vmem, size = 0x12000, scoped, tag = 'internal scratch']
  %s0 = inlined_call_operand.vmem [shape: bf16[512,48], index: 0, kind: input, shape index: {}]
  %s1 = inlined_call_operand.vmem [shape: bf16[48,16], index: 1, kind: input, shape index: {}]
  %s2 = inlined_call_operand.vmem [shape: f32[1,16], index: 2, kind: input, shape index: {}]
  %s3 = inlined_call_operand.vmem [shape: f32[1,16], index: 3, kind: input, shape index: {}]
  %s4 = inlined_call_operand.vmem [shape: f32[1,16], index: 4, kind: input, shape index: {}]
  %s5 = inlined_call_operand.vmem [shape: bf16[512,16], index: 5, kind: output, shape index: {}]
  %s6 = sld [smem:[#allocation0]]
  $region30: #{seg_forward.4} parent=0
    _
  %s8 = ssub.s32 1, %s6
  %s9 = scalar_select 0, %s8, %s6
  // Predicated region
  $region2: #{seg_forward.4} parent=0 // pred_check
    _
  $region3: #{seg_forward.4} parent=0 // pred_check_branch
    %11 = sbr.rel (0) target = $region5
  $region4: #{seg_forward.4} parent=0 // pred_region
    _
  $region5: #{seg_forward.4} parent=0 // pred_fallthru
    _
  // Predicated region
  $region6: #{seg_forward.4} parent=0 // pred_check
    _
  $region7: #{seg_forward.4} parent=0 // pred_check_branch
    %13 = sbr.rel (0) target = $region9
  $region8: #{seg_forward.4} parent=0 // pred_region
    _
  $region9: #{seg_forward.4} parent=0 // pred_fallthru
    _
  // Predicated region
  $region10: #{seg_forward.4} parent=0 // pred_check
    _
  $region11: #{seg_forward.4} parent=0 // pred_check_branch
    %15 = sbr.rel (0) target = $region13
  $region12: #{seg_forward.4} parent=0 // pred_region
    _
  $region13: #{seg_forward.4} parent=0 // pred_fallthru
    _
  // Predicated region
  $region14: #{seg_forward.4} parent=0 // pred_check
    _
  $region15: #{seg_forward.4} parent=0 // pred_check_branch
    %17 = sbr.rel (0) target = $region17
  $region16: #{seg_forward.4} parent=0 // pred_region
    _
  $region17: #{seg_forward.4} parent=0 // pred_fallthru
    _
  // Predicated region
  $region18: #{seg_forward.4} parent=0 // pred_check
    _
  $region19: #{seg_forward.4} parent=0 // pred_check_branch
    %19 = sbr.rel (0) target = $region21
  $region20: #{seg_forward.4} parent=0 // pred_region
    _
  $region21: #{seg_forward.4} parent=0 // pred_fallthru
    _
  %v21 = vld [vmem:[%s0] sm:$0xf]
  %v22 = vld [vmem:[%s0 + $0x4] sm:$0xf]
  %v23 = vld [vmem:[%s0 + $0x8] sm:$0xf]
  %v24 = vld [vmem:[%s0 + $0xc] sm:$0xf]
  %v25 = vld [vmem:[%s0 + $0x10] sm:$0xf]
  %v26 = vld [vmem:[%s0 + $0x14] sm:$0xf]
  %v27 = vld [vmem:[%s0 + $0x18] sm:$0xf]
  %v28 = vld [vmem:[%s0 + $0x1c] sm:$0xf]
  %v29 = vld [vmem:[%s0 + $0x20] sm:$0xf]
  %v30 = vld [vmem:[%s0 + $0x24] sm:$0xf]
  %v31 = vld [vmem:[%s0 + $0x28] sm:$0xf]
  %v32 = vld [vmem:[%s0 + $0x2c] sm:$0xf]
  %v33 = vld [vmem:[%s0 + $0x30] sm:$0xf]
  %v34 = vld [vmem:[%s0 + $0x34] sm:$0xf]
  %v35 = vld [vmem:[%s0 + $0x38] sm:$0xf]
  %v36 = vld [vmem:[%s0 + $0x3c] sm:$0xf]
  %v37 = vld [vmem:[%s0 + $0x40] sm:$0xf]
  %v38 = vld [vmem:[%s0 + $0x44] sm:$0xf]
  %v39 = vld [vmem:[%s0 + $0x48] sm:$0xf]
  %v40 = vld [vmem:[%s0 + $0x4c] sm:$0xf]
  %v41 = vld [vmem:[%s0 + $0x50] sm:$0xf]
  %v42 = vld [vmem:[%s0 + $0x54] sm:$0xf]
  %v43 = vld [vmem:[%s0 + $0x58] sm:$0xf]
  %v44 = vld [vmem:[%s0 + $0x5c] sm:$0xf]
  %v45 = vld [vmem:[%s0 + $0x60] sm:$0xf]
  %v46 = vld [vmem:[%s0 + $0x64] sm:$0xf]
  %v47 = vld [vmem:[%s0 + $0x68] sm:$0xf]
  %v48 = vld [vmem:[%s0 + $0x6c] sm:$0xf]
  %v49 = vld [vmem:[%s0 + $0x70] sm:$0xf]
  %v50 = vld [vmem:[%s0 + $0x74] sm:$0xf]
  %v51 = vld [vmem:[%s0 + $0x78] sm:$0xf]
  %v52 = vld [vmem:[%s0 + $0x7c] sm:$0xf]
  %v53 = vld [vmem:[%s0 + $0x80] sm:$0xf]
  %v54 = vld [vmem:[%s0 + $0x84] sm:$0xf]
  %v55 = vld [vmem:[%s0 + $0x88] sm:$0xf]
  %v56 = vld [vmem:[%s0 + $0x8c] sm:$0xf]
  %v57 = vld [vmem:[%s0 + $0x90] sm:$0xf]
  %v58 = vld [vmem:[%s0 + $0x94] sm:$0xf]
  %v59 = vld [vmem:[%s0 + $0x98] sm:$0xf]
  %v60 = vld [vmem:[%s0 + $0x9c] sm:$0xf]
  %v61 = vld [vmem:[%s0 + $0xa0] sm:$0xf]
  %v62 = vld [vmem:[%s0 + $0xa4] sm:$0xf]
  %v63 = vld [vmem:[%s0 + $0xa8] sm:$0xf]
  %v64 = vld [vmem:[%s0 + $0xac] sm:$0xf]
  %v65 = vld [vmem:[%s0 + $0xb0] sm:$0xf]
  %v66 = vld [vmem:[%s0 + $0xb4] sm:$0xf]
  %v67 = vld [vmem:[%s0 + $0xb8] sm:$0xf]
  %v68 = vld [vmem:[%s0 + $0xbc] sm:$0xf]
  %v69 = vld [vmem:[%s0 + $0xc0] sm:$0xf]
  %v70 = vld [vmem:[%s0 + $0xc4] sm:$0xf]
  %v71 = vld [vmem:[%s0 + $0xc8] sm:$0xf]
  %v72 = vld [vmem:[%s0 + $0xcc] sm:$0xf]
  %v73 = vld [vmem:[%s0 + $0xd0] sm:$0xf]
  %v74 = vld [vmem:[%s0 + $0xd4] sm:$0xf]
  %v75 = vld [vmem:[%s0 + $0xd8] sm:$0xf]
  %v76 = vld [vmem:[%s0 + $0xdc] sm:$0xf]
  %v77 = vld [vmem:[%s0 + $0xe0] sm:$0xf]
  %v78 = vld [vmem:[%s0 + $0xe4] sm:$0xf]
  %v79 = vld [vmem:[%s0 + $0xe8] sm:$0xf]
  %v80 = vld [vmem:[%s0 + $0xec] sm:$0xf]
  %v81 = vld [vmem:[%s0 + $0xf0] sm:$0xf]
  %v82 = vld [vmem:[%s0 + $0xf4] sm:$0xf]
  %v83 = vld [vmem:[%s0 + $0xf8] sm:$0xf]
  %v84 = vld [vmem:[%s0 + $0xfc] sm:$0xf]
  %v85 = vld [vmem:[%s1] sm:$0xf]
  %v86 = vld [vmem:[%s1 + $0x4] sm:$0xf]
  %v87 = vld [vmem:[%s1 + $0x8] sm:$0xf]
  %v88 = vld [vmem:[%s1 + $0xc] sm:$0xf]
  %v89 = vld [vmem:[%s1 + $0x10] sm:$0xf]
  %v90 = vld [vmem:[%s1 + $0x14] sm:$0xf]
  %v91 = vld [vmem:[%s2] sm:$0x1]
  %v93 = vlaneseq
  %v94 = vshrl.u32 %v93, 7
  %v95 = vsub.s32 0, %v94
  %v96 = vrot.slane %v91, %v95
  %v162 = vunpack.c.l.b16 %v21
  %v163 = vunpack.c.l.b16 %v22
  %v164 = vunpack.c.l.b16 %v23
  %v165 = vunpack.c.l.b16 %v24
  %v166 = vunpack.c.l.b16 %v25
  %v167 = vunpack.c.l.b16 %v26
  %v168 = vunpack.c.l.b16 %v27
  %v169 = vunpack.c.l.b16 %v28
  %v170 = vunpack.c.l.b16 %v29
  %v171 = vunpack.c.l.b16 %v30
  %v172 = vunpack.c.l.b16 %v31
  %v173 = vunpack.c.l.b16 %v32
  %v174 = vunpack.c.l.b16 %v33
  %v175 = vunpack.c.l.b16 %v34
  %v176 = vunpack.c.l.b16 %v35
  %v177 = vunpack.c.l.b16 %v36
  %v178 = vunpack.c.l.b16 %v37
  %v179 = vunpack.c.l.b16 %v38
  %v180 = vunpack.c.l.b16 %v39
  %v181 = vunpack.c.l.b16 %v40
  %v182 = vunpack.c.l.b16 %v41
  %v183 = vunpack.c.l.b16 %v42
  %v184 = vunpack.c.l.b16 %v43
  %v185 = vunpack.c.l.b16 %v44
  %v186 = vunpack.c.l.b16 %v45
  %v187 = vunpack.c.l.b16 %v46
  %v188 = vunpack.c.l.b16 %v47
  %v189 = vunpack.c.l.b16 %v48
  %v190 = vunpack.c.l.b16 %v49
  %v191 = vunpack.c.l.b16 %v50
  %v192 = vunpack.c.l.b16 %v51
  %v193 = vunpack.c.l.b16 %v52
  %v194 = vunpack.c.l.b16 %v53
  %v195 = vunpack.c.l.b16 %v54
  %v196 = vunpack.c.l.b16 %v55
  %v197 = vunpack.c.l.b16 %v56
  %v198 = vunpack.c.l.b16 %v57
  %v199 = vunpack.c.l.b16 %v58
  %v200 = vunpack.c.l.b16 %v59
  %v201 = vunpack.c.l.b16 %v60
  %v202 = vunpack.c.l.b16 %v61
  %v203 = vunpack.c.l.b16 %v62
  %v204 = vunpack.c.l.b16 %v63
  %v205 = vunpack.c.l.b16 %v64
  %v206 = vunpack.c.l.b16 %v65
  %v207 = vunpack.c.l.b16 %v66
  %v208 = vunpack.c.l.b16 %v67
  %v209 = vunpack.c.l.b16 %v68
  %v210 = vunpack.c.l.b16 %v69
  %v211 = vunpack.c.l.b16 %v70
  %v212 = vunpack.c.l.b16 %v71
  %v213 = vunpack.c.l.b16 %v72
  %v214 = vunpack.c.l.b16 %v73
  %v215 = vunpack.c.l.b16 %v74
  %v216 = vunpack.c.l.b16 %v75
  %v217 = vunpack.c.l.b16 %v76
  %v218 = vunpack.c.l.b16 %v77
  %v219 = vunpack.c.l.b16 %v78
  %v220 = vunpack.c.l.b16 %v79
  %v221 = vunpack.c.l.b16 %v80
  %v222 = vunpack.c.l.b16 %v81
  %v223 = vunpack.c.l.b16 %v82
  %v224 = vunpack.c.l.b16 %v83
  %v225 = vunpack.c.l.b16 %v84
  %v226 = vpack.c.b16 %v163, %v162
  %v227 = vpack.c.b16 %v165, %v164
  %v228 = vpack.c.b16 %v167, %v166
  %v229 = vpack.c.b16 %v169, %v168
  %v230 = vpack.c.b16 %v171, %v170
  %v231 = vpack.c.b16 %v173, %v172
  %v232 = vpack.c.b16 %v175, %v174
  %v233 = vpack.c.b16 %v177, %v176
  %v234 = vpack.c.b16 %v179, %v178
  %v235 = vpack.c.b16 %v181, %v180
  %v236 = vpack.c.b16 %v183, %v182
  %v237 = vpack.c.b16 %v185, %v184
  %v238 = vpack.c.b16 %v187, %v186
  %v239 = vpack.c.b16 %v189, %v188
  %v240 = vpack.c.b16 %v191, %v190
  %v241 = vpack.c.b16 %v193, %v192
  %v242 = vpack.c.b16 %v195, %v194
  %v243 = vpack.c.b16 %v197, %v196
  %v244 = vpack.c.b16 %v199, %v198
  %v245 = vpack.c.b16 %v201, %v200
  %v246 = vpack.c.b16 %v203, %v202
  %v247 = vpack.c.b16 %v205, %v204
  %v248 = vpack.c.b16 %v207, %v206
  %v249 = vpack.c.b16 %v209, %v208
  %v250 = vpack.c.b16 %v211, %v210
  %v251 = vpack.c.b16 %v213, %v212
  %v252 = vpack.c.b16 %v215, %v214
  %v253 = vpack.c.b16 %v217, %v216
  %v254 = vpack.c.b16 %v219, %v218
  %v255 = vpack.c.b16 %v221, %v220
  %v256 = vpack.c.b16 %v223, %v222
  %v257 = vpack.c.b16 %v225, %v224
  %v264 = vunpack.c.l.b16 %v85
  %v265 = vunpack.c.l.b16 %v86
  %v266 = vunpack.c.l.b16 %v87
  %v267 = vunpack.c.l.b16 %v88
  %v268 = vunpack.c.l.b16 %v89
  %v269 = vunpack.c.l.b16 %v90
  %v270 = vpack.c.b16 %v265, %v264
  %v271 = vpack.c.b16 %v267, %v266
  %v272 = vpack.c.b16 %v269, %v268
  %vm276 = vcmask 392192
  %v278 = vsel %vm276, %v226, 0
  %v281 = vsel %vm276, %v227, 0
  %v284 = vsel %vm276, %v228, 0
  %v287 = vsel %vm276, %v229, 0
  %v290 = vsel %vm276, %v230, 0
  %v293 = vsel %vm276, %v231, 0
  %v296 = vsel %vm276, %v232, 0
  %v299 = vsel %vm276, %v233, 0
  %v302 = vsel %vm276, %v234, 0
  %v305 = vsel %vm276, %v235, 0
  %v308 = vsel %vm276, %v236, 0
  %v311 = vsel %vm276, %v237, 0
  %v314 = vsel %vm276, %v238, 0
  %v317 = vsel %vm276, %v239, 0
  %v320 = vsel %vm276, %v240, 0
  %v323 = vsel %vm276, %v241, 0
  %v326 = vsel %vm276, %v242, 0
  %v329 = vsel %vm276, %v243, 0
  %v332 = vsel %vm276, %v244, 0
  %v335 = vsel %vm276, %v245, 0
  %v338 = vsel %vm276, %v246, 0
  %v341 = vsel %vm276, %v247, 0
  %v344 = vsel %vm276, %v248, 0
  %v347 = vsel %vm276, %v249, 0
  %v350 = vsel %vm276, %v250, 0
  %v353 = vsel %vm276, %v251, 0
  %v356 = vsel %vm276, %v252, 0
  %v359 = vsel %vm276, %v253, 0
  %v362 = vsel %vm276, %v254, 0
  %v365 = vsel %vm276, %v255, 0
  %v368 = vsel %vm276, %v256, 0
  %v371 = vsel %vm276, %v257, 0
  %373 = vmatprep.subr.bf16.mxu0 0
  %374 = vmatpush1.bf16.msra.mxu0 %v270
  %375 = vmatprep.subr.bf16.mxu0 0
  %376 = vmatpush1.bf16.msra.mxu0 %v271
  %377 = vmatprep.subr.bf16.mxu0 0
  %378 = vmatpush1.bf16.msra.mxu0 %v272
  %379 = vmatprep.subr.bf16.mxu0 0
  %380 = vmatpush1.bf16.msra.mxu0 0
  %381 = vmatprep.subr.bf16.mxu0 0
  %382 = vmatpush1.bf16.msra.mxu0 0
  %383 = vmatprep.subr.bf16.mxu0 0
  %384 = vmatpush1.bf16.msra.mxu0 0
  %385 = vmatprep.subr.bf16.mxu0 0
  %386 = vmatpush1.bf16.msra.mxu0 0
  %387 = vmatprep.subr.bf16.mxu0 0
  %388 = vmatpush1.bf16.msra.mxu0 0
  %389 = vmatprep.subr.bf16.mxu0 0
  %390 = vmatpush1.bf16.msra.mxu0 0
  %391 = vmatprep.subr.bf16.mxu0 0
  %392 = vmatpush1.bf16.msra.mxu0 0
  %393 = vmatprep.subr.bf16.mxu0 0
  %394 = vmatpush1.bf16.msra.mxu0 0
  %395 = vmatprep.subr.bf16.mxu0 0
  %396 = vmatpush1.bf16.msra.mxu0 0
  %397 = vmatprep.subr.bf16.mxu0 0
  %398 = vmatpush1.bf16.msra.mxu0 0
  %399 = vmatprep.subr.bf16.mxu0 0
  %400 = vmatpush1.bf16.msra.mxu0 0
  %401 = vmatprep.subr.bf16.mxu0 0
  %402 = vmatpush1.bf16.msra.mxu0 0
  %403 = vmatprep.subr.bf16.mxu0 0
  %404 = vmatpush1.bf16.msra.mxu0 0
  %405 = vmatprep.mubr.bf16.mxu0 0
  %406 = vmatmul.mubr.bf16.gmra.mrb[0].mxu0 %v278
  %v407 = vpop.f32.mrb[0].mxu0
  %v408 = vadd.f32 %v96, %v407
  %v409 = vpop.f32.mrb[0].mxu0
  %v410 = vpop.f32.mrb[0].mxu0
  %v411 = vadd.f32 %v96, %v410
  %v412 = vpop.f32.mrb[0].mxu0
  %413 = vmatprep.mubr.bf16.mxu0 0
  %414 = vmatmul.mubr.bf16.gmra.mrb[0].mxu0 %v281
  %v415 = vpop.f32.mrb[0].mxu0
  %v416 = vadd.f32 %v96, %v415
  %v417 = vpop.f32.mrb[0].mxu0
  %v418 = vpop.f32.mrb[0].mxu0
  %v419 = vadd.f32 %v96, %v418
  %v420 = vpop.f32.mrb[0].mxu0
  %421 = vmatprep.mubr.bf16.mxu0 0
  %422 = vmatmul.mubr.bf16.gmra.mrb[0].mxu0 %v284
  %v423 = vpop.f32.mrb[0].mxu0
  %v424 = vadd.f32 %v96, %v423
  %v425 = vpop.f32.mrb[0].mxu0
  %v426 = vpop.f32.mrb[0].mxu0
  %v427 = vadd.f32 %v96, %v426
  %v428 = vpop.f32.mrb[0].mxu0
  %429 = vmatprep.mubr.bf16.mxu0 0
  %430 = vmatmul.mubr.bf16.gmra.mrb[0].mxu0 %v287
  %v431 = vpop.f32.mrb[0].mxu0
  %v432 = vadd.f32 %v96, %v431
  %v433 = vpop.f32.mrb[0].mxu0
  %v434 = vpop.f32.mrb[0].mxu0
  %v435 = vadd.f32 %v96, %v434
  %v436 = vpop.f32.mrb[0].mxu0
  %437 = vmatprep.mubr.bf16.mxu0 0
  %438 = vmatmul.mubr.bf16.gmra.mrb[0].mxu0 %v290
  %v439 = vpop.f32.mrb[0].mxu0
  %v440 = vadd.f32 %v96, %v439
  %v441 = vpop.f32.mrb[0].mxu0
  %v442 = vpop.f32.mrb[0].mxu0
  %v443 = vadd.f32 %v96, %v442
  %v444 = vpop.f32.mrb[0].mxu0
  %445 = vmatprep.mubr.bf16.mxu0 0
  %446 = vmatmul.mubr.bf16.gmra.mrb[0].mxu0 %v293
  %v447 = vpop.f32.mrb[0].mxu0
  %v448 = vadd.f32 %v96, %v447
  %v449 = vpop.f32.mrb[0].mxu0
  %v450 = vpop.f32.mrb[0].mxu0
  %v451 = vadd.f32 %v96, %v450
  %v452 = vpop.f32.mrb[0].mxu0
  %453 = vmatprep.mubr.bf16.mxu0 0
  %454 = vmatmul.mubr.bf16.gmra.mrb[0].mxu0 %v296
  %v455 = vpop.f32.mrb[0].mxu0
  %v456 = vadd.f32 %v96, %v455
  %v457 = vpop.f32.mrb[0].mxu0
  %v458 = vpop.f32.mrb[0].mxu0
  %v459 = vadd.f32 %v96, %v458
  %v460 = vpop.f32.mrb[0].mxu0
  %461 = vmatprep.mubr.bf16.mxu0 0
  %462 = vmatmul.mubr.bf16.gmra.mrb[0].mxu0 %v299
  %v463 = vpop.f32.mrb[0].mxu0
  %v464 = vadd.f32 %v96, %v463
  %v465 = vpop.f32.mrb[0].mxu0
  %v466 = vpop.f32.mrb[0].mxu0
  %v467 = vadd.f32 %v96, %v466
  %v468 = vpop.f32.mrb[0].mxu0
  %469 = vmatprep.mubr.bf16.mxu0 0
  %470 = vmatmul.mubr.bf16.gmra.mrb[0].mxu0 %v302
  %v471 = vpop.f32.mrb[0].mxu0
  %v472 = vadd.f32 %v96, %v471
  %v473 = vpop.f32.mrb[0].mxu0
  %v474 = vpop.f32.mrb[0].mxu0
  %v475 = vadd.f32 %v96, %v474
  %v476 = vpop.f32.mrb[0].mxu0
  %477 = vmatprep.mubr.bf16.mxu0 0
  %478 = vmatmul.mubr.bf16.gmra.mrb[0].mxu0 %v305
  %v479 = vpop.f32.mrb[0].mxu0
  %v480 = vadd.f32 %v96, %v479
  %v481 = vpop.f32.mrb[0].mxu0
  %v482 = vpop.f32.mrb[0].mxu0
  %v483 = vadd.f32 %v96, %v482
  %v484 = vpop.f32.mrb[0].mxu0
  %485 = vmatprep.mubr.bf16.mxu0 0
  %486 = vmatmul.mubr.bf16.gmra.mrb[0].mxu0 %v308
  %v487 = vpop.f32.mrb[0].mxu0
  %v488 = vadd.f32 %v96, %v487
  %v489 = vpop.f32.mrb[0].mxu0
  %v490 = vpop.f32.mrb[0].mxu0
  %v491 = vadd.f32 %v96, %v490
  %v492 = vpop.f32.mrb[0].mxu0
  %493 = vmatprep.mubr.bf16.mxu0 0
  %494 = vmatmul.mubr.bf16.gmra.mrb[0].mxu0 %v311
  %v495 = vpop.f32.mrb[0].mxu0
  %v496 = vadd.f32 %v96, %v495
  %v497 = vpop.f32.mrb[0].mxu0
  %v498 = vpop.f32.mrb[0].mxu0
  %v499 = vadd.f32 %v96, %v498
  %v500 = vpop.f32.mrb[0].mxu0
  %501 = vmatprep.mubr.bf16.mxu0 0
  %502 = vmatmul.mubr.bf16.gmra.mrb[0].mxu0 %v314
  %v503 = vpop.f32.mrb[0].mxu0
  %v504 = vadd.f32 %v96, %v503
  %v505 = vpop.f32.mrb[0].mxu0
  %v506 = vpop.f32.mrb[0].mxu0
  %v507 = vadd.f32 %v96, %v506
  %v508 = vpop.f32.mrb[0].mxu0
  %509 = vmatprep.mubr.bf16.mxu0 0
  %510 = vmatmul.mubr.bf16.gmra.mrb[0].mxu0 %v317
  %v511 = vpop.f32.mrb[0].mxu0
  %v512 = vadd.f32 %v96, %v511
  %v513 = vpop.f32.mrb[0].mxu0
  %v514 = vpop.f32.mrb[0].mxu0
  %v515 = vadd.f32 %v96, %v514
  %v516 = vpop.f32.mrb[0].mxu0
  %517 = vmatprep.mubr.bf16.mxu0 0
  %518 = vmatmul.mubr.bf16.gmra.mrb[0].mxu0 %v320
  %v519 = vpop.f32.mrb[0].mxu0
  %v520 = vadd.f32 %v96, %v519
  %v521 = vpop.f32.mrb[0].mxu0
  %v522 = vpop.f32.mrb[0].mxu0
  %v523 = vadd.f32 %v96, %v522
  %v524 = vpop.f32.mrb[0].mxu0
  %525 = vmatprep.mubr.bf16.mxu0 0
  %526 = vmatmul.mubr.bf16.gmra.mrb[0].mxu0 %v323
  %v527 = vpop.f32.mrb[0].mxu0
  %v528 = vadd.f32 %v96, %v527
  %v529 = vpop.f32.mrb[0].mxu0
  %v530 = vpop.f32.mrb[0].mxu0
  %v531 = vadd.f32 %v96, %v530
  %v532 = vpop.f32.mrb[0].mxu0
  %533 = vmatprep.mubr.bf16.mxu0 0
  %534 = vmatmul.mubr.bf16.gmra.mrb[0].mxu0 %v326
  %v535 = vpop.f32.mrb[0].mxu0
  %v536 = vadd.f32 %v96, %v535
  %v537 = vpop.f32.mrb[0].mxu0
  %v538 = vpop.f32.mrb[0].mxu0
  %v539 = vadd.f32 %v96, %v538
  %v540 = vpop.f32.mrb[0].mxu0
  %541 = vmatprep.mubr.bf16.mxu0 0
  %542 = vmatmul.mubr.bf16.gmra.mrb[0].mxu0 %v329
  %v543 = vpop.f32.mrb[0].mxu0
  %v544 = vadd.f32 %v96, %v543
  %v545 = vpop.f32.mrb[0].mxu0
  %v546 = vpop.f32.mrb[0].mxu0
  %v547 = vadd.f32 %v96, %v546
  %v548 = vpop.f32.mrb[0].mxu0
  %549 = vmatprep.mubr.bf16.mxu0 0
  %550 = vmatmul.mubr.bf16.gmra.mrb[0].mxu0 %v332
  %v551 = vpop.f32.mrb[0].mxu0
  %v552 = vadd.f32 %v96, %v551
  %v553 = vpop.f32.mrb[0].mxu0
  %v554 = vpop.f32.mrb[0].mxu0
  %v555 = vadd.f32 %v96, %v554
  %v556 = vpop.f32.mrb[0].mxu0
  %557 = vmatprep.mubr.bf16.mxu0 0
  %558 = vmatmul.mubr.bf16.gmra.mrb[0].mxu0 %v335
  %v559 = vpop.f32.mrb[0].mxu0
  %v560 = vadd.f32 %v96, %v559
  %v561 = vpop.f32.mrb[0].mxu0
  %v562 = vpop.f32.mrb[0].mxu0
  %v563 = vadd.f32 %v96, %v562
  %v564 = vpop.f32.mrb[0].mxu0
  %565 = vmatprep.mubr.bf16.mxu0 0
  %566 = vmatmul.mubr.bf16.gmra.mrb[0].mxu0 %v338
  %v567 = vpop.f32.mrb[0].mxu0
  %v568 = vadd.f32 %v96, %v567
  %v569 = vpop.f32.mrb[0].mxu0
  %v570 = vpop.f32.mrb[0].mxu0
  %v571 = vadd.f32 %v96, %v570
  %v572 = vpop.f32.mrb[0].mxu0
  %573 = vmatprep.mubr.bf16.mxu0 0
  %574 = vmatmul.mubr.bf16.gmra.mrb[0].mxu0 %v341
  %v575 = vpop.f32.mrb[0].mxu0
  %v576 = vadd.f32 %v96, %v575
  %v577 = vpop.f32.mrb[0].mxu0
  %v578 = vpop.f32.mrb[0].mxu0
  %v579 = vadd.f32 %v96, %v578
  %v580 = vpop.f32.mrb[0].mxu0
  %581 = vmatprep.mubr.bf16.mxu0 0
  %582 = vmatmul.mubr.bf16.gmra.mrb[0].mxu0 %v344
  %v583 = vpop.f32.mrb[0].mxu0
  %v584 = vadd.f32 %v96, %v583
  %v585 = vpop.f32.mrb[0].mxu0
  %v586 = vpop.f32.mrb[0].mxu0
  %v587 = vadd.f32 %v96, %v586
  %v588 = vpop.f32.mrb[0].mxu0
  %589 = vmatprep.mubr.bf16.mxu0 0
  %590 = vmatmul.mubr.bf16.gmra.mrb[0].mxu0 %v347
  %v591 = vpop.f32.mrb[0].mxu0
  %v592 = vadd.f32 %v96, %v591
  %v593 = vpop.f32.mrb[0].mxu0
  %v594 = vpop.f32.mrb[0].mxu0
  %v595 = vadd.f32 %v96, %v594
  %v596 = vpop.f32.mrb[0].mxu0
  %597 = vmatprep.mubr.bf16.mxu0 0
  %598 = vmatmul.mubr.bf16.gmra.mrb[0].mxu0 %v350
  %v599 = vpop.f32.mrb[0].mxu0
  %v600 = vadd.f32 %v96, %v599
  %v601 = vpop.f32.mrb[0].mxu0
  %v602 = vpop.f32.mrb[0].mxu0
  %v603 = vadd.f32 %v96, %v602
  %v604 = vpop.f32.mrb[0].mxu0
  %605 = vmatprep.mubr.bf16.mxu0 0
  %606 = vmatmul.mubr.bf16.gmra.mrb[0].mxu0 %v353
  %v607 = vpop.f32.mrb[0].mxu0
  %v608 = vadd.f32 %v96, %v607
  %v609 = vpop.f32.mrb[0].mxu0
  %v610 = vpop.f32.mrb[0].mxu0
  %v611 = vadd.f32 %v96, %v610
  %v612 = vpop.f32.mrb[0].mxu0
  %613 = vmatprep.mubr.bf16.mxu0 0
  %614 = vmatmul.mubr.bf16.gmra.mrb[0].mxu0 %v356
  %v615 = vpop.f32.mrb[0].mxu0
  %v616 = vadd.f32 %v96, %v615
  %v617 = vpop.f32.mrb[0].mxu0
  %v618 = vpop.f32.mrb[0].mxu0
  %v619 = vadd.f32 %v96, %v618
  %v620 = vpop.f32.mrb[0].mxu0
  %621 = vmatprep.mubr.bf16.mxu0 0
  %622 = vmatmul.mubr.bf16.gmra.mrb[0].mxu0 %v359
  %v623 = vpop.f32.mrb[0].mxu0
  %v624 = vadd.f32 %v96, %v623
  %v625 = vpop.f32.mrb[0].mxu0
  %v626 = vpop.f32.mrb[0].mxu0
  %v627 = vadd.f32 %v96, %v626
  %v628 = vpop.f32.mrb[0].mxu0
  %629 = vmatprep.mubr.bf16.mxu0 0
  %630 = vmatmul.mubr.bf16.gmra.mrb[0].mxu0 %v362
  %v631 = vpop.f32.mrb[0].mxu0
  %v632 = vadd.f32 %v96, %v631
  %v633 = vpop.f32.mrb[0].mxu0
  %v634 = vpop.f32.mrb[0].mxu0
  %v635 = vadd.f32 %v96, %v634
  %v636 = vpop.f32.mrb[0].mxu0
  %637 = vmatprep.mubr.bf16.mxu0 0
  %638 = vmatmul.mubr.bf16.gmra.mrb[0].mxu0 %v365
  %v639 = vpop.f32.mrb[0].mxu0
  %v640 = vadd.f32 %v96, %v639
  %v641 = vpop.f32.mrb[0].mxu0
  %v642 = vpop.f32.mrb[0].mxu0
  %v643 = vadd.f32 %v96, %v642
  %v644 = vpop.f32.mrb[0].mxu0
  %645 = vmatprep.mubr.bf16.mxu0 0
  %646 = vmatmul.mubr.bf16.gmra.mrb[0].mxu0 %v368
  %v647 = vpop.f32.mrb[0].mxu0
  %v648 = vadd.f32 %v96, %v647
  %v649 = vpop.f32.mrb[0].mxu0
  %v650 = vpop.f32.mrb[0].mxu0
  %v651 = vadd.f32 %v96, %v650
  %v652 = vpop.f32.mrb[0].mxu0
  %653 = vmatprep.mubr.bf16.mxu0 0
  %654 = vmatmul.mubr.bf16.gmra.mrb[0].mxu0 %v371
  %v655 = vpop.f32.mrb[0].mxu0
  %v656 = vadd.f32 %v96, %v655
  %v657 = vpop.f32.mrb[0].mxu0
  %v658 = vpop.f32.mrb[0].mxu0
  %v659 = vadd.f32 %v96, %v658
  %v660 = vpop.f32.mrb[0].mxu0
  %661 = vdwg.mxu0
  %vm662 = vcmask 130048
  %v663 = vsel %vm662, %v408, 0.0
  %664 = vadd.xlane.f32.xlu0 %v663
  %v665 = vpop.xlane.xlu0 %664
  %v666 = vsel %vm662, %v411, 0.0
  %667 = vadd.xlane.f32.xlu0 %v666
  %v668 = vpop.xlane.xlu0 %667
  %v669 = vsel %vm662, %v416, 0.0
  %670 = vadd.xlane.f32.xlu0 %v669
  %v671 = vpop.xlane.xlu0 %670
  %v672 = vsel %vm662, %v419, 0.0
  %673 = vadd.xlane.f32.xlu0 %v672
  %v674 = vpop.xlane.xlu0 %673
  %v675 = vsel %vm662, %v424, 0.0
  %676 = vadd.xlane.f32.xlu0 %v675
  %v677 = vpop.xlane.xlu0 %676
  %v678 = vsel %vm662, %v427, 0.0
  %679 = vadd.xlane.f32.xlu0 %v678
  %v680 = vpop.xlane.xlu0 %679
  %v681 = vsel %vm662, %v432, 0.0
  %682 = vadd.xlane.f32.xlu0 %v681
  %v683 = vpop.xlane.xlu0 %682
  %v684 = vsel %vm662, %v435, 0.0
  %685 = vadd.xlane.f32.xlu0 %v684
  %v686 = vpop.xlane.xlu0 %685
  %v687 = vsel %vm662, %v440, 0.0
  %688 = vadd.xlane.f32.xlu0 %v687
  %v689 = vpop.xlane.xlu0 %688
  %v690 = vsel %vm662, %v443, 0.0
  %691 = vadd.xlane.f32.xlu0 %v690
  %v692 = vpop.xlane.xlu0 %691
  %v693 = vsel %vm662, %v448, 0.0
  %694 = vadd.xlane.f32.xlu0 %v693
  %v695 = vpop.xlane.xlu0 %694
  %v696 = vsel %vm662, %v451, 0.0
  %697 = vadd.xlane.f32.xlu0 %v696
  %v698 = vpop.xlane.xlu0 %697
  %v699 = vsel %vm662, %v456, 0.0
  %700 = vadd.xlane.f32.xlu0 %v699
  %v701 = vpop.xlane.xlu0 %700
  %v702 = vsel %vm662, %v459, 0.0
  %703 = vadd.xlane.f32.xlu0 %v702
  %v704 = vpop.xlane.xlu0 %703
  %v705 = vsel %vm662, %v464, 0.0
  %706 = vadd.xlane.f32.xlu0 %v705
  %v707 = vpop.xlane.xlu0 %706
  %v708 = vsel %vm662, %v467, 0.0
  %709 = vadd.xlane.f32.xlu0 %v708
  %v710 = vpop.xlane.xlu0 %709
  %v711 = vsel %vm662, %v472, 0.0
  %712 = vadd.xlane.f32.xlu0 %v711
  %v713 = vpop.xlane.xlu0 %712
  %v714 = vsel %vm662, %v475, 0.0
  %715 = vadd.xlane.f32.xlu0 %v714
  %v716 = vpop.xlane.xlu0 %715
  %v717 = vsel %vm662, %v480, 0.0
  %718 = vadd.xlane.f32.xlu0 %v717
  %v719 = vpop.xlane.xlu0 %718
  %v720 = vsel %vm662, %v483, 0.0
  %721 = vadd.xlane.f32.xlu0 %v720
  %v722 = vpop.xlane.xlu0 %721
  %v723 = vsel %vm662, %v488, 0.0
  %724 = vadd.xlane.f32.xlu0 %v723
  %v725 = vpop.xlane.xlu0 %724
  %v726 = vsel %vm662, %v491, 0.0
  %727 = vadd.xlane.f32.xlu0 %v726
  %v728 = vpop.xlane.xlu0 %727
  %v729 = vsel %vm662, %v496, 0.0
  %730 = vadd.xlane.f32.xlu0 %v729
  %v731 = vpop.xlane.xlu0 %730
  %v732 = vsel %vm662, %v499, 0.0
  %733 = vadd.xlane.f32.xlu0 %v732
  %v734 = vpop.xlane.xlu0 %733
  %v735 = vsel %vm662, %v504, 0.0
  %736 = vadd.xlane.f32.xlu0 %v735
  %v737 = vpop.xlane.xlu0 %736
  %v738 = vsel %vm662, %v507, 0.0
  %739 = vadd.xlane.f32.xlu0 %v738
  %v740 = vpop.xlane.xlu0 %739
  %v741 = vsel %vm662, %v512, 0.0
  %742 = vadd.xlane.f32.xlu0 %v741
  %v743 = vpop.xlane.xlu0 %742
  %v744 = vsel %vm662, %v515, 0.0
  %745 = vadd.xlane.f32.xlu0 %v744
  %v746 = vpop.xlane.xlu0 %745
  %v747 = vsel %vm662, %v520, 0.0
  %748 = vadd.xlane.f32.xlu0 %v747
  %v749 = vpop.xlane.xlu0 %748
  %v750 = vsel %vm662, %v523, 0.0
  %751 = vadd.xlane.f32.xlu0 %v750
  %v752 = vpop.xlane.xlu0 %751
  %v753 = vsel %vm662, %v528, 0.0
  %754 = vadd.xlane.f32.xlu0 %v753
  %v755 = vpop.xlane.xlu0 %754
  %v756 = vsel %vm662, %v531, 0.0
  %757 = vadd.xlane.f32.xlu0 %v756
  %v758 = vpop.xlane.xlu0 %757
  %v759 = vsel %vm662, %v536, 0.0
  %760 = vadd.xlane.f32.xlu0 %v759
  %v761 = vpop.xlane.xlu0 %760
  %v762 = vsel %vm662, %v539, 0.0
  %763 = vadd.xlane.f32.xlu0 %v762
  %v764 = vpop.xlane.xlu0 %763
  %v765 = vsel %vm662, %v544, 0.0
  %766 = vadd.xlane.f32.xlu0 %v765
  %v767 = vpop.xlane.xlu0 %766
  %v768 = vsel %vm662, %v547, 0.0
  %769 = vadd.xlane.f32.xlu0 %v768
  %v770 = vpop.xlane.xlu0 %769
  %v771 = vsel %vm662, %v552, 0.0
  %772 = vadd.xlane.f32.xlu0 %v771
  %v773 = vpop.xlane.xlu0 %772
  %v774 = vsel %vm662, %v555, 0.0
  %775 = vadd.xlane.f32.xlu0 %v774
  %v776 = vpop.xlane.xlu0 %775
  %v777 = vsel %vm662, %v560, 0.0
  %778 = vadd.xlane.f32.xlu0 %v777
  %v779 = vpop.xlane.xlu0 %778
  %v780 = vsel %vm662, %v563, 0.0
  %781 = vadd.xlane.f32.xlu0 %v780
  %v782 = vpop.xlane.xlu0 %781
  %v783 = vsel %vm662, %v568, 0.0
  %784 = vadd.xlane.f32.xlu0 %v783
  %v785 = vpop.xlane.xlu0 %784
  %v786 = vsel %vm662, %v571, 0.0
  %787 = vadd.xlane.f32.xlu0 %v786
  %v788 = vpop.xlane.xlu0 %787
  %v789 = vsel %vm662, %v576, 0.0
  %790 = vadd.xlane.f32.xlu0 %v789
  %v791 = vpop.xlane.xlu0 %790
  %v792 = vsel %vm662, %v579, 0.0
  %793 = vadd.xlane.f32.xlu0 %v792
  %v794 = vpop.xlane.xlu0 %793
  %v795 = vsel %vm662, %v584, 0.0
  %796 = vadd.xlane.f32.xlu0 %v795
  %v797 = vpop.xlane.xlu0 %796
  %v798 = vsel %vm662, %v587, 0.0
  %799 = vadd.xlane.f32.xlu0 %v798
  %v800 = vpop.xlane.xlu0 %799
  %v801 = vsel %vm662, %v592, 0.0
  %802 = vadd.xlane.f32.xlu0 %v801
  %v803 = vpop.xlane.xlu0 %802
  %v804 = vsel %vm662, %v595, 0.0
  %805 = vadd.xlane.f32.xlu0 %v804
  %v806 = vpop.xlane.xlu0 %805
  %v807 = vsel %vm662, %v600, 0.0
  %808 = vadd.xlane.f32.xlu0 %v807
  %v809 = vpop.xlane.xlu0 %808
  %v810 = vsel %vm662, %v603, 0.0
  %811 = vadd.xlane.f32.xlu0 %v810
  %v812 = vpop.xlane.xlu0 %811
  %v813 = vsel %vm662, %v608, 0.0
  %814 = vadd.xlane.f32.xlu0 %v813
  %v815 = vpop.xlane.xlu0 %814
  %v816 = vsel %vm662, %v611, 0.0
  %817 = vadd.xlane.f32.xlu0 %v816
  %v818 = vpop.xlane.xlu0 %817
  %v819 = vsel %vm662, %v616, 0.0
  %820 = vadd.xlane.f32.xlu0 %v819
  %v821 = vpop.xlane.xlu0 %820
  %v822 = vsel %vm662, %v619, 0.0
  %823 = vadd.xlane.f32.xlu0 %v822
  %v824 = vpop.xlane.xlu0 %823
  %v825 = vsel %vm662, %v624, 0.0
  %826 = vadd.xlane.f32.xlu0 %v825
  %v827 = vpop.xlane.xlu0 %826
  %v828 = vsel %vm662, %v627, 0.0
  %829 = vadd.xlane.f32.xlu0 %v828
  %v830 = vpop.xlane.xlu0 %829
  %v831 = vsel %vm662, %v632, 0.0
  %832 = vadd.xlane.f32.xlu0 %v831
  %v833 = vpop.xlane.xlu0 %832
  %v834 = vsel %vm662, %v635, 0.0
  %835 = vadd.xlane.f32.xlu0 %v834
  %v836 = vpop.xlane.xlu0 %835
  %v837 = vsel %vm662, %v640, 0.0
  %838 = vadd.xlane.f32.xlu0 %v837
  %v839 = vpop.xlane.xlu0 %838
  %v840 = vsel %vm662, %v643, 0.0
  %841 = vadd.xlane.f32.xlu0 %v840
  %v842 = vpop.xlane.xlu0 %841
  %v843 = vsel %vm662, %v648, 0.0
  %844 = vadd.xlane.f32.xlu0 %v843
  %v845 = vpop.xlane.xlu0 %844
  %v846 = vsel %vm662, %v651, 0.0
  %847 = vadd.xlane.f32.xlu0 %v846
  %v848 = vpop.xlane.xlu0 %847
  %v849 = vsel %vm662, %v656, 0.0
  %850 = vadd.xlane.f32.xlu0 %v849
  %v851 = vpop.xlane.xlu0 %850
  %v852 = vsel %vm662, %v659, 0.0
  %853 = vadd.xlane.f32.xlu0 %v852
  %v854 = vpop.xlane.xlu0 %853
  %v855 = vrcp.pop 16.0
  %v856 = vmul.f32 %v665, %v855
  %v857 = vmul.f32 %v668, %v855
  %v858 = vmul.f32 %v671, %v855
  %v859 = vmul.f32 %v674, %v855
  %v860 = vmul.f32 %v677, %v855
  %v861 = vmul.f32 %v680, %v855
  %v862 = vmul.f32 %v683, %v855
  %v863 = vmul.f32 %v686, %v855
  %v864 = vmul.f32 %v689, %v855
  %v865 = vmul.f32 %v692, %v855
  %v866 = vmul.f32 %v695, %v855
  %v867 = vmul.f32 %v698, %v855
  %v868 = vmul.f32 %v701, %v855
  %v869 = vmul.f32 %v704, %v855
  %v870 = vmul.f32 %v707, %v855
  %v871 = vmul.f32 %v710, %v855
  %v872 = vmul.f32 %v713, %v855
  %v873 = vmul.f32 %v716, %v855
  %v874 = vmul.f32 %v719, %v855
  %v875 = vmul.f32 %v722, %v855
  %v876 = vmul.f32 %v725, %v855
  %v877 = vmul.f32 %v728, %v855
  %v878 = vmul.f32 %v731, %v855
  %v879 = vmul.f32 %v734, %v855
  %v880 = vmul.f32 %v737, %v855
  %v881 = vmul.f32 %v740, %v855
  %v882 = vmul.f32 %v743, %v855
  %v883 = vmul.f32 %v746, %v855
  %v884 = vmul.f32 %v749, %v855
  %v885 = vmul.f32 %v752, %v855
  %v886 = vmul.f32 %v755, %v855
  %v887 = vmul.f32 %v758, %v855
  %v888 = vmul.f32 %v761, %v855
  %v889 = vmul.f32 %v764, %v855
  %v890 = vmul.f32 %v767, %v855
  %v891 = vmul.f32 %v770, %v855
  %v892 = vmul.f32 %v773, %v855
  %v893 = vmul.f32 %v776, %v855
  %v894 = vmul.f32 %v779, %v855
  %v895 = vmul.f32 %v782, %v855
  %v896 = vmul.f32 %v785, %v855
  %v897 = vmul.f32 %v788, %v855
  %v898 = vmul.f32 %v791, %v855
  %v899 = vmul.f32 %v794, %v855
  %v900 = vmul.f32 %v797, %v855
  %v901 = vmul.f32 %v800, %v855
  %v902 = vmul.f32 %v803, %v855
  %v903 = vmul.f32 %v806, %v855
  %v904 = vmul.f32 %v809, %v855
  %v905 = vmul.f32 %v812, %v855
  %v906 = vmul.f32 %v815, %v855
  %v907 = vmul.f32 %v818, %v855
  %v908 = vmul.f32 %v821, %v855
  %v909 = vmul.f32 %v824, %v855
  %v910 = vmul.f32 %v827, %v855
  %v911 = vmul.f32 %v830, %v855
  %v912 = vmul.f32 %v833, %v855
  %v913 = vmul.f32 %v836, %v855
  %v914 = vmul.f32 %v839, %v855
  %v915 = vmul.f32 %v842, %v855
  %v916 = vmul.f32 %v845, %v855
  %v917 = vmul.f32 %v848, %v855
  %v918 = vmul.f32 %v851, %v855
  %v919 = vmul.f32 %v854, %v855
  %v920 = vsub.f32 %v408, %v856
  %v921 = vsub.f32 %v411, %v857
  %v922 = vsub.f32 %v416, %v858
  %v923 = vsub.f32 %v419, %v859
  %v924 = vsub.f32 %v424, %v860
  %v925 = vsub.f32 %v427, %v861
  %v926 = vsub.f32 %v432, %v862
  %v927 = vsub.f32 %v435, %v863
  %v928 = vsub.f32 %v440, %v864
  %v929 = vsub.f32 %v443, %v865
  %v930 = vsub.f32 %v448, %v866
  %v931 = vsub.f32 %v451, %v867
  %v932 = vsub.f32 %v456, %v868
  %v933 = vsub.f32 %v459, %v869
  %v934 = vsub.f32 %v464, %v870
  %v935 = vsub.f32 %v467, %v871
  %v936 = vsub.f32 %v472, %v872
  %v937 = vsub.f32 %v475, %v873
  %v938 = vsub.f32 %v480, %v874
  %v939 = vsub.f32 %v483, %v875
  %v940 = vsub.f32 %v488, %v876
  %v941 = vsub.f32 %v491, %v877
  %v942 = vsub.f32 %v496, %v878
  %v943 = vsub.f32 %v499, %v879
  %v944 = vsub.f32 %v504, %v880
  %v945 = vsub.f32 %v507, %v881
  %v946 = vsub.f32 %v512, %v882
  %v947 = vsub.f32 %v515, %v883
  %v948 = vsub.f32 %v520, %v884
  %v949 = vsub.f32 %v523, %v885
  %v950 = vsub.f32 %v528, %v886
  %v951 = vsub.f32 %v531, %v887
  %v952 = vsub.f32 %v536, %v888
  %v953 = vsub.f32 %v539, %v889
  %v954 = vsub.f32 %v544, %v890
  %v955 = vsub.f32 %v547, %v891
  %v956 = vsub.f32 %v552, %v892
  %v957 = vsub.f32 %v555, %v893
  %v958 = vsub.f32 %v560, %v894
  %v959 = vsub.f32 %v563, %v895
  %v960 = vsub.f32 %v568, %v896
  %v961 = vsub.f32 %v571, %v897
  %v962 = vsub.f32 %v576, %v898
  %v963 = vsub.f32 %v579, %v899
  %v964 = vsub.f32 %v584, %v900
  %v965 = vsub.f32 %v587, %v901
  %v966 = vsub.f32 %v592, %v902
  %v967 = vsub.f32 %v595, %v903
  %v968 = vsub.f32 %v600, %v904
  %v969 = vsub.f32 %v603, %v905
  %v970 = vsub.f32 %v608, %v906
  %v971 = vsub.f32 %v611, %v907
  %v972 = vsub.f32 %v616, %v908
  %v973 = vsub.f32 %v619, %v909
  %v974 = vsub.f32 %v624, %v910
  %v975 = vsub.f32 %v627, %v911
  %v976 = vsub.f32 %v632, %v912
  %v977 = vsub.f32 %v635, %v913
  %v978 = vsub.f32 %v640, %v914
  %v979 = vsub.f32 %v643, %v915
  %v980 = vsub.f32 %v648, %v916
  %v981 = vsub.f32 %v651, %v917
  %v982 = vsub.f32 %v656, %v918
  %v983 = vsub.f32 %v659, %v919
  %v984 = vmul.f32 %v920, %v920
  %v985 = vmul.f32 %v921, %v921
  %v986 = vmul.f32 %v922, %v922
  %v987 = vmul.f32 %v923, %v923
  %v988 = vmul.f32 %v924, %v924
  %v989 = vmul.f32 %v925, %v925
  %v990 = vmul.f32 %v926, %v926
  %v991 = vmul.f32 %v927, %v927
  %v992 = vmul.f32 %v928, %v928
  %v993 = vmul.f32 %v929, %v929
  %v994 = vmul.f32 %v930, %v930
  %v995 = vmul.f32 %v931, %v931
  %v996 = vmul.f32 %v932, %v932
  %v997 = vmul.f32 %v933, %v933
  %v998 = vmul.f32 %v934, %v934
  %v999 = vmul.f32 %v935, %v935
  %v1000 = vmul.f32 %v936, %v936
  %v1001 = vmul.f32 %v937, %v937
  %v1002 = vmul.f32 %v938, %v938
  %v1003 = vmul.f32 %v939, %v939
  %v1004 = vmul.f32 %v940, %v940
  %v1005 = vmul.f32 %v941, %v941
  %v1006 = vmul.f32 %v942, %v942
  %v1007 = vmul.f32 %v943, %v943
  %v1008 = vmul.f32 %v944, %v944
  %v1009 = vmul.f32 %v945, %v945
  %v1010 = vmul.f32 %v946, %v946
  %v1011 = vmul.f32 %v947, %v947
  %v1012 = vmul.f32 %v948, %v948
  %v1013 = vmul.f32 %v949, %v949
  %v1014 = vmul.f32 %v950, %v950
  %v1015 = vmul.f32 %v951, %v951
  %v1016 = vmul.f32 %v952, %v952
  %v1017 = vmul.f32 %v953, %v953
  %v1018 = vmul.f32 %v954, %v954
  %v1019 = vmul.f32 %v955, %v955
  %v1020 = vmul.f32 %v956, %v956
  %v1021 = vmul.f32 %v957, %v957
  %v1022 = vmul.f32 %v958, %v958
  %v1023 = vmul.f32 %v959, %v959
  %v1024 = vmul.f32 %v960, %v960
  %v1025 = vmul.f32 %v961, %v961
  %v1026 = vmul.f32 %v962, %v962
  %v1027 = vmul.f32 %v963, %v963
  %v1028 = vmul.f32 %v964, %v964
  %v1029 = vmul.f32 %v965, %v965
  %v1030 = vmul.f32 %v966, %v966
  %v1031 = vmul.f32 %v967, %v967
  %v1032 = vmul.f32 %v968, %v968
  %v1033 = vmul.f32 %v969, %v969
  %v1034 = vmul.f32 %v970, %v970
  %v1035 = vmul.f32 %v971, %v971
  %v1036 = vmul.f32 %v972, %v972
  %v1037 = vmul.f32 %v973, %v973
  %v1038 = vmul.f32 %v974, %v974
  %v1039 = vmul.f32 %v975, %v975
  %v1040 = vmul.f32 %v976, %v976
  %v1041 = vmul.f32 %v977, %v977
  %v1042 = vmul.f32 %v978, %v978
  %v1043 = vmul.f32 %v979, %v979
  %v1044 = vmul.f32 %v980, %v980
  %v1045 = vmul.f32 %v981, %v981
  %v1046 = vmul.f32 %v982, %v982
  %v1047 = vmul.f32 %v983, %v983
  %v1048 = vsel %vm662, %v984, 0.0
  %1049 = vadd.xlane.f32.xlu0 %v1048
  %v1050 = vpop.xlane.xlu0 %1049
  %v1051 = vsel %vm662, %v985, 0.0
  %1052 = vadd.xlane.f32.xlu0 %v1051
  %v1053 = vpop.xlane.xlu0 %1052
  %v1054 = vsel %vm662, %v986, 0.0
  %1055 = vadd.xlane.f32.xlu0 %v1054
  %v1056 = vpop.xlane.xlu0 %1055
  %v1057 = vsel %vm662, %v987, 0.0
  %1058 = vadd.xlane.f32.xlu0 %v1057
  %v1059 = vpop.xlane.xlu0 %1058
  %v1060 = vsel %vm662, %v988, 0.0
  %1061 = vadd.xlane.f32.xlu0 %v1060
  %v1062 = vpop.xlane.xlu0 %1061
  %v1063 = vsel %vm662, %v989, 0.0
  %1064 = vadd.xlane.f32.xlu0 %v1063
  %v1065 = vpop.xlane.xlu0 %1064
  %v1066 = vsel %vm662, %v990, 0.0
  %1067 = vadd.xlane.f32.xlu0 %v1066
  %v1068 = vpop.xlane.xlu0 %1067
  %v1069 = vsel %vm662, %v991, 0.0
  %1070 = vadd.xlane.f32.xlu0 %v1069
  %v1071 = vpop.xlane.xlu0 %1070
  %v1072 = vsel %vm662, %v992, 0.0
  %1073 = vadd.xlane.f32.xlu0 %v1072
  %v1074 = vpop.xlane.xlu0 %1073
  %v1075 = vsel %vm662, %v993, 0.0
  %1076 = vadd.xlane.f32.xlu0 %v1075
  %v1077 = vpop.xlane.xlu0 %1076
  %v1078 = vsel %vm662, %v994, 0.0
  %1079 = vadd.xlane.f32.xlu0 %v1078
  %v1080 = vpop.xlane.xlu0 %1079
  %v1081 = vsel %vm662, %v995, 0.0
  %1082 = vadd.xlane.f32.xlu0 %v1081
  %v1083 = vpop.xlane.xlu0 %1082
  %v1084 = vsel %vm662, %v996, 0.0
  %1085 = vadd.xlane.f32.xlu0 %v1084
  %v1086 = vpop.xlane.xlu0 %1085
  %v1087 = vsel %vm662, %v997, 0.0
  %1088 = vadd.xlane.f32.xlu0 %v1087
  %v1089 = vpop.xlane.xlu0 %1088
  %v1090 = vsel %vm662, %v998, 0.0
  %1091 = vadd.xlane.f32.xlu0 %v1090
  %v1092 = vpop.xlane.xlu0 %1091
  %v1093 = vsel %vm662, %v999, 0.0
  %1094 = vadd.xlane.f32.xlu0 %v1093
  %v1095 = vpop.xlane.xlu0 %1094
  %v1096 = vsel %vm662, %v1000, 0.0
  %1097 = vadd.xlane.f32.xlu0 %v1096
  %v1098 = vpop.xlane.xlu0 %1097
  %v1099 = vsel %vm662, %v1001, 0.0
  %1100 = vadd.xlane.f32.xlu0 %v1099
  %v1101 = vpop.xlane.xlu0 %1100
  %v1102 = vsel %vm662, %v1002, 0.0
  %1103 = vadd.xlane.f32.xlu0 %v1102
  %v1104 = vpop.xlane.xlu0 %1103
  %v1105 = vsel %vm662, %v1003, 0.0
  %1106 = vadd.xlane.f32.xlu0 %v1105
  %v1107 = vpop.xlane.xlu0 %1106
  %v1108 = vsel %vm662, %v1004, 0.0
  %1109 = vadd.xlane.f32.xlu0 %v1108
  %v1110 = vpop.xlane.xlu0 %1109
  %v1111 = vsel %vm662, %v1005, 0.0
  %1112 = vadd.xlane.f32.xlu0 %v1111
  %v1113 = vpop.xlane.xlu0 %1112
  %v1114 = vsel %vm662, %v1006, 0.0
  %1115 = vadd.xlane.f32.xlu0 %v1114
  %v1116 = vpop.xlane.xlu0 %1115
  %v1117 = vsel %vm662, %v1007, 0.0
  %1118 = vadd.xlane.f32.xlu0 %v1117
  %v1119 = vpop.xlane.xlu0 %1118
  %v1120 = vsel %vm662, %v1008, 0.0
  %1121 = vadd.xlane.f32.xlu0 %v1120
  %v1122 = vpop.xlane.xlu0 %1121
  %v1123 = vsel %vm662, %v1009, 0.0
  %1124 = vadd.xlane.f32.xlu0 %v1123
  %v1125 = vpop.xlane.xlu0 %1124
  %v1126 = vsel %vm662, %v1010, 0.0
  %1127 = vadd.xlane.f32.xlu0 %v1126
  %v1128 = vpop.xlane.xlu0 %1127
  %v1129 = vsel %vm662, %v1011, 0.0
  %1130 = vadd.xlane.f32.xlu0 %v1129
  %v1131 = vpop.xlane.xlu0 %1130
  %v1132 = vsel %vm662, %v1012, 0.0
  %1133 = vadd.xlane.f32.xlu0 %v1132
  %v1134 = vpop.xlane.xlu0 %1133
  %v1135 = vsel %vm662, %v1013, 0.0
  %1136 = vadd.xlane.f32.xlu0 %v1135
  %v1137 = vpop.xlane.xlu0 %1136
  %v1138 = vsel %vm662, %v1014, 0.0
  %1139 = vadd.xlane.f32.xlu0 %v1138
  %v1140 = vpop.xlane.xlu0 %1139
  %v1141 = vsel %vm662, %v1015, 0.0
  %1142 = vadd.xlane.f32.xlu0 %v1141
  %v1143 = vpop.xlane.xlu0 %1142
  %v1144 = vsel %vm662, %v1016, 0.0
  %1145 = vadd.xlane.f32.xlu0 %v1144
  %v1146 = vpop.xlane.xlu0 %1145
  %v1147 = vsel %vm662, %v1017, 0.0
  %1148 = vadd.xlane.f32.xlu0 %v1147
  %v1149 = vpop.xlane.xlu0 %1148
  %v1150 = vsel %vm662, %v1018, 0.0
  %1151 = vadd.xlane.f32.xlu0 %v1150
  %v1152 = vpop.xlane.xlu0 %1151
  %v1153 = vsel %vm662, %v1019, 0.0
  %1154 = vadd.xlane.f32.xlu0 %v1153
  %v1155 = vpop.xlane.xlu0 %1154
  %v1156 = vsel %vm662, %v1020, 0.0
  %1157 = vadd.xlane.f32.xlu0 %v1156
  %v1158 = vpop.xlane.xlu0 %1157
  %v1159 = vsel %vm662, %v1021, 0.0
  %1160 = vadd.xlane.f32.xlu0 %v1159
  %v1161 = vpop.xlane.xlu0 %1160
  %v1162 = vsel %vm662, %v1022, 0.0
  %1163 = vadd.xlane.f32.xlu0 %v1162
  %v1164 = vpop.xlane.xlu0 %1163
  %v1165 = vsel %vm662, %v1023, 0.0
  %1166 = vadd.xlane.f32.xlu0 %v1165
  %v1167 = vpop.xlane.xlu0 %1166
  %v1168 = vsel %vm662, %v1024, 0.0
  %1169 = vadd.xlane.f32.xlu0 %v1168
  %v1170 = vpop.xlane.xlu0 %1169
  %v1171 = vsel %vm662, %v1025, 0.0
  %1172 = vadd.xlane.f32.xlu0 %v1171
  %v1173 = vpop.xlane.xlu0 %1172
  %v1174 = vsel %vm662, %v1026, 0.0
  %1175 = vadd.xlane.f32.xlu0 %v1174
  %v1176 = vpop.xlane.xlu0 %1175
  %v1177 = vsel %vm662, %v1027, 0.0
  %1178 = vadd.xlane.f32.xlu0 %v1177
  %v1179 = vpop.xlane.xlu0 %1178
  %v1180 = vsel %vm662, %v1028, 0.0
  %1181 = vadd.xlane.f32.xlu0 %v1180
  %v1182 = vpop.xlane.xlu0 %1181
  %v1183 = vsel %vm662, %v1029, 0.0
  %1184 = vadd.xlane.f32.xlu0 %v1183
  %v1185 = vpop.xlane.xlu0 %1184
  %v1186 = vsel %vm662, %v1030, 0.0
  %1187 = vadd.xlane.f32.xlu0 %v1186
  %v1188 = vpop.xlane.xlu0 %1187
  %v1189 = vsel %vm662, %v1031, 0.0
  %1190 = vadd.xlane.f32.xlu0 %v1189
  %v1191 = vpop.xlane.xlu0 %1190
  %v1192 = vsel %vm662, %v1032, 0.0
  %1193 = vadd.xlane.f32.xlu0 %v1192
  %v1194 = vpop.xlane.xlu0 %1193
  %v1195 = vsel %vm662, %v1033, 0.0
  %1196 = vadd.xlane.f32.xlu0 %v1195
  %v1197 = vpop.xlane.xlu0 %1196
  %v1198 = vsel %vm662, %v1034, 0.0
  %1199 = vadd.xlane.f32.xlu0 %v1198
  %v1200 = vpop.xlane.xlu0 %1199
  %v1201 = vsel %vm662, %v1035, 0.0
  %1202 = vadd.xlane.f32.xlu0 %v1201
  %v1203 = vpop.xlane.xlu0 %1202
  %v1204 = vsel %vm662, %v1036, 0.0
  %1205 = vadd.xlane.f32.xlu0 %v1204
  %v1206 = vpop.xlane.xlu0 %1205
  %v1207 = vsel %vm662, %v1037, 0.0
  %1208 = vadd.xlane.f32.xlu0 %v1207
  %v1209 = vpop.xlane.xlu0 %1208
  %v1210 = vsel %vm662, %v1038, 0.0
  %1211 = vadd.xlane.f32.xlu0 %v1210
  %v1212 = vpop.xlane.xlu0 %1211
  %v1213 = vsel %vm662, %v1039, 0.0
  %1214 = vadd.xlane.f32.xlu0 %v1213
  %v1215 = vpop.xlane.xlu0 %1214
  %v1216 = vsel %vm662, %v1040, 0.0
  %1217 = vadd.xlane.f32.xlu0 %v1216
  %v1218 = vpop.xlane.xlu0 %1217
  %v1219 = vsel %vm662, %v1041, 0.0
  %1220 = vadd.xlane.f32.xlu0 %v1219
  %v1221 = vpop.xlane.xlu0 %1220
  %v1222 = vsel %vm662, %v1042, 0.0
  %1223 = vadd.xlane.f32.xlu0 %v1222
  %v1224 = vpop.xlane.xlu0 %1223
  %v1225 = vsel %vm662, %v1043, 0.0
  %1226 = vadd.xlane.f32.xlu0 %v1225
  %v1227 = vpop.xlane.xlu0 %1226
  %v1228 = vsel %vm662, %v1044, 0.0
  %1229 = vadd.xlane.f32.xlu0 %v1228
  %v1230 = vpop.xlane.xlu0 %1229
  %v1231 = vsel %vm662, %v1045, 0.0
  %1232 = vadd.xlane.f32.xlu0 %v1231
  %v1233 = vpop.xlane.xlu0 %1232
  %v1234 = vsel %vm662, %v1046, 0.0
  %1235 = vadd.xlane.f32.xlu0 %v1234
  %v1236 = vpop.xlane.xlu0 %1235
  %v1237 = vsel %vm662, %v1047, 0.0
  %1238 = vadd.xlane.f32.xlu0 %v1237
  %v1239 = vpop.xlane.xlu0 %1238
  %v1240 = vmul.f32 %v1050, %v855
  %v1241 = vmul.f32 %v1053, %v855
  %v1242 = vmul.f32 %v1056, %v855
  %v1243 = vmul.f32 %v1059, %v855
  %v1244 = vmul.f32 %v1062, %v855
  %v1245 = vmul.f32 %v1065, %v855
  %v1246 = vmul.f32 %v1068, %v855
  %v1247 = vmul.f32 %v1071, %v855
  %v1248 = vmul.f32 %v1074, %v855
  %v1249 = vmul.f32 %v1077, %v855
  %v1250 = vmul.f32 %v1080, %v855
  %v1251 = vmul.f32 %v1083, %v855
  %v1252 = vmul.f32 %v1086, %v855
  %v1253 = vmul.f32 %v1089, %v855
  %v1254 = vmul.f32 %v1092, %v855
  %v1255 = vmul.f32 %v1095, %v855
  %v1256 = vmul.f32 %v1098, %v855
  %v1257 = vmul.f32 %v1101, %v855
  %v1258 = vmul.f32 %v1104, %v855
  %v1259 = vmul.f32 %v1107, %v855
  %v1260 = vmul.f32 %v1110, %v855
  %v1261 = vmul.f32 %v1113, %v855
  %v1262 = vmul.f32 %v1116, %v855
  %v1263 = vmul.f32 %v1119, %v855
  %v1264 = vmul.f32 %v1122, %v855
  %v1265 = vmul.f32 %v1125, %v855
  %v1266 = vmul.f32 %v1128, %v855
  %v1267 = vmul.f32 %v1131, %v855
  %v1268 = vmul.f32 %v1134, %v855
  %v1269 = vmul.f32 %v1137, %v855
  %v1270 = vmul.f32 %v1140, %v855
  %v1271 = vmul.f32 %v1143, %v855
  %v1272 = vmul.f32 %v1146, %v855
  %v1273 = vmul.f32 %v1149, %v855
  %v1274 = vmul.f32 %v1152, %v855
  %v1275 = vmul.f32 %v1155, %v855
  %v1276 = vmul.f32 %v1158, %v855
  %v1277 = vmul.f32 %v1161, %v855
  %v1278 = vmul.f32 %v1164, %v855
  %v1279 = vmul.f32 %v1167, %v855
  %v1280 = vmul.f32 %v1170, %v855
  %v1281 = vmul.f32 %v1173, %v855
  %v1282 = vmul.f32 %v1176, %v855
  %v1283 = vmul.f32 %v1179, %v855
  %v1284 = vmul.f32 %v1182, %v855
  %v1285 = vmul.f32 %v1185, %v855
  %v1286 = vmul.f32 %v1188, %v855
  %v1287 = vmul.f32 %v1191, %v855
  %v1288 = vmul.f32 %v1194, %v855
  %v1289 = vmul.f32 %v1197, %v855
  %v1290 = vmul.f32 %v1200, %v855
  %v1291 = vmul.f32 %v1203, %v855
  %v1292 = vmul.f32 %v1206, %v855
  %v1293 = vmul.f32 %v1209, %v855
  %v1294 = vmul.f32 %v1212, %v855
  %v1295 = vmul.f32 %v1215, %v855
  %v1296 = vmul.f32 %v1218, %v855
  %v1297 = vmul.f32 %v1221, %v855
  %v1298 = vmul.f32 %v1224, %v855
  %v1299 = vmul.f32 %v1227, %v855
  %v1300 = vmul.f32 %v1230, %v855
  %v1301 = vmul.f32 %v1233, %v855
  %v1302 = vmul.f32 %v1236, %v855
  %v1303 = vmul.f32 %v1239, %v855
  %v1304 = vadd.f32 %v1240, 1e-05
  %v1305 = vadd.f32 %v1241, 1e-05
  %v1306 = vadd.f32 %v1242, 1e-05
  %v1307 = vadd.f32 %v1243, 1e-05
  %v1308 = vadd.f32 %v1244, 1e-05
  %v1309 = vadd.f32 %v1245, 1e-05
  %v1310 = vadd.f32 %v1246, 1e-05
  %v1311 = vadd.f32 %v1247, 1e-05
  %v1312 = vadd.f32 %v1248, 1e-05
  %v1313 = vadd.f32 %v1249, 1e-05
  %v1314 = vadd.f32 %v1250, 1e-05
  %v1315 = vadd.f32 %v1251, 1e-05
  %v1316 = vadd.f32 %v1252, 1e-05
  %v1317 = vadd.f32 %v1253, 1e-05
  %v1318 = vadd.f32 %v1254, 1e-05
  %v1319 = vadd.f32 %v1255, 1e-05
  %v1320 = vadd.f32 %v1256, 1e-05
  %v1321 = vadd.f32 %v1257, 1e-05
  %v1322 = vadd.f32 %v1258, 1e-05
  %v1323 = vadd.f32 %v1259, 1e-05
  %v1324 = vadd.f32 %v1260, 1e-05
  %v1325 = vadd.f32 %v1261, 1e-05
  %v1326 = vadd.f32 %v1262, 1e-05
  %v1327 = vadd.f32 %v1263, 1e-05
  %v1328 = vadd.f32 %v1264, 1e-05
  %v1329 = vadd.f32 %v1265, 1e-05
  %v1330 = vadd.f32 %v1266, 1e-05
  %v1331 = vadd.f32 %v1267, 1e-05
  %v1332 = vadd.f32 %v1268, 1e-05
  %v1333 = vadd.f32 %v1269, 1e-05
  %v1334 = vadd.f32 %v1270, 1e-05
  %v1335 = vadd.f32 %v1271, 1e-05
  %v1336 = vadd.f32 %v1272, 1e-05
  %v1337 = vadd.f32 %v1273, 1e-05
  %v1338 = vadd.f32 %v1274, 1e-05
  %v1339 = vadd.f32 %v1275, 1e-05
  %v1340 = vadd.f32 %v1276, 1e-05
  %v1341 = vadd.f32 %v1277, 1e-05
  %v1342 = vadd.f32 %v1278, 1e-05
  %v1343 = vadd.f32 %v1279, 1e-05
  %v1344 = vadd.f32 %v1280, 1e-05
  %v1345 = vadd.f32 %v1281, 1e-05
  %v1346 = vadd.f32 %v1282, 1e-05
  %v1347 = vadd.f32 %v1283, 1e-05
  %v1348 = vadd.f32 %v1284, 1e-05
  %v1349 = vadd.f32 %v1285, 1e-05
  %v1350 = vadd.f32 %v1286, 1e-05
  %v1351 = vadd.f32 %v1287, 1e-05
  %v1352 = vadd.f32 %v1288, 1e-05
  %v1353 = vadd.f32 %v1289, 1e-05
  %v1354 = vadd.f32 %v1290, 1e-05
  %v1355 = vadd.f32 %v1291, 1e-05
  %v1356 = vadd.f32 %v1292, 1e-05
  %v1357 = vadd.f32 %v1293, 1e-05
  %v1358 = vadd.f32 %v1294, 1e-05
  %v1359 = vadd.f32 %v1295, 1e-05
  %v1360 = vadd.f32 %v1296, 1e-05
  %v1361 = vadd.f32 %v1297, 1e-05
  %v1362 = vadd.f32 %v1298, 1e-05
  %v1363 = vadd.f32 %v1299, 1e-05
  %v1364 = vadd.f32 %v1300, 1e-05
  %v1365 = vadd.f32 %v1301, 1e-05
  %v1366 = vadd.f32 %v1302, 1e-05
  %v1367 = vadd.f32 %v1303, 1e-05
  %v1368 = vrsqrt.pop %v1304
  %v1369 = vrsqrt.pop %v1305
  %v1370 = vrsqrt.pop %v1306
  %v1371 = vrsqrt.pop %v1307
  %v1372 = vrsqrt.pop %v1308
  %v1373 = vrsqrt.pop %v1309
  %v1374 = vrsqrt.pop %v1310
  %v1375 = vrsqrt.pop %v1311
  %v1376 = vrsqrt.pop %v1312
  %v1377 = vrsqrt.pop %v1313
  %v1378 = vrsqrt.pop %v1314
  %v1379 = vrsqrt.pop %v1315
  %v1380 = vrsqrt.pop %v1316
  %v1381 = vrsqrt.pop %v1317
  %v1382 = vrsqrt.pop %v1318
  %v1383 = vrsqrt.pop %v1319
  %v1384 = vrsqrt.pop %v1320
  %v1385 = vrsqrt.pop %v1321
  %v1386 = vrsqrt.pop %v1322
  %v1387 = vrsqrt.pop %v1323
  %v1388 = vrsqrt.pop %v1324
  %v1389 = vrsqrt.pop %v1325
  %v1390 = vrsqrt.pop %v1326
  %v1391 = vrsqrt.pop %v1327
  %v1392 = vrsqrt.pop %v1328
  %v1393 = vrsqrt.pop %v1329
  %v1394 = vrsqrt.pop %v1330
  %v1395 = vrsqrt.pop %v1331
  %v1396 = vrsqrt.pop %v1332
  %v1397 = vrsqrt.pop %v1333
  %v1398 = vrsqrt.pop %v1334
  %v1399 = vrsqrt.pop %v1335
  %v1400 = vrsqrt.pop %v1336
  %v1401 = vrsqrt.pop %v1337
  %v1402 = vrsqrt.pop %v1338
  %v1403 = vrsqrt.pop %v1339
  %v1404 = vrsqrt.pop %v1340
  %v1405 = vrsqrt.pop %v1341
  %v1406 = vrsqrt.pop %v1342
  %v1407 = vrsqrt.pop %v1343
  %v1408 = vrsqrt.pop %v1344
  %v1409 = vrsqrt.pop %v1345
  %v1410 = vrsqrt.pop %v1346
  %v1411 = vrsqrt.pop %v1347
  %v1412 = vrsqrt.pop %v1348
  %v1413 = vrsqrt.pop %v1349
  %v1414 = vrsqrt.pop %v1350
  %v1415 = vrsqrt.pop %v1351
  %v1416 = vrsqrt.pop %v1352
  %v1417 = vrsqrt.pop %v1353
  %v1418 = vrsqrt.pop %v1354
  %v1419 = vrsqrt.pop %v1355
  %v1420 = vrsqrt.pop %v1356
  %v1421 = vrsqrt.pop %v1357
  %v1422 = vrsqrt.pop %v1358
  %v1423 = vrsqrt.pop %v1359
  %v1424 = vrsqrt.pop %v1360
  %v1425 = vrsqrt.pop %v1361
  %v1426 = vrsqrt.pop %v1362
  %v1427 = vrsqrt.pop %v1363
  %v1428 = vrsqrt.pop %v1364
  %v1429 = vrsqrt.pop %v1365
  %v1430 = vrsqrt.pop %v1366
  %v1431 = vrsqrt.pop %v1367
  %v1432 = vmul.f32 %v920, %v1368
  %v1433 = vmul.f32 %v921, %v1369
  %v1434 = vmul.f32 %v922, %v1370
  %v1435 = vmul.f32 %v923, %v1371
  %v1436 = vmul.f32 %v924, %v1372
  %v1437 = vmul.f32 %v925, %v1373
  %v1438 = vmul.f32 %v926, %v1374
  %v1439 = vmul.f32 %v927, %v1375
  %v1440 = vmul.f32 %v928, %v1376
  %v1441 = vmul.f32 %v929, %v1377
  %v1442 = vmul.f32 %v930, %v1378
  %v1443 = vmul.f32 %v931, %v1379
  %v1444 = vmul.f32 %v932, %v1380
  %v1445 = vmul.f32 %v933, %v1381
  %v1446 = vmul.f32 %v934, %v1382
  %v1447 = vmul.f32 %v935, %v1383
  %v1448 = vmul.f32 %v936, %v1384
  %v1449 = vmul.f32 %v937, %v1385
  %v1450 = vmul.f32 %v938, %v1386
  %v1451 = vmul.f32 %v939, %v1387
  %v1452 = vmul.f32 %v940, %v1388
  %v1453 = vmul.f32 %v941, %v1389
  %v1454 = vmul.f32 %v942, %v1390
  %v1455 = vmul.f32 %v943, %v1391
  %v1456 = vmul.f32 %v944, %v1392
  %v1457 = vmul.f32 %v945, %v1393
  %v1458 = vmul.f32 %v946, %v1394
  %v1459 = vmul.f32 %v947, %v1395
  %v1460 = vmul.f32 %v948, %v1396
  %v1461 = vmul.f32 %v949, %v1397
  %v1462 = vmul.f32 %v950, %v1398
  %v1463 = vmul.f32 %v951, %v1399
  %v1464 = vmul.f32 %v952, %v1400
  %v1465 = vmul.f32 %v953, %v1401
  %v1466 = vmul.f32 %v954, %v1402
  %v1467 = vmul.f32 %v955, %v1403
  %v1468 = vmul.f32 %v956, %v1404
  %v1469 = vmul.f32 %v957, %v1405
  %v1470 = vmul.f32 %v958, %v1406
  %v1471 = vmul.f32 %v959, %v1407
  %v1472 = vmul.f32 %v960, %v1408
  %v1473 = vmul.f32 %v961, %v1409
  %v1474 = vmul.f32 %v962, %v1410
  %v1475 = vmul.f32 %v963, %v1411
  %v1476 = vmul.f32 %v964, %v1412
  %v1477 = vmul.f32 %v965, %v1413
  %v1478 = vmul.f32 %v966, %v1414
  %v1479 = vmul.f32 %v967, %v1415
  %v1480 = vmul.f32 %v968, %v1416
  %v1481 = vmul.f32 %v969, %v1417
  %v1482 = vmul.f32 %v970, %v1418
  %v1483 = vmul.f32 %v971, %v1419
  %v1484 = vmul.f32 %v972, %v1420
  %v1485 = vmul.f32 %v973, %v1421
  %v1486 = vmul.f32 %v974, %v1422
  %v1487 = vmul.f32 %v975, %v1423
  %v1488 = vmul.f32 %v976, %v1424
  %v1489 = vmul.f32 %v977, %v1425
  %v1490 = vmul.f32 %v978, %v1426
  %v1491 = vmul.f32 %v979, %v1427
  %v1492 = vmul.f32 %v980, %v1428
  %v1493 = vmul.f32 %v981, %v1429
  %v1494 = vmul.f32 %v982, %v1430
  %v1495 = vmul.f32 %v983, %v1431
  %v1496 = vld [vmem:[%s3] sm:$0x1]
  %v1498 = vlaneseq
  %v1499 = vshrl.u32 %v1498, 7
  %v1500 = vsub.s32 0, %v1499
  %v1501 = vrot.slane %v1496, %v1500
  %v1503 = vmul.f32 %v1432, %v1501
  %v1504 = vmul.f32 %v1433, %v1501
  %v1505 = vmul.f32 %v1434, %v1501
  %v1506 = vmul.f32 %v1435, %v1501
  %v1507 = vmul.f32 %v1436, %v1501
  %v1508 = vmul.f32 %v1437, %v1501
  %v1509 = vmul.f32 %v1438, %v1501
  %v1510 = vmul.f32 %v1439, %v1501
  %v1511 = vmul.f32 %v1440, %v1501
  %v1512 = vmul.f32 %v1441, %v1501
  %v1513 = vmul.f32 %v1442, %v1501
  %v1514 = vmul.f32 %v1443, %v1501
  %v1515 = vmul.f32 %v1444, %v1501
  %v1516 = vmul.f32 %v1445, %v1501
  %v1517 = vmul.f32 %v1446, %v1501
  %v1518 = vmul.f32 %v1447, %v1501
  %v1519 = vmul.f32 %v1448, %v1501
  %v1520 = vmul.f32 %v1449, %v1501
  %v1521 = vmul.f32 %v1450, %v1501
  %v1522 = vmul.f32 %v1451, %v1501
  %v1523 = vmul.f32 %v1452, %v1501
  %v1524 = vmul.f32 %v1453, %v1501
  %v1525 = vmul.f32 %v1454, %v1501
  %v1526 = vmul.f32 %v1455, %v1501
  %v1527 = vmul.f32 %v1456, %v1501
  %v1528 = vmul.f32 %v1457, %v1501
  %v1529 = vmul.f32 %v1458, %v1501
  %v1530 = vmul.f32 %v1459, %v1501
  %v1531 = vmul.f32 %v1460, %v1501
  %v1532 = vmul.f32 %v1461, %v1501
  %v1533 = vmul.f32 %v1462, %v1501
  %v1534 = vmul.f32 %v1463, %v1501
  %v1535 = vmul.f32 %v1464, %v1501
  %v1536 = vmul.f32 %v1465, %v1501
  %v1537 = vmul.f32 %v1466, %v1501
  %v1538 = vmul.f32 %v1467, %v1501
  %v1539 = vmul.f32 %v1468, %v1501
  %v1540 = vmul.f32 %v1469, %v1501
  %v1541 = vmul.f32 %v1470, %v1501
  %v1542 = vmul.f32 %v1471, %v1501
  %v1543 = vmul.f32 %v1472, %v1501
  %v1544 = vmul.f32 %v1473, %v1501
  %v1545 = vmul.f32 %v1474, %v1501
  %v1546 = vmul.f32 %v1475, %v1501
  %v1547 = vmul.f32 %v1476, %v1501
  %v1548 = vmul.f32 %v1477, %v1501
  %v1549 = vmul.f32 %v1478, %v1501
  %v1550 = vmul.f32 %v1479, %v1501
  %v1551 = vmul.f32 %v1480, %v1501
  %v1552 = vmul.f32 %v1481, %v1501
  %v1553 = vmul.f32 %v1482, %v1501
  %v1554 = vmul.f32 %v1483, %v1501
  %v1555 = vmul.f32 %v1484, %v1501
  %v1556 = vmul.f32 %v1485, %v1501
  %v1557 = vmul.f32 %v1486, %v1501
  %v1558 = vmul.f32 %v1487, %v1501
  %v1559 = vmul.f32 %v1488, %v1501
  %v1560 = vmul.f32 %v1489, %v1501
  %v1561 = vmul.f32 %v1490, %v1501
  %v1562 = vmul.f32 %v1491, %v1501
  %v1563 = vmul.f32 %v1492, %v1501
  %v1564 = vmul.f32 %v1493, %v1501
  %v1565 = vmul.f32 %v1494, %v1501
  %v1566 = vmul.f32 %v1495, %v1501
  %v1567 = vld [vmem:[%s4] sm:$0x1]
  %v1569 = vlaneseq
  %v1570 = vshrl.u32 %v1569, 7
  %v1571 = vsub.s32 0, %v1570
  %v1572 = vrot.slane %v1567, %v1571
  %v1574 = vadd.f32 %v1503, %v1572
  %v1575 = vadd.f32 %v1504, %v1572
  %v1576 = vadd.f32 %v1505, %v1572
  %v1577 = vadd.f32 %v1506, %v1572
  %v1578 = vadd.f32 %v1507, %v1572
  %v1579 = vadd.f32 %v1508, %v1572
  %v1580 = vadd.f32 %v1509, %v1572
  %v1581 = vadd.f32 %v1510, %v1572
  %v1582 = vadd.f32 %v1511, %v1572
  %v1583 = vadd.f32 %v1512, %v1572
  %v1584 = vadd.f32 %v1513, %v1572
  %v1585 = vadd.f32 %v1514, %v1572
  %v1586 = vadd.f32 %v1515, %v1572
  %v1587 = vadd.f32 %v1516, %v1572
  %v1588 = vadd.f32 %v1517, %v1572
  %v1589 = vadd.f32 %v1518, %v1572
  %v1590 = vadd.f32 %v1519, %v1572
  %v1591 = vadd.f32 %v1520, %v1572
  %v1592 = vadd.f32 %v1521, %v1572
  %v1593 = vadd.f32 %v1522, %v1572
  %v1594 = vadd.f32 %v1523, %v1572
  %v1595 = vadd.f32 %v1524, %v1572
  %v1596 = vadd.f32 %v1525, %v1572
  %v1597 = vadd.f32 %v1526, %v1572
  %v1598 = vadd.f32 %v1527, %v1572
  %v1599 = vadd.f32 %v1528, %v1572
  %v1600 = vadd.f32 %v1529, %v1572
  %v1601 = vadd.f32 %v1530, %v1572
  %v1602 = vadd.f32 %v1531, %v1572
  %v1603 = vadd.f32 %v1532, %v1572
  %v1604 = vadd.f32 %v1533, %v1572
  %v1605 = vadd.f32 %v1534, %v1572
  %v1606 = vadd.f32 %v1535, %v1572
  %v1607 = vadd.f32 %v1536, %v1572
  %v1608 = vadd.f32 %v1537, %v1572
  %v1609 = vadd.f32 %v1538, %v1572
  %v1610 = vadd.f32 %v1539, %v1572
  %v1611 = vadd.f32 %v1540, %v1572
  %v1612 = vadd.f32 %v1541, %v1572
  %v1613 = vadd.f32 %v1542, %v1572
  %v1614 = vadd.f32 %v1543, %v1572
  %v1615 = vadd.f32 %v1544, %v1572
  %v1616 = vadd.f32 %v1545, %v1572
  %v1617 = vadd.f32 %v1546, %v1572
  %v1618 = vadd.f32 %v1547, %v1572
  %v1619 = vadd.f32 %v1548, %v1572
  %v1620 = vadd.f32 %v1549, %v1572
  %v1621 = vadd.f32 %v1550, %v1572
  %v1622 = vadd.f32 %v1551, %v1572
  %v1623 = vadd.f32 %v1552, %v1572
  %v1624 = vadd.f32 %v1553, %v1572
  %v1625 = vadd.f32 %v1554, %v1572
  %v1626 = vadd.f32 %v1555, %v1572
  %v1627 = vadd.f32 %v1556, %v1572
  %v1628 = vadd.f32 %v1557, %v1572
  %v1629 = vadd.f32 %v1558, %v1572
  %v1630 = vadd.f32 %v1559, %v1572
  %v1631 = vadd.f32 %v1560, %v1572
  %v1632 = vadd.f32 %v1561, %v1572
  %v1633 = vadd.f32 %v1562, %v1572
  %v1634 = vadd.f32 %v1563, %v1572
  %v1635 = vadd.f32 %v1564, %v1572
  %v1636 = vadd.f32 %v1565, %v1572
  %v1637 = vadd.f32 %v1566, %v1572
  %v1638 = vpack.c.bf16 %v1575, %v1574
  %v1639 = vpack.c.bf16 %v1577, %v1576
  %v1640 = vpack.c.bf16 %v1579, %v1578
  %v1641 = vpack.c.bf16 %v1581, %v1580
  %v1642 = vpack.c.bf16 %v1583, %v1582
  %v1643 = vpack.c.bf16 %v1585, %v1584
  %v1644 = vpack.c.bf16 %v1587, %v1586
  %v1645 = vpack.c.bf16 %v1589, %v1588
  %v1646 = vpack.c.bf16 %v1591, %v1590
  %v1647 = vpack.c.bf16 %v1593, %v1592
  %v1648 = vpack.c.bf16 %v1595, %v1594
  %v1649 = vpack.c.bf16 %v1597, %v1596
  %v1650 = vpack.c.bf16 %v1599, %v1598
  %v1651 = vpack.c.bf16 %v1601, %v1600
  %v1652 = vpack.c.bf16 %v1603, %v1602
  %v1653 = vpack.c.bf16 %v1605, %v1604
  %v1654 = vpack.c.bf16 %v1607, %v1606
  %v1655 = vpack.c.bf16 %v1609, %v1608
  %v1656 = vpack.c.bf16 %v1611, %v1610
  %v1657 = vpack.c.bf16 %v1613, %v1612
  %v1658 = vpack.c.bf16 %v1615, %v1614
  %v1659 = vpack.c.bf16 %v1617, %v1616
  %v1660 = vpack.c.bf16 %v1619, %v1618
  %v1661 = vpack.c.bf16 %v1621, %v1620
  %v1662 = vpack.c.bf16 %v1623, %v1622
  %v1663 = vpack.c.bf16 %v1625, %v1624
  %v1664 = vpack.c.bf16 %v1627, %v1626
  %v1665 = vpack.c.bf16 %v1629, %v1628
  %v1666 = vpack.c.bf16 %v1631, %v1630
  %v1667 = vpack.c.bf16 %v1633, %v1632
  %v1668 = vpack.c.bf16 %v1635, %v1634
  %v1669 = vpack.c.bf16 %v1637, %v1636
  %v1702 = vunpack.c.l.b16 %v1638
  %v1703 = vunpack.c.h.b16 %v1638
  %v1704 = vunpack.c.l.b16 %v1639
  %v1705 = vunpack.c.h.b16 %v1639
  %v1706 = vunpack.c.l.b16 %v1640
  %v1707 = vunpack.c.h.b16 %v1640
  %v1708 = vunpack.c.l.b16 %v1641
  %v1709 = vunpack.c.h.b16 %v1641
  %v1710 = vunpack.c.l.b16 %v1642
  %v1711 = vunpack.c.h.b16 %v1642
  %v1712 = vunpack.c.l.b16 %v1643
  %v1713 = vunpack.c.h.b16 %v1643
  %v1714 = vunpack.c.l.b16 %v1644
  %v1715 = vunpack.c.h.b16 %v1644
  %v1716 = vunpack.c.l.b16 %v1645
  %v1717 = vunpack.c.h.b16 %v1645
  %v1718 = vunpack.c.l.b16 %v1646
  %v1719 = vunpack.c.h.b16 %v1646
  %v1720 = vunpack.c.l.b16 %v1647
  %v1721 = vunpack.c.h.b16 %v1647
  %v1722 = vunpack.c.l.b16 %v1648
  %v1723 = vunpack.c.h.b16 %v1648
  %v1724 = vunpack.c.l.b16 %v1649
  %v1725 = vunpack.c.h.b16 %v1649
  %v1726 = vunpack.c.l.b16 %v1650
  %v1727 = vunpack.c.h.b16 %v1650
  %v1728 = vunpack.c.l.b16 %v1651
  %v1729 = vunpack.c.h.b16 %v1651
  %v1730 = vunpack.c.l.b16 %v1652
  %v1731 = vunpack.c.h.b16 %v1652
  %v1732 = vunpack.c.l.b16 %v1653
  %v1733 = vunpack.c.h.b16 %v1653
  %v1734 = vunpack.c.l.b16 %v1654
  %v1735 = vunpack.c.h.b16 %v1654
  %v1736 = vunpack.c.l.b16 %v1655
  %v1737 = vunpack.c.h.b16 %v1655
  %v1738 = vunpack.c.l.b16 %v1656
  %v1739 = vunpack.c.h.b16 %v1656
  %v1740 = vunpack.c.l.b16 %v1657
  %v1741 = vunpack.c.h.b16 %v1657
  %v1742 = vunpack.c.l.b16 %v1658
  %v1743 = vunpack.c.h.b16 %v1658
  %v1744 = vunpack.c.l.b16 %v1659
  %v1745 = vunpack.c.h.b16 %v1659
  %v1746 = vunpack.c.l.b16 %v1660
  %v1747 = vunpack.c.h.b16 %v1660
  %v1748 = vunpack.c.l.b16 %v1661
  %v1749 = vunpack.c.h.b16 %v1661
  %v1750 = vunpack.c.l.b16 %v1662
  %v1751 = vunpack.c.h.b16 %v1662
  %v1752 = vunpack.c.l.b16 %v1663
  %v1753 = vunpack.c.h.b16 %v1663
  %v1754 = vunpack.c.l.b16 %v1664
  %v1755 = vunpack.c.h.b16 %v1664
  %v1756 = vunpack.c.l.b16 %v1665
  %v1757 = vunpack.c.h.b16 %v1665
  %v1758 = vunpack.c.l.b16 %v1666
  %v1759 = vunpack.c.h.b16 %v1666
  %v1760 = vunpack.c.l.b16 %v1667
  %v1761 = vunpack.c.h.b16 %v1667
  %v1762 = vunpack.c.l.b16 %v1668
  %v1763 = vunpack.c.h.b16 %v1668
  %v1764 = vunpack.c.l.b16 %v1669
  %v1765 = vunpack.c.h.b16 %v1669
  %v1766 = vpack.c.b16 %v1702, %v1702
  %v1767 = vpack.c.b16 %v1703, %v1703
  %v1768 = vpack.c.b16 %v1704, %v1704
  %v1769 = vpack.c.b16 %v1705, %v1705
  %v1770 = vpack.c.b16 %v1706, %v1706
  %v1771 = vpack.c.b16 %v1707, %v1707
  %v1772 = vpack.c.b16 %v1708, %v1708
  %v1773 = vpack.c.b16 %v1709, %v1709
  %v1774 = vpack.c.b16 %v1710, %v1710
  %v1775 = vpack.c.b16 %v1711, %v1711
  %v1776 = vpack.c.b16 %v1712, %v1712
  %v1777 = vpack.c.b16 %v1713, %v1713
  %v1778 = vpack.c.b16 %v1714, %v1714
  %v1779 = vpack.c.b16 %v1715, %v1715
  %v1780 = vpack.c.b16 %v1716, %v1716
  %v1781 = vpack.c.b16 %v1717, %v1717
  %v1782 = vpack.c.b16 %v1718, %v1718
  %v1783 = vpack.c.b16 %v1719, %v1719
  %v1784 = vpack.c.b16 %v1720, %v1720
  %v1785 = vpack.c.b16 %v1721, %v1721
  %v1786 = vpack.c.b16 %v1722, %v1722
  %v1787 = vpack.c.b16 %v1723, %v1723
  %v1788 = vpack.c.b16 %v1724, %v1724
  %v1789 = vpack.c.b16 %v1725, %v1725
  %v1790 = vpack.c.b16 %v1726, %v1726
  %v1791 = vpack.c.b16 %v1727, %v1727
  %v1792 = vpack.c.b16 %v1728, %v1728
  %v1793 = vpack.c.b16 %v1729, %v1729
  %v1794 = vpack.c.b16 %v1730, %v1730
  %v1795 = vpack.c.b16 %v1731, %v1731
  %v1796 = vpack.c.b16 %v1732, %v1732
  %v1797 = vpack.c.b16 %v1733, %v1733
  %v1798 = vpack.c.b16 %v1734, %v1734
  %v1799 = vpack.c.b16 %v1735, %v1735
  %v1800 = vpack.c.b16 %v1736, %v1736
  %v1801 = vpack.c.b16 %v1737, %v1737
  %v1802 = vpack.c.b16 %v1738, %v1738
  %v1803 = vpack.c.b16 %v1739, %v1739
  %v1804 = vpack.c.b16 %v1740, %v1740
  %v1805 = vpack.c.b16 %v1741, %v1741
  %v1806 = vpack.c.b16 %v1742, %v1742
  %v1807 = vpack.c.b16 %v1743, %v1743
  %v1808 = vpack.c.b16 %v1744, %v1744
  %v1809 = vpack.c.b16 %v1745, %v1745
  %v1810 = vpack.c.b16 %v1746, %v1746
  %v1811 = vpack.c.b16 %v1747, %v1747
  %v1812 = vpack.c.b16 %v1748, %v1748
  %v1813 = vpack.c.b16 %v1749, %v1749
  %v1814 = vpack.c.b16 %v1750, %v1750
  %v1815 = vpack.c.b16 %v1751, %v1751
  %v1816 = vpack.c.b16 %v1752, %v1752
  %v1817 = vpack.c.b16 %v1753, %v1753
  %v1818 = vpack.c.b16 %v1754, %v1754
  %v1819 = vpack.c.b16 %v1755, %v1755
  %v1820 = vpack.c.b16 %v1756, %v1756
  %v1821 = vpack.c.b16 %v1757, %v1757
  %v1822 = vpack.c.b16 %v1758, %v1758
  %v1823 = vpack.c.b16 %v1759, %v1759
  %v1824 = vpack.c.b16 %v1760, %v1760
  %v1825 = vpack.c.b16 %v1761, %v1761
  %v1826 = vpack.c.b16 %v1762, %v1762
  %v1827 = vpack.c.b16 %v1763, %v1763
  %v1828 = vpack.c.b16 %v1764, %v1764
  %v1829 = vpack.c.b16 %v1765, %v1765
  %vm1894 = vcmask 125952
  %1895 = vst.msk [vmem:[%s5] sm:$0xf] %vm1894, %v1766
  %1896 = vst.msk [vmem:[%s5 + $0x4] sm:$0xf] %vm1894, %v1767
  %1897 = vst.msk [vmem:[%s5 + $0x8] sm:$0xf] %vm1894, %v1768
  %1898 = vst.msk [vmem:[%s5 + $0xc] sm:$0xf] %vm1894, %v1769
  %1899 = vst.msk [vmem:[%s5 + $0x10] sm:$0xf] %vm1894, %v1770
  %1900 = vst.msk [vmem:[%s5 + $0x14] sm:$0xf] %vm1894, %v1771
  %1901 = vst.msk [vmem:[%s5 + $0x18] sm:$0xf] %vm1894, %v1772
  %1902 = vst.msk [vmem:[%s5 + $0x1c] sm:$0xf] %vm1894, %v1773
  %1903 = vst.msk [vmem:[%s5 + $0x20] sm:$0xf] %vm1894, %v1774
  %1904 = vst.msk [vmem:[%s5 + $0x24] sm:$0xf] %vm1894, %v1775
  %1905 = vst.msk [vmem:[%s5 + $0x28] sm:$0xf] %vm1894, %v1776
  %1906 = vst.msk [vmem:[%s5 + $0x2c] sm:$0xf] %vm1894, %v1777
  %1907 = vst.msk [vmem:[%s5 + $0x30] sm:$0xf] %vm1894, %v1778
  %1908 = vst.msk [vmem:[%s5 + $0x34] sm:$0xf] %vm1894, %v1779
  %1909 = vst.msk [vmem:[%s5 + $0x38] sm:$0xf] %vm1894, %v1780
  %1910 = vst.msk [vmem:[%s5 + $0x3c] sm:$0xf] %vm1894, %v1781
  %1911 = vst.msk [vmem:[%s5 + $0x40] sm:$0xf] %vm1894, %v1782
  %1912 = vst.msk [vmem:[%s5 + $0x44] sm:$0xf] %vm1894, %v1783
  %1913 = vst.msk [vmem:[%s5 + $0x48] sm:$0xf] %vm1894, %v1784
  %1914 = vst.msk [vmem:[%s5 + $0x4c] sm:$0xf] %vm1894, %v1785
  %1915 = vst.msk [vmem:[%s5 + $0x50] sm:$0xf] %vm1894, %v1786
  %1916 = vst.msk [vmem:[%s5 + $0x54] sm:$0xf] %vm1894, %v1787
  %1917 = vst.msk [vmem:[%s5 + $0x58] sm:$0xf] %vm1894, %v1788
  %1918 = vst.msk [vmem:[%s5 + $0x5c] sm:$0xf] %vm1894, %v1789
  %1919 = vst.msk [vmem:[%s5 + $0x60] sm:$0xf] %vm1894, %v1790
  %1920 = vst.msk [vmem:[%s5 + $0x64] sm:$0xf] %vm1894, %v1791
  %1921 = vst.msk [vmem:[%s5 + $0x68] sm:$0xf] %vm1894, %v1792
  %1922 = vst.msk [vmem:[%s5 + $0x6c] sm:$0xf] %vm1894, %v1793
  %1923 = vst.msk [vmem:[%s5 + $0x70] sm:$0xf] %vm1894, %v1794
  %1924 = vst.msk [vmem:[%s5 + $0x74] sm:$0xf] %vm1894, %v1795
  %1925 = vst.msk [vmem:[%s5 + $0x78] sm:$0xf] %vm1894, %v1796
  %1926 = vst.msk [vmem:[%s5 + $0x7c] sm:$0xf] %vm1894, %v1797
  %1927 = vst.msk [vmem:[%s5 + $0x80] sm:$0xf] %vm1894, %v1798
  %1928 = vst.msk [vmem:[%s5 + $0x84] sm:$0xf] %vm1894, %v1799
  %1929 = vst.msk [vmem:[%s5 + $0x88] sm:$0xf] %vm1894, %v1800
  %1930 = vst.msk [vmem:[%s5 + $0x8c] sm:$0xf] %vm1894, %v1801
  %1931 = vst.msk [vmem:[%s5 + $0x90] sm:$0xf] %vm1894, %v1802
  %1932 = vst.msk [vmem:[%s5 + $0x94] sm:$0xf] %vm1894, %v1803
  %1933 = vst.msk [vmem:[%s5 + $0x98] sm:$0xf] %vm1894, %v1804
  %1934 = vst.msk [vmem:[%s5 + $0x9c] sm:$0xf] %vm1894, %v1805
  %1935 = vst.msk [vmem:[%s5 + $0xa0] sm:$0xf] %vm1894, %v1806
  %1936 = vst.msk [vmem:[%s5 + $0xa4] sm:$0xf] %vm1894, %v1807
  %1937 = vst.msk [vmem:[%s5 + $0xa8] sm:$0xf] %vm1894, %v1808
  %1938 = vst.msk [vmem:[%s5 + $0xac] sm:$0xf] %vm1894, %v1809
  %1939 = vst.msk [vmem:[%s5 + $0xb0] sm:$0xf] %vm1894, %v1810
  %1940 = vst.msk [vmem:[%s5 + $0xb4] sm:$0xf] %vm1894, %v1811
  %1941 = vst.msk [vmem:[%s5 + $0xb8] sm:$0xf] %vm1894, %v1812
  %1942 = vst.msk [vmem:[%s5 + $0xbc] sm:$0xf] %vm1894, %v1813
  %1943 = vst.msk [vmem:[%s5 + $0xc0] sm:$0xf] %vm1894, %v1814
  %1944 = vst.msk [vmem:[%s5 + $0xc4] sm:$0xf] %vm1894, %v1815
  %1945 = vst.msk [vmem:[%s5 + $0xc8] sm:$0xf] %vm1894, %v1816
  %1946 = vst.msk [vmem:[%s5 + $0xcc] sm:$0xf] %vm1894, %v1817
  %1947 = vst.msk [vmem:[%s5 + $0xd0] sm:$0xf] %vm1894, %v1818
  %1948 = vst.msk [vmem:[%s5 + $0xd4] sm:$0xf] %vm1894, %v1819
  %1949 = vst.msk [vmem:[%s5 + $0xd8] sm:$0xf] %vm1894, %v1820
  %1950 = vst.msk [vmem:[%s5 + $0xdc] sm:$0xf] %vm1894, %v1821
  %1951 = vst.msk [vmem:[%s5 + $0xe0] sm:$0xf] %vm1894, %v1822
  %1952 = vst.msk [vmem:[%s5 + $0xe4] sm:$0xf] %vm1894, %v1823
  %1953 = vst.msk [vmem:[%s5 + $0xe8] sm:$0xf] %vm1894, %v1824
  %1954 = vst.msk [vmem:[%s5 + $0xec] sm:$0xf] %vm1894, %v1825
  %1955 = vst.msk [vmem:[%s5 + $0xf0] sm:$0xf] %vm1894, %v1826
  %1956 = vst.msk [vmem:[%s5 + $0xf4] sm:$0xf] %vm1894, %v1827
  %1957 = vst.msk [vmem:[%s5 + $0xf8] sm:$0xf] %vm1894, %v1828
  %1958 = vst.msk [vmem:[%s5 + $0xfc] sm:$0xf] %vm1894, %v1829
  // Predicated region
  $region22: #{seg_forward.4} parent=0 // pred_check
    _
  $region23: #{seg_forward.4} parent=0 // pred_check_branch
    %1960 = sbr.rel (0) target = $region25
  $region24: #{seg_forward.4} parent=0 // pred_region
    _
  $region25: #{seg_forward.4} parent=0 // pred_fallthru
    _
  // Predicated region
  $region26: #{seg_forward.4} parent=0 // pred_check
    _
  $region27: #{seg_forward.4} parent=0 // pred_check_branch
    %1962 = sbr.rel (0) target = $region29
  $region28: #{seg_forward.4} parent=0 // pred_region
    _
  $region29: #{seg_forward.4} parent=0 // pred_fallthru
    _

// kernel: seg_forward.5
$region0: #{seg_forward.5}
  #allocation0 [shape = 'u32[]', space=smem, size = 0x4, offset = 0x4, fixed_abs, tag = 'smem constant byte address 0x4 - core index']
  #allocation1 [shape = 'u32[144,128]{1,0:T(1,128)}', space=vmem, size = 0x12000, scoped, tag = 'internal scratch']
  %s0 = inlined_call_operand.vmem [shape: bf16[128,64], index: 0, kind: input, shape index: {}]
  %s1 = inlined_call_operand.vmem [shape: bf16[64,32], index: 1, kind: input, shape index: {}]
  %s2 = inlined_call_operand.vmem [shape: f32[1,32], index: 2, kind: input, shape index: {}]
  %s3 = inlined_call_operand.vmem [shape: f32[1,32], index: 3, kind: input, shape index: {}]
  %s4 = inlined_call_operand.vmem [shape: f32[1,32], index: 4, kind: input, shape index: {}]
  %s5 = inlined_call_operand.vmem [shape: bf16[128,32], index: 5, kind: output, shape index: {}]
  %s6 = sld [smem:[#allocation0]]
  $region30: #{seg_forward.5} parent=0
    _
  %s8 = ssub.s32 1, %s6
  %s9 = scalar_select 0, %s8, %s6
  // Predicated region
  $region2: #{seg_forward.5} parent=0 // pred_check
    _
  $region3: #{seg_forward.5} parent=0 // pred_check_branch
    %11 = sbr.rel (0) target = $region5
  $region4: #{seg_forward.5} parent=0 // pred_region
    _
  $region5: #{seg_forward.5} parent=0 // pred_fallthru
    _
  // Predicated region
  $region6: #{seg_forward.5} parent=0 // pred_check
    _
  $region7: #{seg_forward.5} parent=0 // pred_check_branch
    %13 = sbr.rel (0) target = $region9
  $region8: #{seg_forward.5} parent=0 // pred_region
    _
  $region9: #{seg_forward.5} parent=0 // pred_fallthru
    _
  // Predicated region
  $region10: #{seg_forward.5} parent=0 // pred_check
    _
  $region11: #{seg_forward.5} parent=0 // pred_check_branch
    %15 = sbr.rel (0) target = $region13
  $region12: #{seg_forward.5} parent=0 // pred_region
    _
  $region13: #{seg_forward.5} parent=0 // pred_fallthru
    _
  // Predicated region
  $region14: #{seg_forward.5} parent=0 // pred_check
    _
  $region15: #{seg_forward.5} parent=0 // pred_check_branch
    %17 = sbr.rel (0) target = $region17
  $region16: #{seg_forward.5} parent=0 // pred_region
    _
  $region17: #{seg_forward.5} parent=0 // pred_fallthru
    _
  // Predicated region
  $region18: #{seg_forward.5} parent=0 // pred_check
    _
  $region19: #{seg_forward.5} parent=0 // pred_check_branch
    %19 = sbr.rel (0) target = $region21
  $region20: #{seg_forward.5} parent=0 // pred_region
    _
  $region21: #{seg_forward.5} parent=0 // pred_fallthru
    _
  %v21 = vld [vmem:[%s0] sm:$0xf]
  %v22 = vld [vmem:[%s0 + $0x4] sm:$0xf]
  %v23 = vld [vmem:[%s0 + $0x8] sm:$0xf]
  %v24 = vld [vmem:[%s0 + $0xc] sm:$0xf]
  %v25 = vld [vmem:[%s0 + $0x10] sm:$0xf]
  %v26 = vld [vmem:[%s0 + $0x14] sm:$0xf]
  %v27 = vld [vmem:[%s0 + $0x18] sm:$0xf]
  %v28 = vld [vmem:[%s0 + $0x1c] sm:$0xf]
  %v29 = vld [vmem:[%s0 + $0x20] sm:$0xf]
  %v30 = vld [vmem:[%s0 + $0x24] sm:$0xf]
  %v31 = vld [vmem:[%s0 + $0x28] sm:$0xf]
  %v32 = vld [vmem:[%s0 + $0x2c] sm:$0xf]
  %v33 = vld [vmem:[%s0 + $0x30] sm:$0xf]
  %v34 = vld [vmem:[%s0 + $0x34] sm:$0xf]
  %v35 = vld [vmem:[%s0 + $0x38] sm:$0xf]
  %v36 = vld [vmem:[%s0 + $0x3c] sm:$0xf]
  %v37 = vld [vmem:[%s1] sm:$0xf]
  %v38 = vld [vmem:[%s1 + $0x4] sm:$0xf]
  %v39 = vld [vmem:[%s1 + $0x8] sm:$0xf]
  %v40 = vld [vmem:[%s1 + $0xc] sm:$0xf]
  %v41 = vld [vmem:[%s1 + $0x10] sm:$0xf]
  %v42 = vld [vmem:[%s1 + $0x14] sm:$0xf]
  %v43 = vld [vmem:[%s1 + $0x18] sm:$0xf]
  %v44 = vld [vmem:[%s1 + $0x1c] sm:$0xf]
  %v45 = vld [vmem:[%s2] sm:$0x1]
  %v47 = vlaneseq
  %v48 = vshrl.u32 %v47, 7
  %v49 = vsub.s32 0, %v48
  %v50 = vrot.slane %v45, %v49
  %v68 = vunpack.c.l.b16 %v21
  %v69 = vunpack.c.l.b16 %v22
  %v70 = vunpack.c.l.b16 %v23
  %v71 = vunpack.c.l.b16 %v24
  %v72 = vunpack.c.l.b16 %v25
  %v73 = vunpack.c.l.b16 %v26
  %v74 = vunpack.c.l.b16 %v27
  %v75 = vunpack.c.l.b16 %v28
  %v76 = vunpack.c.l.b16 %v29
  %v77 = vunpack.c.l.b16 %v30
  %v78 = vunpack.c.l.b16 %v31
  %v79 = vunpack.c.l.b16 %v32
  %v80 = vunpack.c.l.b16 %v33
  %v81 = vunpack.c.l.b16 %v34
  %v82 = vunpack.c.l.b16 %v35
  %v83 = vunpack.c.l.b16 %v36
  %v84 = vpack.c.b16 %v69, %v68
  %v85 = vpack.c.b16 %v71, %v70
  %v86 = vpack.c.b16 %v73, %v72
  %v87 = vpack.c.b16 %v75, %v74
  %v88 = vpack.c.b16 %v77, %v76
  %v89 = vpack.c.b16 %v79, %v78
  %v90 = vpack.c.b16 %v81, %v80
  %v91 = vpack.c.b16 %v83, %v82
  %v100 = vunpack.c.l.b16 %v37
  %v101 = vunpack.c.l.b16 %v38
  %v102 = vunpack.c.l.b16 %v39
  %v103 = vunpack.c.l.b16 %v40
  %v104 = vunpack.c.l.b16 %v41
  %v105 = vunpack.c.l.b16 %v42
  %v106 = vunpack.c.l.b16 %v43
  %v107 = vunpack.c.l.b16 %v44
  %v108 = vpack.c.b16 %v101, %v100
  %v109 = vpack.c.b16 %v103, %v102
  %v110 = vpack.c.b16 %v105, %v104
  %v111 = vpack.c.b16 %v107, %v106
  %vm116 = vcmask 523264
  %v118 = vsel %vm116, %v84, 0
  %v121 = vsel %vm116, %v85, 0
  %v124 = vsel %vm116, %v86, 0
  %v127 = vsel %vm116, %v87, 0
  %v130 = vsel %vm116, %v88, 0
  %v133 = vsel %vm116, %v89, 0
  %v136 = vsel %vm116, %v90, 0
  %v139 = vsel %vm116, %v91, 0
  %141 = vmatprep.subr.bf16.mxu0 0
  %142 = vmatpush1.bf16.msra.mxu0 %v108
  %143 = vmatprep.subr.bf16.mxu0 0
  %144 = vmatpush1.bf16.msra.mxu0 %v109
  %145 = vmatprep.subr.bf16.mxu0 0
  %146 = vmatpush1.bf16.msra.mxu0 %v110
  %147 = vmatprep.subr.bf16.mxu0 0
  %148 = vmatpush1.bf16.msra.mxu0 %v111
  %149 = vmatprep.subr.bf16.mxu0 0
  %150 = vmatpush1.bf16.msra.mxu0 0
  %151 = vmatprep.subr.bf16.mxu0 0
  %152 = vmatpush1.bf16.msra.mxu0 0
  %153 = vmatprep.subr.bf16.mxu0 0
  %154 = vmatpush1.bf16.msra.mxu0 0
  %155 = vmatprep.subr.bf16.mxu0 0
  %156 = vmatpush1.bf16.msra.mxu0 0
  %157 = vmatprep.subr.bf16.mxu0 0
  %158 = vmatpush1.bf16.msra.mxu0 0
  %159 = vmatprep.subr.bf16.mxu0 0
  %160 = vmatpush1.bf16.msra.mxu0 0
  %161 = vmatprep.subr.bf16.mxu0 0
  %162 = vmatpush1.bf16.msra.mxu0 0
  %163 = vmatprep.subr.bf16.mxu0 0
  %164 = vmatpush1.bf16.msra.mxu0 0
  %165 = vmatprep.subr.bf16.mxu0 0
  %166 = vmatpush1.bf16.msra.mxu0 0
  %167 = vmatprep.subr.bf16.mxu0 0
  %168 = vmatpush1.bf16.msra.mxu0 0
  %169 = vmatprep.subr.bf16.mxu0 0
  %170 = vmatpush1.bf16.msra.mxu0 0
  %171 = vmatprep.subr.bf16.mxu0 0
  %172 = vmatpush1.bf16.msra.mxu0 0
  %173 = vmatprep.mubr.bf16.mxu0 0
  %174 = vmatmul.mubr.bf16.gmra.mrb[0].mxu0 %v118
  %v175 = vpop.f32.mrb[0].mxu0
  %v176 = vadd.f32 %v50, %v175
  %v177 = vpop.f32.mrb[0].mxu0
  %v178 = vpop.f32.mrb[0].mxu0
  %v179 = vadd.f32 %v50, %v178
  %v180 = vpop.f32.mrb[0].mxu0
  %181 = vmatprep.mubr.bf16.mxu0 0
  %182 = vmatmul.mubr.bf16.gmra.mrb[0].mxu0 %v121
  %v183 = vpop.f32.mrb[0].mxu0
  %v184 = vadd.f32 %v50, %v183
  %v185 = vpop.f32.mrb[0].mxu0
  %v186 = vpop.f32.mrb[0].mxu0
  %v187 = vadd.f32 %v50, %v186
  %v188 = vpop.f32.mrb[0].mxu0
  %189 = vmatprep.mubr.bf16.mxu0 0
  %190 = vmatmul.mubr.bf16.gmra.mrb[0].mxu0 %v124
  %v191 = vpop.f32.mrb[0].mxu0
  %v192 = vadd.f32 %v50, %v191
  %v193 = vpop.f32.mrb[0].mxu0
  %v194 = vpop.f32.mrb[0].mxu0
  %v195 = vadd.f32 %v50, %v194
  %v196 = vpop.f32.mrb[0].mxu0
  %197 = vmatprep.mubr.bf16.mxu0 0
  %198 = vmatmul.mubr.bf16.gmra.mrb[0].mxu0 %v127
  %v199 = vpop.f32.mrb[0].mxu0
  %v200 = vadd.f32 %v50, %v199
  %v201 = vpop.f32.mrb[0].mxu0
  %v202 = vpop.f32.mrb[0].mxu0
  %v203 = vadd.f32 %v50, %v202
  %v204 = vpop.f32.mrb[0].mxu0
  %205 = vmatprep.mubr.bf16.mxu0 0
  %206 = vmatmul.mubr.bf16.gmra.mrb[0].mxu0 %v130
  %v207 = vpop.f32.mrb[0].mxu0
  %v208 = vadd.f32 %v50, %v207
  %v209 = vpop.f32.mrb[0].mxu0
  %v210 = vpop.f32.mrb[0].mxu0
  %v211 = vadd.f32 %v50, %v210
  %v212 = vpop.f32.mrb[0].mxu0
  %213 = vmatprep.mubr.bf16.mxu0 0
  %214 = vmatmul.mubr.bf16.gmra.mrb[0].mxu0 %v133
  %v215 = vpop.f32.mrb[0].mxu0
  %v216 = vadd.f32 %v50, %v215
  %v217 = vpop.f32.mrb[0].mxu0
  %v218 = vpop.f32.mrb[0].mxu0
  %v219 = vadd.f32 %v50, %v218
  %v220 = vpop.f32.mrb[0].mxu0
  %221 = vmatprep.mubr.bf16.mxu0 0
  %222 = vmatmul.mubr.bf16.gmra.mrb[0].mxu0 %v136
  %v223 = vpop.f32.mrb[0].mxu0
  %v224 = vadd.f32 %v50, %v223
  %v225 = vpop.f32.mrb[0].mxu0
  %v226 = vpop.f32.mrb[0].mxu0
  %v227 = vadd.f32 %v50, %v226
  %v228 = vpop.f32.mrb[0].mxu0
  %229 = vmatprep.mubr.bf16.mxu0 0
  %230 = vmatmul.mubr.bf16.gmra.mrb[0].mxu0 %v139
  %v231 = vpop.f32.mrb[0].mxu0
  %v232 = vadd.f32 %v50, %v231
  %v233 = vpop.f32.mrb[0].mxu0
  %v234 = vpop.f32.mrb[0].mxu0
  %v235 = vadd.f32 %v50, %v234
  %v236 = vpop.f32.mrb[0].mxu0
  %237 = vdwg.mxu0
  %vm238 = vcmask 261120
  %v239 = vsel %vm238, %v176, 0.0
  %240 = vadd.xlane.f32.xlu0 %v239
  %v241 = vpop.xlane.xlu0 %240
  %v242 = vsel %vm238, %v179, 0.0
  %243 = vadd.xlane.f32.xlu0 %v242
  %v244 = vpop.xlane.xlu0 %243
  %v245 = vsel %vm238, %v184, 0.0
  %246 = vadd.xlane.f32.xlu0 %v245
  %v247 = vpop.xlane.xlu0 %246
  %v248 = vsel %vm238, %v187, 0.0
  %249 = vadd.xlane.f32.xlu0 %v248
  %v250 = vpop.xlane.xlu0 %249
  %v251 = vsel %vm238, %v192, 0.0
  %252 = vadd.xlane.f32.xlu0 %v251
  %v253 = vpop.xlane.xlu0 %252
  %v254 = vsel %vm238, %v195, 0.0
  %255 = vadd.xlane.f32.xlu0 %v254
  %v256 = vpop.xlane.xlu0 %255
  %v257 = vsel %vm238, %v200, 0.0
  %258 = vadd.xlane.f32.xlu0 %v257
  %v259 = vpop.xlane.xlu0 %258
  %v260 = vsel %vm238, %v203, 0.0
  %261 = vadd.xlane.f32.xlu0 %v260
  %v262 = vpop.xlane.xlu0 %261
  %v263 = vsel %vm238, %v208, 0.0
  %264 = vadd.xlane.f32.xlu0 %v263
  %v265 = vpop.xlane.xlu0 %264
  %v266 = vsel %vm238, %v211, 0.0
  %267 = vadd.xlane.f32.xlu0 %v266
  %v268 = vpop.xlane.xlu0 %267
  %v269 = vsel %vm238, %v216, 0.0
  %270 = vadd.xlane.f32.xlu0 %v269
  %v271 = vpop.xlane.xlu0 %270
  %v272 = vsel %vm238, %v219, 0.0
  %273 = vadd.xlane.f32.xlu0 %v272
  %v274 = vpop.xlane.xlu0 %273
  %v275 = vsel %vm238, %v224, 0.0
  %276 = vadd.xlane.f32.xlu0 %v275
  %v277 = vpop.xlane.xlu0 %276
  %v278 = vsel %vm238, %v227, 0.0
  %279 = vadd.xlane.f32.xlu0 %v278
  %v280 = vpop.xlane.xlu0 %279
  %v281 = vsel %vm238, %v232, 0.0
  %282 = vadd.xlane.f32.xlu0 %v281
  %v283 = vpop.xlane.xlu0 %282
  %v284 = vsel %vm238, %v235, 0.0
  %285 = vadd.xlane.f32.xlu0 %v284
  %v286 = vpop.xlane.xlu0 %285
  %v287 = vrcp.pop 32.0
  %v288 = vmul.f32 %v241, %v287
  %v289 = vmul.f32 %v244, %v287
  %v290 = vmul.f32 %v247, %v287
  %v291 = vmul.f32 %v250, %v287
  %v292 = vmul.f32 %v253, %v287
  %v293 = vmul.f32 %v256, %v287
  %v294 = vmul.f32 %v259, %v287
  %v295 = vmul.f32 %v262, %v287
  %v296 = vmul.f32 %v265, %v287
  %v297 = vmul.f32 %v268, %v287
  %v298 = vmul.f32 %v271, %v287
  %v299 = vmul.f32 %v274, %v287
  %v300 = vmul.f32 %v277, %v287
  %v301 = vmul.f32 %v280, %v287
  %v302 = vmul.f32 %v283, %v287
  %v303 = vmul.f32 %v286, %v287
  %v304 = vsub.f32 %v176, %v288
  %v305 = vsub.f32 %v179, %v289
  %v306 = vsub.f32 %v184, %v290
  %v307 = vsub.f32 %v187, %v291
  %v308 = vsub.f32 %v192, %v292
  %v309 = vsub.f32 %v195, %v293
  %v310 = vsub.f32 %v200, %v294
  %v311 = vsub.f32 %v203, %v295
  %v312 = vsub.f32 %v208, %v296
  %v313 = vsub.f32 %v211, %v297
  %v314 = vsub.f32 %v216, %v298
  %v315 = vsub.f32 %v219, %v299
  %v316 = vsub.f32 %v224, %v300
  %v317 = vsub.f32 %v227, %v301
  %v318 = vsub.f32 %v232, %v302
  %v319 = vsub.f32 %v235, %v303
  %v320 = vmul.f32 %v304, %v304
  %v321 = vmul.f32 %v305, %v305
  %v322 = vmul.f32 %v306, %v306
  %v323 = vmul.f32 %v307, %v307
  %v324 = vmul.f32 %v308, %v308
  %v325 = vmul.f32 %v309, %v309
  %v326 = vmul.f32 %v310, %v310
  %v327 = vmul.f32 %v311, %v311
  %v328 = vmul.f32 %v312, %v312
  %v329 = vmul.f32 %v313, %v313
  %v330 = vmul.f32 %v314, %v314
  %v331 = vmul.f32 %v315, %v315
  %v332 = vmul.f32 %v316, %v316
  %v333 = vmul.f32 %v317, %v317
  %v334 = vmul.f32 %v318, %v318
  %v335 = vmul.f32 %v319, %v319
  %v336 = vsel %vm238, %v320, 0.0
  %337 = vadd.xlane.f32.xlu0 %v336
  %v338 = vpop.xlane.xlu0 %337
  %v339 = vsel %vm238, %v321, 0.0
  %340 = vadd.xlane.f32.xlu0 %v339
  %v341 = vpop.xlane.xlu0 %340
  %v342 = vsel %vm238, %v322, 0.0
  %343 = vadd.xlane.f32.xlu0 %v342
  %v344 = vpop.xlane.xlu0 %343
  %v345 = vsel %vm238, %v323, 0.0
  %346 = vadd.xlane.f32.xlu0 %v345
  %v347 = vpop.xlane.xlu0 %346
  %v348 = vsel %vm238, %v324, 0.0
  %349 = vadd.xlane.f32.xlu0 %v348
  %v350 = vpop.xlane.xlu0 %349
  %v351 = vsel %vm238, %v325, 0.0
  %352 = vadd.xlane.f32.xlu0 %v351
  %v353 = vpop.xlane.xlu0 %352
  %v354 = vsel %vm238, %v326, 0.0
  %355 = vadd.xlane.f32.xlu0 %v354
  %v356 = vpop.xlane.xlu0 %355
  %v357 = vsel %vm238, %v327, 0.0
  %358 = vadd.xlane.f32.xlu0 %v357
  %v359 = vpop.xlane.xlu0 %358
  %v360 = vsel %vm238, %v328, 0.0
  %361 = vadd.xlane.f32.xlu0 %v360
  %v362 = vpop.xlane.xlu0 %361
  %v363 = vsel %vm238, %v329, 0.0
  %364 = vadd.xlane.f32.xlu0 %v363
  %v365 = vpop.xlane.xlu0 %364
  %v366 = vsel %vm238, %v330, 0.0
  %367 = vadd.xlane.f32.xlu0 %v366
  %v368 = vpop.xlane.xlu0 %367
  %v369 = vsel %vm238, %v331, 0.0
  %370 = vadd.xlane.f32.xlu0 %v369
  %v371 = vpop.xlane.xlu0 %370
  %v372 = vsel %vm238, %v332, 0.0
  %373 = vadd.xlane.f32.xlu0 %v372
  %v374 = vpop.xlane.xlu0 %373
  %v375 = vsel %vm238, %v333, 0.0
  %376 = vadd.xlane.f32.xlu0 %v375
  %v377 = vpop.xlane.xlu0 %376
  %v378 = vsel %vm238, %v334, 0.0
  %379 = vadd.xlane.f32.xlu0 %v378
  %v380 = vpop.xlane.xlu0 %379
  %v381 = vsel %vm238, %v335, 0.0
  %382 = vadd.xlane.f32.xlu0 %v381
  %v383 = vpop.xlane.xlu0 %382
  %v384 = vmul.f32 %v338, %v287
  %v385 = vmul.f32 %v341, %v287
  %v386 = vmul.f32 %v344, %v287
  %v387 = vmul.f32 %v347, %v287
  %v388 = vmul.f32 %v350, %v287
  %v389 = vmul.f32 %v353, %v287
  %v390 = vmul.f32 %v356, %v287
  %v391 = vmul.f32 %v359, %v287
  %v392 = vmul.f32 %v362, %v287
  %v393 = vmul.f32 %v365, %v287
  %v394 = vmul.f32 %v368, %v287
  %v395 = vmul.f32 %v371, %v287
  %v396 = vmul.f32 %v374, %v287
  %v397 = vmul.f32 %v377, %v287
  %v398 = vmul.f32 %v380, %v287
  %v399 = vmul.f32 %v383, %v287
  %v400 = vadd.f32 %v384, 1e-05
  %v401 = vadd.f32 %v385, 1e-05
  %v402 = vadd.f32 %v386, 1e-05
  %v403 = vadd.f32 %v387, 1e-05
  %v404 = vadd.f32 %v388, 1e-05
  %v405 = vadd.f32 %v389, 1e-05
  %v406 = vadd.f32 %v390, 1e-05
  %v407 = vadd.f32 %v391, 1e-05
  %v408 = vadd.f32 %v392, 1e-05
  %v409 = vadd.f32 %v393, 1e-05
  %v410 = vadd.f32 %v394, 1e-05
  %v411 = vadd.f32 %v395, 1e-05
  %v412 = vadd.f32 %v396, 1e-05
  %v413 = vadd.f32 %v397, 1e-05
  %v414 = vadd.f32 %v398, 1e-05
  %v415 = vadd.f32 %v399, 1e-05
  %v416 = vrsqrt.pop %v400
  %v417 = vrsqrt.pop %v401
  %v418 = vrsqrt.pop %v402
  %v419 = vrsqrt.pop %v403
  %v420 = vrsqrt.pop %v404
  %v421 = vrsqrt.pop %v405
  %v422 = vrsqrt.pop %v406
  %v423 = vrsqrt.pop %v407
  %v424 = vrsqrt.pop %v408
  %v425 = vrsqrt.pop %v409
  %v426 = vrsqrt.pop %v410
  %v427 = vrsqrt.pop %v411
  %v428 = vrsqrt.pop %v412
  %v429 = vrsqrt.pop %v413
  %v430 = vrsqrt.pop %v414
  %v431 = vrsqrt.pop %v415
  %v432 = vmul.f32 %v304, %v416
  %v433 = vmul.f32 %v305, %v417
  %v434 = vmul.f32 %v306, %v418
  %v435 = vmul.f32 %v307, %v419
  %v436 = vmul.f32 %v308, %v420
  %v437 = vmul.f32 %v309, %v421
  %v438 = vmul.f32 %v310, %v422
  %v439 = vmul.f32 %v311, %v423
  %v440 = vmul.f32 %v312, %v424
  %v441 = vmul.f32 %v313, %v425
  %v442 = vmul.f32 %v314, %v426
  %v443 = vmul.f32 %v315, %v427
  %v444 = vmul.f32 %v316, %v428
  %v445 = vmul.f32 %v317, %v429
  %v446 = vmul.f32 %v318, %v430
  %v447 = vmul.f32 %v319, %v431
  %v448 = vld [vmem:[%s3] sm:$0x1]
  %v450 = vlaneseq
  %v451 = vshrl.u32 %v450, 7
  %v452 = vsub.s32 0, %v451
  %v453 = vrot.slane %v448, %v452
  %v455 = vmul.f32 %v432, %v453
  %v456 = vmul.f32 %v433, %v453
  %v457 = vmul.f32 %v434, %v453
  %v458 = vmul.f32 %v435, %v453
  %v459 = vmul.f32 %v436, %v453
  %v460 = vmul.f32 %v437, %v453
  %v461 = vmul.f32 %v438, %v453
  %v462 = vmul.f32 %v439, %v453
  %v463 = vmul.f32 %v440, %v453
  %v464 = vmul.f32 %v441, %v453
  %v465 = vmul.f32 %v442, %v453
  %v466 = vmul.f32 %v443, %v453
  %v467 = vmul.f32 %v444, %v453
  %v468 = vmul.f32 %v445, %v453
  %v469 = vmul.f32 %v446, %v453
  %v470 = vmul.f32 %v447, %v453
  %v471 = vld [vmem:[%s4] sm:$0x1]
  %v473 = vlaneseq
  %v474 = vshrl.u32 %v473, 7
  %v475 = vsub.s32 0, %v474
  %v476 = vrot.slane %v471, %v475
  %v478 = vadd.f32 %v455, %v476
  %v479 = vadd.f32 %v456, %v476
  %v480 = vadd.f32 %v457, %v476
  %v481 = vadd.f32 %v458, %v476
  %v482 = vadd.f32 %v459, %v476
  %v483 = vadd.f32 %v460, %v476
  %v484 = vadd.f32 %v461, %v476
  %v485 = vadd.f32 %v462, %v476
  %v486 = vadd.f32 %v463, %v476
  %v487 = vadd.f32 %v464, %v476
  %v488 = vadd.f32 %v465, %v476
  %v489 = vadd.f32 %v466, %v476
  %v490 = vadd.f32 %v467, %v476
  %v491 = vadd.f32 %v468, %v476
  %v492 = vadd.f32 %v469, %v476
  %v493 = vadd.f32 %v470, %v476
  %v494 = vpack.c.bf16 %v479, %v478
  %v495 = vpack.c.bf16 %v481, %v480
  %v496 = vpack.c.bf16 %v483, %v482
  %v497 = vpack.c.bf16 %v485, %v484
  %v498 = vpack.c.bf16 %v487, %v486
  %v499 = vpack.c.bf16 %v489, %v488
  %v500 = vpack.c.bf16 %v491, %v490
  %v501 = vpack.c.bf16 %v493, %v492
  %v510 = vunpack.c.l.b16 %v494
  %v511 = vunpack.c.h.b16 %v494
  %v512 = vunpack.c.l.b16 %v495
  %v513 = vunpack.c.h.b16 %v495
  %v514 = vunpack.c.l.b16 %v496
  %v515 = vunpack.c.h.b16 %v496
  %v516 = vunpack.c.l.b16 %v497
  %v517 = vunpack.c.h.b16 %v497
  %v518 = vunpack.c.l.b16 %v498
  %v519 = vunpack.c.h.b16 %v498
  %v520 = vunpack.c.l.b16 %v499
  %v521 = vunpack.c.h.b16 %v499
  %v522 = vunpack.c.l.b16 %v500
  %v523 = vunpack.c.h.b16 %v500
  %v524 = vunpack.c.l.b16 %v501
  %v525 = vunpack.c.h.b16 %v501
  %v526 = vpack.c.b16 %v510, %v510
  %v527 = vpack.c.b16 %v511, %v511
  %v528 = vpack.c.b16 %v512, %v512
  %v529 = vpack.c.b16 %v513, %v513
  %v530 = vpack.c.b16 %v514, %v514
  %v531 = vpack.c.b16 %v515, %v515
  %v532 = vpack.c.b16 %v516, %v516
  %v533 = vpack.c.b16 %v517, %v517
  %v534 = vpack.c.b16 %v518, %v518
  %v535 = vpack.c.b16 %v519, %v519
  %v536 = vpack.c.b16 %v520, %v520
  %v537 = vpack.c.b16 %v521, %v521
  %v538 = vpack.c.b16 %v522, %v522
  %v539 = vpack.c.b16 %v523, %v523
  %v540 = vpack.c.b16 %v524, %v524
  %v541 = vpack.c.b16 %v525, %v525
  %vm558 = vcmask 257024
  %559 = vst.msk [vmem:[%s5] sm:$0xf] %vm558, %v526
  %560 = vst.msk [vmem:[%s5 + $0x4] sm:$0xf] %vm558, %v527
  %561 = vst.msk [vmem:[%s5 + $0x8] sm:$0xf] %vm558, %v528
  %562 = vst.msk [vmem:[%s5 + $0xc] sm:$0xf] %vm558, %v529
  %563 = vst.msk [vmem:[%s5 + $0x10] sm:$0xf] %vm558, %v530
  %564 = vst.msk [vmem:[%s5 + $0x14] sm:$0xf] %vm558, %v531
  %565 = vst.msk [vmem:[%s5 + $0x18] sm:$0xf] %vm558, %v532
  %566 = vst.msk [vmem:[%s5 + $0x1c] sm:$0xf] %vm558, %v533
  %567 = vst.msk [vmem:[%s5 + $0x20] sm:$0xf] %vm558, %v534
  %568 = vst.msk [vmem:[%s5 + $0x24] sm:$0xf] %vm558, %v535
  %569 = vst.msk [vmem:[%s5 + $0x28] sm:$0xf] %vm558, %v536
  %570 = vst.msk [vmem:[%s5 + $0x2c] sm:$0xf] %vm558, %v537
  %571 = vst.msk [vmem:[%s5 + $0x30] sm:$0xf] %vm558, %v538
  %572 = vst.msk [vmem:[%s5 + $0x34] sm:$0xf] %vm558, %v539
  %573 = vst.msk [vmem:[%s5 + $0x38] sm:$0xf] %vm558, %v540
  %574 = vst.msk [vmem:[%s5 + $0x3c] sm:$0xf] %vm558, %v541
  // Predicated region
  $region22: #{seg_forward.5} parent=0 // pred_check
    _
  $region23: #{seg_forward.5} parent=0 // pred_check_branch
    %576 = sbr.rel (0) target = $region25
  $region24: #{seg_forward.5} parent=0 // pred_region
    _
  $region25: #{seg_forward.5} parent=0 // pred_fallthru
    _
  // Predicated region
  $region26: #{seg_forward.5} parent=0 // pred_check
    _
  $region27: #{seg_forward.5} parent=0 // pred_check_branch
    %578 = sbr.rel (0) target = $region29
  $region28: #{seg_forward.5} parent=0 // pred_region
    _
  $region29: #{seg_forward.5} parent=0 // pred_fallthru
    _

// kernel: seg_forward.6
$region0: #{seg_forward.6}
  #allocation0 [shape = 'u32[]', space=smem, size = 0x4, offset = 0x4, fixed_abs, tag = 'smem constant byte address 0x4 - core index']
  #allocation1 [shape = 'u32[144,128]{1,0:T(1,128)}', space=vmem, size = 0x12000, scoped, tag = 'internal scratch']
  %s0 = inlined_call_operand.vmem [shape: bf16[2,256,16], index: 0, kind: input, shape index: {}]
  %s1 = inlined_call_operand.vmem [shape: bf16[2,64,32], index: 1, kind: input, shape index: {}]
  %s2 = inlined_call_operand.vmem [shape: bf16[2,16,64], index: 2, kind: input, shape index: {}]
  %s3 = inlined_call_operand.vmem [shape: bf16[2,4,128], index: 3, kind: input, shape index: {}]
  %s4 = inlined_call_operand.vmem [shape: bf16[256,64], index: 4, kind: input, shape index: {}]
  %s5 = inlined_call_operand.vmem [shape: bf16[256,16], index: 5, kind: input, shape index: {}]
  %s6 = inlined_call_operand.vmem [shape: bf16[256,4], index: 6, kind: input, shape index: {}]
  %s7 = inlined_call_operand.vmem [shape: bf16[16,32], index: 7, kind: input, shape index: {}]
  %s8 = inlined_call_operand.vmem [shape: bf16[32,32], index: 8, kind: input, shape index: {}]
  %s9 = inlined_call_operand.vmem [shape: bf16[64,32], index: 9, kind: input, shape index: {}]
  %s10 = inlined_call_operand.vmem [shape: bf16[128,32], index: 10, kind: input, shape index: {}]
  %s11 = inlined_call_operand.vmem [shape: f32[1,32], index: 11, kind: input, shape index: {}]
  %s12 = inlined_call_operand.vmem [shape: f32[1,32], index: 12, kind: input, shape index: {}]
  %s13 = inlined_call_operand.vmem [shape: bf16[8,32], index: 13, kind: input, shape index: {}]
  %s14 = inlined_call_operand.vmem [shape: f32[8,1], index: 14, kind: input, shape index: {}]
  %s15 = inlined_call_operand.vmem [shape: f32[2,8,256], index: 15, kind: output, shape index: {}]
  %s16 = sld [smem:[#allocation0]]
  $region93: #{seg_forward.6} parent=0
    _
  %s18 = ssub.s32 1, %s16
  %s19 = scalar_select 0, %s18, %s16
  loop: start=0, step=1, limit=4
  $region2: #{seg_forward.6} parent=0 // loop_pre_header
    _
  $region3: #{seg_forward.6} parent=0 // loop_header
    %s21 = sphi 0, %s25
    %p22 = scmp.ge.s32.totalorder %s21, 4
    %s31 = sphi 0, %s33
    %s34 = sphi 0, %s31
    %s35 = sphi 0, %s34
    %s51 = sphi 0, %s35
    %s57 = sphi 0, %s59
    %s60 = sphi 0, %s57
    %s61 = sphi 0, %s60
    %s77 = sphi 0, %s61
    %s83 = sphi 0, %s85
    %s86 = sphi 0, %s83
    %s87 = sphi 0, %s86
    %s103 = sphi 0, %s87
    %s109 = sphi 0, %s111
    %s112 = sphi 0, %s109
    %s113 = sphi 0, %s112
    %s129 = sphi 0, %s113
    %s133 = sphi 0, %s133
    %s135 = sphi 0, %s133
    %s136 = sphi 0, %s135
    %s150 = sphi 0, %s136
    %s154 = sphi 0, %s154
    %s156 = sphi 0, %s154
    %s157 = sphi 0, %s156
    %s171 = sphi 0, %s157
    %s175 = sphi 0, %s175
    %s177 = sphi 0, %s175
    %s178 = sphi 0, %s177
    %s192 = sphi 0, %s178
    %s196 = sphi 0, %s196
    %s198 = sphi 0, %s196
    %s199 = sphi 0, %s198
    %s213 = sphi 0, %s199
    %s217 = sphi 0, %s217
    %s219 = sphi 0, %s217
    %s220 = sphi 0, %s219
    %s234 = sphi 0, %s220
    %s238 = sphi 0, %s238
    %s240 = sphi 0, %s238
    %s241 = sphi 0, %s240
    %s255 = sphi 0, %s241
    %s259 = sphi 0, %s259
    %s261 = sphi 0, %s259
    %s262 = sphi 0, %s261
    %s276 = sphi 0, %s262
    %s280 = sphi 0, %s280
    %s282 = sphi 0, %s280
    %s283 = sphi 0, %s282
    %s297 = sphi 0, %s283
    %s301 = sphi 0, %s301
    %s303 = sphi 0, %s301
    %s304 = sphi 0, %s303
    %s318 = sphi 0, %s304
    %s322 = sphi 0, %s322
    %s324 = sphi 0, %s322
    %s325 = sphi 0, %s324
    %s339 = sphi 0, %s325
    %s343 = sphi 0, %s343
    %s345 = sphi 0, %s343
    %s346 = sphi 0, %s345
    %s360 = sphi 0, %s346
    %s366 = sphi 0, %s368
    %s369 = sphi 0, %s366
    %s370 = sphi 0, %s369
    %s386 = sphi 0, %s370
  $region4: #{seg_forward.6} parent=0 // loop_header_branch
    %24 = sbr.rel (%p22) target = $region8
  $region5: #{seg_forward.6} parent=0 // loop_body
    %s26 = ssub.s32 %s21, 1
    %s27 = ssub.s32 %s21, 2
    %s28 = sadd.s32 %s21, 1
    %s29 = ssub.s32 %s21, %s28
    %p30 = scmp.eq.s32.totalorder %s29, 0
    %s32 = sadd.s32 %s31, 1
    %s33 = scalar_select %p30, %s31, %s32
    %p36 = pneg %p30
    %p37 = scmp.eq.s32.totalorder %s21, 1
    %p38 = por %p36, %p37
    %p39 = scmp.ne.s32.totalorder %s31, %s34
    %p40 = scmp.eq.s32.totalorder %s21, 0
    %p41 = por %p39, %p40
    %p42 = scmp.ne.s32.totalorder %s31, %s34
    %p43 = scmp.eq.s32.totalorder %s26, 1
    %p44 = por %p42, %p43
    %p45 = scmp.ne.s32.totalorder %s34, %s35
    %p46 = scmp.eq.s32.totalorder %s26, 0
    %p47 = por %p45, %p46
    %p48 = scmp.ne.s32.totalorder %s34, %s35
    %p49 = scmp.eq.s32.totalorder %s27, 1
    %p50 = por %p48, %p49
    %p52 = scmp.ne.s32.totalorder %s35, %s51
    %p53 = scmp.eq.s32.totalorder %s27, 0
    %p54 = por %p52, %p53
    %s55 = ssub.s32 %s21, %s28
    %p56 = scmp.eq.s32.totalorder %s55, 0
    %s58 = sadd.s32 %s57, 1
    %s59 = scalar_select %p56, %s57, %s58
    %p62 = pneg %p56
    %p63 = scmp.eq.s32.totalorder %s21, 1
    %p64 = por %p62, %p63
    %p65 = scmp.ne.s32.totalorder %s57, %s60
    %p66 = scmp.eq.s32.totalorder %s21, 0
    %p67 = por %p65, %p66
    %p68 = scmp.ne.s32.totalorder %s57, %s60
    %p69 = scmp.eq.s32.totalorder %s26, 1
    %p70 = por %p68, %p69
    %p71 = scmp.ne.s32.totalorder %s60, %s61
    %p72 = scmp.eq.s32.totalorder %s26, 0
    %p73 = por %p71, %p72
    %p74 = scmp.ne.s32.totalorder %s60, %s61
    %p75 = scmp.eq.s32.totalorder %s27, 1
    %p76 = por %p74, %p75
    %p78 = scmp.ne.s32.totalorder %s61, %s77
    %p79 = scmp.eq.s32.totalorder %s27, 0
    %p80 = por %p78, %p79
    %s81 = ssub.s32 %s21, %s28
    %p82 = scmp.eq.s32.totalorder %s81, 0
    %s84 = sadd.s32 %s83, 1
    %s85 = scalar_select %p82, %s83, %s84
    %p88 = pneg %p82
    %p89 = scmp.eq.s32.totalorder %s21, 1
    %p90 = por %p88, %p89
    %p91 = scmp.ne.s32.totalorder %s83, %s86
    %p92 = scmp.eq.s32.totalorder %s21, 0
    %p93 = por %p91, %p92
    %p94 = scmp.ne.s32.totalorder %s83, %s86
    %p95 = scmp.eq.s32.totalorder %s26, 1
    %p96 = por %p94, %p95
    %p97 = scmp.ne.s32.totalorder %s86, %s87
    %p98 = scmp.eq.s32.totalorder %s26, 0
    %p99 = por %p97, %p98
    %p100 = scmp.ne.s32.totalorder %s86, %s87
    %p101 = scmp.eq.s32.totalorder %s27, 1
    %p102 = por %p100, %p101
    %p104 = scmp.ne.s32.totalorder %s87, %s103
    %p105 = scmp.eq.s32.totalorder %s27, 0
    %p106 = por %p104, %p105
    %s107 = ssub.s32 %s21, %s28
    %p108 = scmp.eq.s32.totalorder %s107, 0
    %s110 = sadd.s32 %s109, 1
    %s111 = scalar_select %p108, %s109, %s110
    %p114 = pneg %p108
    %p115 = scmp.eq.s32.totalorder %s21, 1
    %p116 = por %p114, %p115
    %p117 = scmp.ne.s32.totalorder %s109, %s112
    %p118 = scmp.eq.s32.totalorder %s21, 0
    %p119 = por %p117, %p118
    %p120 = scmp.ne.s32.totalorder %s109, %s112
    %p121 = scmp.eq.s32.totalorder %s26, 1
    %p122 = por %p120, %p121
    %p123 = scmp.ne.s32.totalorder %s112, %s113
    %p124 = scmp.eq.s32.totalorder %s26, 0
    %p125 = por %p123, %p124
    %p126 = scmp.ne.s32.totalorder %s112, %s113
    %p127 = scmp.eq.s32.totalorder %s27, 1
    %p128 = por %p126, %p127
    %p130 = scmp.ne.s32.totalorder %s113, %s129
    %p131 = scmp.eq.s32.totalorder %s27, 0
    %p132 = por %p130, %p131
    %s134 = sadd.s32 %s133, 1
    %p137 = scmp.eq.s32.totalorder %s21, 1
    %p138 = scmp.ne.s32.totalorder %s133, %s135
    %p139 = scmp.eq.s32.totalorder %s21, 0
    %p140 = por %p138, %p139
    %p141 = scmp.ne.s32.totalorder %s133, %s135
    %p142 = scmp.eq.s32.totalorder %s26, 1
    %p143 = por %p141, %p142
    %p144 = scmp.ne.s32.totalorder %s135, %s136
    %p145 = scmp.eq.s32.totalorder %s26, 0
    %p146 = por %p144, %p145
    %p147 = scmp.ne.s32.totalorder %s135, %s136
    %p148 = scmp.eq.s32.totalorder %s27, 1
    %p149 = por %p147, %p148
    %p151 = scmp.ne.s32.totalorder %s136, %s150
    %p152 = scmp.eq.s32.totalorder %s27, 0
    %p153 = por %p151, %p152
    %s155 = sadd.s32 %s154, 1
    %p158 = scmp.eq.s32.totalorder %s21, 1
    %p159 = scmp.ne.s32.totalorder %s154, %s156
    %p160 = scmp.eq.s32.totalorder %s21, 0
    %p161 = por %p159, %p160
    %p162 = scmp.ne.s32.totalorder %s154, %s156
    %p163 = scmp.eq.s32.totalorder %s26, 1
    %p164 = por %p162, %p163
    %p165 = scmp.ne.s32.totalorder %s156, %s157
    %p166 = scmp.eq.s32.totalorder %s26, 0
    %p167 = por %p165, %p166
    %p168 = scmp.ne.s32.totalorder %s156, %s157
    %p169 = scmp.eq.s32.totalorder %s27, 1
    %p170 = por %p168, %p169
    %p172 = scmp.ne.s32.totalorder %s157, %s171
    %p173 = scmp.eq.s32.totalorder %s27, 0
    %p174 = por %p172, %p173
    %s176 = sadd.s32 %s175, 1
    %p179 = scmp.eq.s32.totalorder %s21, 1
    %p180 = scmp.ne.s32.totalorder %s175, %s177
    %p181 = scmp.eq.s32.totalorder %s21, 0
    %p182 = por %p180, %p181
    %p183 = scmp.ne.s32.totalorder %s175, %s177
    %p184 = scmp.eq.s32.totalorder %s26, 1
    %p185 = por %p183, %p184
    %p186 = scmp.ne.s32.totalorder %s177, %s178
    %p187 = scmp.eq.s32.totalorder %s26, 0
    %p188 = por %p186, %p187
    %p189 = scmp.ne.s32.totalorder %s177, %s178
    %p190 = scmp.eq.s32.totalorder %s27, 1
    %p191 = por %p189, %p190
    %p193 = scmp.ne.s32.totalorder %s178, %s192
    %p194 = scmp.eq.s32.totalorder %s27, 0
    %p195 = por %p193, %p194
    %s197 = sadd.s32 %s196, 1
    %p200 = scmp.eq.s32.totalorder %s21, 1
    %p201 = scmp.ne.s32.totalorder %s196, %s198
    %p202 = scmp.eq.s32.totalorder %s21, 0
    %p203 = por %p201, %p202
    %p204 = scmp.ne.s32.totalorder %s196, %s198
    %p205 = scmp.eq.s32.totalorder %s26, 1
    %p206 = por %p204, %p205
    %p207 = scmp.ne.s32.totalorder %s198, %s199
    %p208 = scmp.eq.s32.totalorder %s26, 0
    %p209 = por %p207, %p208
    %p210 = scmp.ne.s32.totalorder %s198, %s199
    %p211 = scmp.eq.s32.totalorder %s27, 1
    %p212 = por %p210, %p211
    %p214 = scmp.ne.s32.totalorder %s199, %s213
    %p215 = scmp.eq.s32.totalorder %s27, 0
    %p216 = por %p214, %p215
    %s218 = sadd.s32 %s217, 1
    %p221 = scmp.eq.s32.totalorder %s21, 1
    %p222 = scmp.ne.s32.totalorder %s217, %s219
    %p223 = scmp.eq.s32.totalorder %s21, 0
    %p224 = por %p222, %p223
    %p225 = scmp.ne.s32.totalorder %s217, %s219
    %p226 = scmp.eq.s32.totalorder %s26, 1
    %p227 = por %p225, %p226
    %p228 = scmp.ne.s32.totalorder %s219, %s220
    %p229 = scmp.eq.s32.totalorder %s26, 0
    %p230 = por %p228, %p229
    %p231 = scmp.ne.s32.totalorder %s219, %s220
    %p232 = scmp.eq.s32.totalorder %s27, 1
    %p233 = por %p231, %p232
    %p235 = scmp.ne.s32.totalorder %s220, %s234
    %p236 = scmp.eq.s32.totalorder %s27, 0
    %p237 = por %p235, %p236
    %s239 = sadd.s32 %s238, 1
    %p242 = scmp.eq.s32.totalorder %s21, 1
    %p243 = scmp.ne.s32.totalorder %s238, %s240
    %p244 = scmp.eq.s32.totalorder %s21, 0
    %p245 = por %p243, %p244
    %p246 = scmp.ne.s32.totalorder %s238, %s240
    %p247 = scmp.eq.s32.totalorder %s26, 1
    %p248 = por %p246, %p247
    %p249 = scmp.ne.s32.totalorder %s240, %s241
    %p250 = scmp.eq.s32.totalorder %s26, 0
    %p251 = por %p249, %p250
    %p252 = scmp.ne.s32.totalorder %s240, %s241
    %p253 = scmp.eq.s32.totalorder %s27, 1
    %p254 = por %p252, %p253
    %p256 = scmp.ne.s32.totalorder %s241, %s255
    %p257 = scmp.eq.s32.totalorder %s27, 0
    %p258 = por %p256, %p257
    %s260 = sadd.s32 %s259, 1
    %p263 = scmp.eq.s32.totalorder %s21, 1
    %p264 = scmp.ne.s32.totalorder %s259, %s261
    %p265 = scmp.eq.s32.totalorder %s21, 0
    %p266 = por %p264, %p265
    %p267 = scmp.ne.s32.totalorder %s259, %s261
    %p268 = scmp.eq.s32.totalorder %s26, 1
    %p269 = por %p267, %p268
    %p270 = scmp.ne.s32.totalorder %s261, %s262
    %p271 = scmp.eq.s32.totalorder %s26, 0
    %p272 = por %p270, %p271
    %p273 = scmp.ne.s32.totalorder %s261, %s262
    %p274 = scmp.eq.s32.totalorder %s27, 1
    %p275 = por %p273, %p274
    %p277 = scmp.ne.s32.totalorder %s262, %s276
    %p278 = scmp.eq.s32.totalorder %s27, 0
    %p279 = por %p277, %p278
    %s281 = sadd.s32 %s280, 1
    %p284 = scmp.eq.s32.totalorder %s21, 1
    %p285 = scmp.ne.s32.totalorder %s280, %s282
    %p286 = scmp.eq.s32.totalorder %s21, 0
    %p287 = por %p285, %p286
    %p288 = scmp.ne.s32.totalorder %s280, %s282
    %p289 = scmp.eq.s32.totalorder %s26, 1
    %p290 = por %p288, %p289
    %p291 = scmp.ne.s32.totalorder %s282, %s283
    %p292 = scmp.eq.s32.totalorder %s26, 0
    %p293 = por %p291, %p292
    %p294 = scmp.ne.s32.totalorder %s282, %s283
    %p295 = scmp.eq.s32.totalorder %s27, 1
    %p296 = por %p294, %p295
    %p298 = scmp.ne.s32.totalorder %s283, %s297
    %p299 = scmp.eq.s32.totalorder %s27, 0
    %p300 = por %p298, %p299
    %s302 = sadd.s32 %s301, 1
    %p305 = scmp.eq.s32.totalorder %s21, 1
    %p306 = scmp.ne.s32.totalorder %s301, %s303
    %p307 = scmp.eq.s32.totalorder %s21, 0
    %p308 = por %p306, %p307
    %p309 = scmp.ne.s32.totalorder %s301, %s303
    %p310 = scmp.eq.s32.totalorder %s26, 1
    %p311 = por %p309, %p310
    %p312 = scmp.ne.s32.totalorder %s303, %s304
    %p313 = scmp.eq.s32.totalorder %s26, 0
    %p314 = por %p312, %p313
    %p315 = scmp.ne.s32.totalorder %s303, %s304
    %p316 = scmp.eq.s32.totalorder %s27, 1
    %p317 = por %p315, %p316
    %p319 = scmp.ne.s32.totalorder %s304, %s318
    %p320 = scmp.eq.s32.totalorder %s27, 0
    %p321 = por %p319, %p320
    %s323 = sadd.s32 %s322, 1
    %p326 = scmp.eq.s32.totalorder %s21, 1
    %p327 = scmp.ne.s32.totalorder %s322, %s324
    %p328 = scmp.eq.s32.totalorder %s21, 0
    %p329 = por %p327, %p328
    %p330 = scmp.ne.s32.totalorder %s322, %s324
    %p331 = scmp.eq.s32.totalorder %s26, 1
    %p332 = por %p330, %p331
    %p333 = scmp.ne.s32.totalorder %s324, %s325
    %p334 = scmp.eq.s32.totalorder %s26, 0
    %p335 = por %p333, %p334
    %p336 = scmp.ne.s32.totalorder %s324, %s325
    %p337 = scmp.eq.s32.totalorder %s27, 1
    %p338 = por %p336, %p337
    %p340 = scmp.ne.s32.totalorder %s325, %s339
    %p341 = scmp.eq.s32.totalorder %s27, 0
    %p342 = por %p340, %p341
    %s344 = sadd.s32 %s343, 1
    %p347 = scmp.eq.s32.totalorder %s21, 1
    %p348 = scmp.ne.s32.totalorder %s343, %s345
    %p349 = scmp.eq.s32.totalorder %s21, 0
    %p350 = por %p348, %p349
    %p351 = scmp.ne.s32.totalorder %s343, %s345
    %p352 = scmp.eq.s32.totalorder %s26, 1
    %p353 = por %p351, %p352
    %p354 = scmp.ne.s32.totalorder %s345, %s346
    %p355 = scmp.eq.s32.totalorder %s26, 0
    %p356 = por %p354, %p355
    %p357 = scmp.ne.s32.totalorder %s345, %s346
    %p358 = scmp.eq.s32.totalorder %s27, 1
    %p359 = por %p357, %p358
    %p361 = scmp.ne.s32.totalorder %s346, %s360
    %p362 = scmp.eq.s32.totalorder %s27, 0
    %p363 = por %p361, %p362
    %s364 = ssub.s32 %s21, %s28
    %p365 = scmp.eq.s32.totalorder %s364, 0
    %s367 = sadd.s32 %s366, 1
    %s368 = scalar_select %p365, %s366, %s367
    %p371 = pneg %p365
    %p372 = scmp.eq.s32.totalorder %s21, 1
    %p373 = por %p371, %p372
    %p374 = scmp.ne.s32.totalorder %s366, %s369
    %p375 = scmp.eq.s32.totalorder %s21, 0
    %p376 = por %p374, %p375
    %p377 = scmp.ne.s32.totalorder %s366, %s369
    %p378 = scmp.eq.s32.totalorder %s26, 1
    %p379 = por %p377, %p378
    %p380 = scmp.ne.s32.totalorder %s369, %s370
    %p381 = scmp.eq.s32.totalorder %s26, 0
    %p382 = por %p380, %p381
    %p383 = scmp.ne.s32.totalorder %s369, %s370
    %p384 = scmp.eq.s32.totalorder %s27, 1
    %p385 = por %p383, %p384
    %p387 = scmp.ne.s32.totalorder %s370, %s386
    %p388 = scmp.eq.s32.totalorder %s27, 0
    %p389 = por %p387, %p388
    %p390 = scmp.le.s32.totalorder 1, %s21
    %p391 = scmp.lt.s32.totalorder %s21, 3
    %p392 = pnand %p390, %p391
    %p393 = pneg %p392
    // Predicated region
    $region9: #{seg_forward.6} parent=5 // pred_check
      _
    $region10: #{seg_forward.6} parent=5 // pred_check_branch
      %395 = sbr.rel (%p392) target = $region12
    $region11: #{seg_forward.6} parent=5 // pred_region
      %s396 = ssub.s32 %s21, 1
      // Predicated region
      $region13: #{seg_forward.6} parent=11 // pred_check
        %p397 = pneg %p146
      $region14: #{seg_forward.6} parent=11 // pred_check_branch
        %399 = sbr.rel (%p397) target = $region16
      $region15: #{seg_forward.6} parent=11 // pred_region
        _
      $region16: #{seg_forward.6} parent=11 // pred_fallthru
        _
      // Predicated region
      $region17: #{seg_forward.6} parent=11 // pred_check
        %p400 = pneg %p167
      $region18: #{seg_forward.6} parent=11 // pred_check_branch
        %402 = sbr.rel (%p400) target = $region20
      $region19: #{seg_forward.6} parent=11 // pred_region
        _
      $region20: #{seg_forward.6} parent=11 // pred_fallthru
        _
      // Predicated region
      $region21: #{seg_forward.6} parent=11 // pred_check
        %p403 = pneg %p188
      $region22: #{seg_forward.6} parent=11 // pred_check_branch
        %405 = sbr.rel (%p403) target = $region24
      $region23: #{seg_forward.6} parent=11 // pred_region
        _
      $region24: #{seg_forward.6} parent=11 // pred_fallthru
        _
      // Predicated region
      $region25: #{seg_forward.6} parent=11 // pred_check
        %p406 = pneg %p209
      $region26: #{seg_forward.6} parent=11 // pred_check_branch
        %408 = sbr.rel (%p406) target = $region28
      $region27: #{seg_forward.6} parent=11 // pred_region
        _
      $region28: #{seg_forward.6} parent=11 // pred_fallthru
        _
      // Predicated region
      $region29: #{seg_forward.6} parent=11 // pred_check
        %p409 = pneg %p230
      $region30: #{seg_forward.6} parent=11 // pred_check_branch
        %411 = sbr.rel (%p409) target = $region32
      $region31: #{seg_forward.6} parent=11 // pred_region
        _
      $region32: #{seg_forward.6} parent=11 // pred_fallthru
        _
      // Predicated region
      $region33: #{seg_forward.6} parent=11 // pred_check
        %p412 = pneg %p251
      $region34: #{seg_forward.6} parent=11 // pred_check_branch
        %414 = sbr.rel (%p412) target = $region36
      $region35: #{seg_forward.6} parent=11 // pred_region
        _
      $region36: #{seg_forward.6} parent=11 // pred_fallthru
        _
      // Predicated region
      $region37: #{seg_forward.6} parent=11 // pred_check
        %p415 = pneg %p272
      $region38: #{seg_forward.6} parent=11 // pred_check_branch
        %417 = sbr.rel (%p415) target = $region40
      $region39: #{seg_forward.6} parent=11 // pred_region
        _
      $region40: #{seg_forward.6} parent=11 // pred_fallthru
        _
      // Predicated region
      $region41: #{seg_forward.6} parent=11 // pred_check
        %p418 = pneg %p293
      $region42: #{seg_forward.6} parent=11 // pred_check_branch
        %420 = sbr.rel (%p418) target = $region44
      $region43: #{seg_forward.6} parent=11 // pred_region
        _
      $region44: #{seg_forward.6} parent=11 // pred_fallthru
        _
      // Predicated region
      $region45: #{seg_forward.6} parent=11 // pred_check
        %p421 = pneg %p314
      $region46: #{seg_forward.6} parent=11 // pred_check_branch
        %423 = sbr.rel (%p421) target = $region48
      $region47: #{seg_forward.6} parent=11 // pred_region
        _
      $region48: #{seg_forward.6} parent=11 // pred_fallthru
        _
      // Predicated region
      $region49: #{seg_forward.6} parent=11 // pred_check
        %p424 = pneg %p335
      $region50: #{seg_forward.6} parent=11 // pred_check_branch
        %426 = sbr.rel (%p424) target = $region52
      $region51: #{seg_forward.6} parent=11 // pred_region
        _
      $region52: #{seg_forward.6} parent=11 // pred_fallthru
        _
      // Predicated region
      $region53: #{seg_forward.6} parent=11 // pred_check
        %p427 = pneg %p356
      $region54: #{seg_forward.6} parent=11 // pred_check_branch
        %429 = sbr.rel (%p427) target = $region56
      $region55: #{seg_forward.6} parent=11 // pred_region
        _
      $region56: #{seg_forward.6} parent=11 // pred_fallthru
        _
    $region12: #{seg_forward.6} parent=5 // pred_fallthru
      _
    %p430 = scmp.lt.s32.totalorder %s21, 2
    // Predicated region
    $region57: #{seg_forward.6} parent=5 // pred_check
      %p431 = pneg %p430
    $region58: #{seg_forward.6} parent=5 // pred_check_branch
      %433 = sbr.rel (%p431) target = $region60
    $region59: #{seg_forward.6} parent=5 // pred_region
      // Predicated region
      $region61: #{seg_forward.6} parent=59 // pred_check
        %p434 = pneg %p41
      $region62: #{seg_forward.6} parent=59 // pred_check_branch
        %436 = sbr.rel (%p434) target = $region64
      $region63: #{seg_forward.6} parent=59 // pred_region
        %p437 = scmp.lt.s32.totalorder %s21, 1
        %s438 = scalar_select %p437, %s21, 1
        %s439 = smul.addr %s438, 32
        %s440 = smul.addr %s439, 4
        %s441 = scalar_lea.vmem %s0, %s440
      $region64: #{seg_forward.6} parent=59 // pred_fallthru
        _
      // Predicated region
      $region65: #{seg_forward.6} parent=59 // pred_check
        %p442 = pneg %p67
      $region66: #{seg_forward.6} parent=59 // pred_check_branch
        %444 = sbr.rel (%p442) target = $region68
      $region67: #{seg_forward.6} parent=59 // pred_region
        %p445 = scmp.lt.s32.totalorder %s21, 1
        %s446 = scalar_select %p445, %s21, 1
        %s447 = smul.addr %s446, 8
        %s448 = smul.addr %s447, 4
        %s449 = scalar_lea.vmem %s1, %s448
      $region68: #{seg_forward.6} parent=59 // pred_fallthru
        _
      // Predicated region
      $region69: #{seg_forward.6} parent=59 // pred_check
        %p450 = pneg %p93
      $region70: #{seg_forward.6} parent=59 // pred_check_branch
        %452 = sbr.rel (%p450) target = $region72
      $region71: #{seg_forward.6} parent=59 // pred_region
        %p453 = scmp.lt.s32.totalorder %s21, 1
        %s454 = scalar_select %p453, %s21, 1
        %s455 = smul.addr %s454, 2
        %s456 = smul.addr %s455, 4
        %s457 = scalar_lea.vmem %s2, %s456
      $region72: #{seg_forward.6} parent=59 // pred_fallthru
        _
      // Predicated region
      $region73: #{seg_forward.6} parent=59 // pred_check
        %p458 = pneg %p119
      $region74: #{seg_forward.6} parent=59 // pred_check_branch
        %460 = sbr.rel (%p458) target = $region76
      $region75: #{seg_forward.6} parent=59 // pred_region
        %p461 = scmp.lt.s32.totalorder %s21, 1
        %s462 = scalar_select %p461, %s21, 1
        %s463 = smul.addr %s462, 2
        %s464 = scalar_lea.vmem %s3, %s463
      $region76: #{seg_forward.6} parent=59 // pred_fallthru
        _
    $region60: #{seg_forward.6} parent=5 // pred_fallthru
      _
    %p465 = scmp.le.s32.totalorder 1, %s21
    %p466 = scmp.lt.s32.totalorder %s21, 3
    %p467 = pnand %p465, %p466
    %p468 = pneg %p467
    // Predicated region
    $region77: #{seg_forward.6} parent=5 // pred_check
      _
    $region78: #{seg_forward.6} parent=5 // pred_check_branch
      %470 = sbr.rel (%p467) target = $region80
    $region79: #{seg_forward.6} parent=5 // pred_region
      %s471 = ssub.s32 %s21, 1
      %p472 = scmp.lt.s32.totalorder %s26, 1
      %s473 = scalar_select %p472, %s26, 1
      %s474 = smul.addr %s473, 32
      %s475 = smul.addr %s474, 4
      %s476 = scalar_lea.vmem %s0, %s475
      %p477 = pneg %p47
      %p478 = pneg %p44
      %p479 = scmp.lt.s32.totalorder %s26, 1
      %s480 = scalar_select %p479, %s26, 1
      %s481 = smul.addr %s480, 8
      %s482 = smul.addr %s481, 4
      %s483 = scalar_lea.vmem %s1, %s482
      %p484 = pneg %p73
      %p485 = pneg %p70
      %p486 = scmp.lt.s32.totalorder %s26, 1
      %s487 = scalar_select %p486, %s26, 1
      %s488 = smul.addr %s487, 2
      %s489 = smul.addr %s488, 4
      %s490 = scalar_lea.vmem %s2, %s489
      %p491 = pneg %p99
      %p492 = pneg %p96
      %p493 = scmp.lt.s32.totalorder %s26, 1
      %s494 = scalar_select %p493, %s26, 1
      %s495 = smul.addr %s494, 2
      %s496 = scalar_lea.vmem %s3, %s495
      %p497 = pneg %p125
      %p498 = pneg %p122
      %p499 = pneg %p146
      %p500 = pneg %p143
      %p501 = pneg %p167
      %p502 = pneg %p164
      %p503 = pneg %p188
      %p504 = pneg %p185
      %p505 = pneg %p209
      %p506 = pneg %p206
      %p507 = pneg %p230
      %p508 = pneg %p227
      %p509 = pneg %p251
      %p510 = pneg %p248
      %p511 = pneg %p272
      %p512 = pneg %p269
      %p513 = pneg %p293
      %p514 = pneg %p290
      %p515 = pneg %p314
      %p516 = pneg %p311
      %p517 = pneg %p335
      %p518 = pneg %p332
      %p519 = pneg %p356
      %p520 = pneg %p353
      %p521 = pneg %p382
      %p522 = pneg %p379
      %p523 = scmp.lt.s32.totalorder %s26, 1
      %s524 = scalar_select %p523, %s26, 1
      %s525 = smul.addr %s524, 2
      %s526 = smul.addr %s525, 8
      %s527 = scalar_lea.vmem %s15, %s526
      %p528 = scmp.lt.s32.totalorder %s26, 1
      %s529 = scalar_select %p528, %s26, 1
      %s530 = smul.addr %s529, 32
      %s531 = smul.addr %s530, 4
      %s532 = scalar_lea.vmem %s0, %s531
      %p533 = scmp.lt.s32.totalorder %s26, 1
      %s534 = scalar_select %p533, %s26, 1
      %s535 = smul.addr %s534, 8
      %s536 = smul.addr %s535, 4
      %s537 = scalar_lea.vmem %s1, %s536
      %p538 = scmp.lt.s32.totalorder %s26, 1
      %s539 = scalar_select %p538, %s26, 1
      %s540 = smul.addr %s539, 2
      %s541 = smul.addr %s540, 4
      %s542 = scalar_lea.vmem %s2, %s541
      %p543 = scmp.lt.s32.totalorder %s26, 1
      %s544 = scalar_select %p543, %s26, 1
      %s545 = smul.addr %s544, 2
      %s546 = scalar_lea.vmem %s3, %s545
      %p547 = scmp.lt.s32.totalorder %s26, 1
      %s548 = scalar_select %p547, %s26, 1
      %s549 = smul.addr %s548, 2
      %s550 = smul.addr %s549, 8
      %s551 = scalar_lea.vmem %s15, %s550
      %v553 = vld [vmem:[%s532] sm:$0xf]
      %v554 = vld [vmem:[%s532 + $0x4] sm:$0xf]
      %v555 = vld [vmem:[%s532 + $0x8] sm:$0xf]
      %v556 = vld [vmem:[%s532 + $0xc] sm:$0xf]
      %v557 = vld [vmem:[%s532 + $0x10] sm:$0xf]
      %v558 = vld [vmem:[%s532 + $0x14] sm:$0xf]
      %v559 = vld [vmem:[%s532 + $0x18] sm:$0xf]
      %v560 = vld [vmem:[%s532 + $0x1c] sm:$0xf]
      %v561 = vld [vmem:[%s532 + $0x20] sm:$0xf]
      %v562 = vld [vmem:[%s532 + $0x24] sm:$0xf]
      %v563 = vld [vmem:[%s532 + $0x28] sm:$0xf]
      %v564 = vld [vmem:[%s532 + $0x2c] sm:$0xf]
      %v565 = vld [vmem:[%s532 + $0x30] sm:$0xf]
      %v566 = vld [vmem:[%s532 + $0x34] sm:$0xf]
      %v567 = vld [vmem:[%s532 + $0x38] sm:$0xf]
      %v568 = vld [vmem:[%s532 + $0x3c] sm:$0xf]
      %v569 = vld [vmem:[%s532 + $0x40] sm:$0xf]
      %v570 = vld [vmem:[%s532 + $0x44] sm:$0xf]
      %v571 = vld [vmem:[%s532 + $0x48] sm:$0xf]
      %v572 = vld [vmem:[%s532 + $0x4c] sm:$0xf]
      %v573 = vld [vmem:[%s532 + $0x50] sm:$0xf]
      %v574 = vld [vmem:[%s532 + $0x54] sm:$0xf]
      %v575 = vld [vmem:[%s532 + $0x58] sm:$0xf]
      %v576 = vld [vmem:[%s532 + $0x5c] sm:$0xf]
      %v577 = vld [vmem:[%s532 + $0x60] sm:$0xf]
      %v578 = vld [vmem:[%s532 + $0x64] sm:$0xf]
      %v579 = vld [vmem:[%s532 + $0x68] sm:$0xf]
      %v580 = vld [vmem:[%s532 + $0x6c] sm:$0xf]
      %v581 = vld [vmem:[%s532 + $0x70] sm:$0xf]
      %v582 = vld [vmem:[%s532 + $0x74] sm:$0xf]
      %v583 = vld [vmem:[%s532 + $0x78] sm:$0xf]
      %v584 = vld [vmem:[%s532 + $0x7c] sm:$0xf]
      %v585 = vld [vmem:[%s7] sm:$0xf]
      %v586 = vld [vmem:[%s7 + $0x4] sm:$0xf]
      %v587 = vld [vmem:[%s537] sm:$0xf]
      %v588 = vld [vmem:[%s537 + $0x4] sm:$0xf]
      %v589 = vld [vmem:[%s537 + $0x8] sm:$0xf]
      %v590 = vld [vmem:[%s537 + $0xc] sm:$0xf]
      %v591 = vld [vmem:[%s537 + $0x10] sm:$0xf]
      %v592 = vld [vmem:[%s537 + $0x14] sm:$0xf]
      %v593 = vld [vmem:[%s537 + $0x18] sm:$0xf]
      %v594 = vld [vmem:[%s537 + $0x1c] sm:$0xf]
      %v595 = vld [vmem:[%s8] sm:$0xf]
      %v596 = vld [vmem:[%s8 + $0x4] sm:$0xf]
      %v597 = vld [vmem:[%s8 + $0x8] sm:$0xf]
      %v598 = vld [vmem:[%s8 + $0xc] sm:$0xf]
      %v607 = vunpack.c.l.b16 %v587
      %v608 = vunpack.c.l.b16 %v588
      %v609 = vunpack.c.l.b16 %v589
      %v610 = vunpack.c.l.b16 %v590
      %v611 = vunpack.c.l.b16 %v591
      %v612 = vunpack.c.l.b16 %v592
      %v613 = vunpack.c.l.b16 %v593
      %v614 = vunpack.c.l.b16 %v594
      %v615 = vpack.c.b16 %v608, %v607
      %v616 = vpack.c.b16 %v610, %v609
      %v617 = vpack.c.b16 %v612, %v611
      %v618 = vpack.c.b16 %v614, %v613
      %v623 = vunpack.c.l.b16 %v595
      %v624 = vunpack.c.l.b16 %v596
      %v625 = vunpack.c.l.b16 %v597
      %v626 = vunpack.c.l.b16 %v598
      %v627 = vpack.c.b16 %v624, %v623
      %v628 = vpack.c.b16 %v626, %v625
      %vm631 = vcmask 261120
      %v633 = vsel %vm631, %v615, 0
      %v636 = vsel %vm631, %v616, 0
      %v639 = vsel %vm631, %v617, 0
      %v642 = vsel %vm631, %v618, 0
      %644 = vmatprep.subr.bf16.mxu0 0
      %645 = vmatpush1.bf16.msra.mxu0 %v627
      %646 = vmatprep.subr.bf16.mxu0 0
      %647 = vmatpush1.bf16.msra.mxu0 %v628
      %648 = vmatprep.subr.bf16.mxu0 0
      %649 = vmatpush1.bf16.msra.mxu0 0
      %650 = vmatprep.subr.bf16.mxu0 0
      %651 = vmatpush1.bf16.msra.mxu0 0
      %652 = vmatprep.subr.bf16.mxu0 0
      %653 = vmatpush1.bf16.msra.mxu0 0
      %654 = vmatprep.subr.bf16.mxu0 0
      %655 = vmatpush1.bf16.msra.mxu0 0
      %656 = vmatprep.subr.bf16.mxu0 0
      %657 = vmatpush1.bf16.msra.mxu0 0
      %658 = vmatprep.subr.bf16.mxu0 0
      %659 = vmatpush1.bf16.msra.mxu0 0
      %660 = vmatprep.subr.bf16.mxu0 0
      %661 = vmatpush1.bf16.msra.mxu0 0
      %662 = vmatprep.subr.bf16.mxu0 0
      %663 = vmatpush1.bf16.msra.mxu0 0
      %664 = vmatprep.subr.bf16.mxu0 0
      %665 = vmatpush1.bf16.msra.mxu0 0
      %666 = vmatprep.subr.bf16.mxu0 0
      %667 = vmatpush1.bf16.msra.mxu0 0
      %668 = vmatprep.subr.bf16.mxu0 0
      %669 = vmatpush1.bf16.msra.mxu0 0
      %670 = vmatprep.subr.bf16.mxu0 0
      %671 = vmatpush1.bf16.msra.mxu0 0
      %672 = vmatprep.subr.bf16.mxu0 0
      %673 = vmatpush1.bf16.msra.mxu0 0
      %674 = vmatprep.subr.bf16.mxu0 0
      %675 = vmatpush1.bf16.msra.mxu0 0
      %676 = vmatprep.mubr.bf16.mxu0 0
      %677 = vmatmul.mubr.bf16.gmra.mrb[0].mxu0 %v633
      %v678 = vpop.f32.mrb[0].mxu0
      %v679 = vadd.f32 0.0, %v678
      %v680 = vpop.f32.mrb[0].mxu0
      %v681 = vpop.f32.mrb[0].mxu0
      %v682 = vadd.f32 0.0, %v681
      %v683 = vpop.f32.mrb[0].mxu0
      %684 = vmatprep.mubr.bf16.mxu0 0
      %685 = vmatmul.mubr.bf16.gmra.mrb[0].mxu0 %v636
      %v686 = vpop.f32.mrb[0].mxu0
      %v687 = vadd.f32 0.0, %v686
      %v688 = vpop.f32.mrb[0].mxu0
      %v689 = vpop.f32.mrb[0].mxu0
      %v690 = vadd.f32 0.0, %v689
      %v691 = vpop.f32.mrb[0].mxu0
      %692 = vmatprep.mubr.bf16.mxu0 0
      %693 = vmatmul.mubr.bf16.gmra.mrb[0].mxu0 %v639
      %v694 = vpop.f32.mrb[0].mxu0
      %v695 = vadd.f32 0.0, %v694
      %v696 = vpop.f32.mrb[0].mxu0
      %v697 = vpop.f32.mrb[0].mxu0
      %v698 = vadd.f32 0.0, %v697
      %v699 = vpop.f32.mrb[0].mxu0
      %700 = vmatprep.mubr.bf16.mxu0 0
      %701 = vmatmul.mubr.bf16.gmra.mrb[0].mxu0 %v642
      %v702 = vpop.f32.mrb[0].mxu0
      %v703 = vadd.f32 0.0, %v702
      %v704 = vpop.f32.mrb[0].mxu0
      %v705 = vpop.f32.mrb[0].mxu0
      %v706 = vadd.f32 0.0, %v705
      %v707 = vpop.f32.mrb[0].mxu0
      %708 = vdwg.mxu0
      %v709 = vld [vmem:[%s4] sm:$0xf]
      %v710 = vld [vmem:[%s4 + $0x4] sm:$0xf]
      %v711 = vld [vmem:[%s4 + $0x8] sm:$0xf]
      %v712 = vld [vmem:[%s4 + $0xc] sm:$0xf]
      %v713 = vld [vmem:[%s4 + $0x10] sm:$0xf]
      %v714 = vld [vmem:[%s4 + $0x14] sm:$0xf]
      %v715 = vld [vmem:[%s4 + $0x18] sm:$0xf]
      %v716 = vld [vmem:[%s4 + $0x1c] sm:$0xf]
      %v717 = vld [vmem:[%s4 + $0x20] sm:$0xf]
      %v718 = vld [vmem:[%s4 + $0x24] sm:$0xf]
      %v719 = vld [vmem:[%s4 + $0x28] sm:$0xf]
      %v720 = vld [vmem:[%s4 + $0x2c] sm:$0xf]
      %v721 = vld [vmem:[%s4 + $0x30] sm:$0xf]
      %v722 = vld [vmem:[%s4 + $0x34] sm:$0xf]
      %v723 = vld [vmem:[%s4 + $0x38] sm:$0xf]
      %v724 = vld [vmem:[%s4 + $0x3c] sm:$0xf]
      %v725 = vld [vmem:[%s4 + $0x40] sm:$0xf]
      %v726 = vld [vmem:[%s4 + $0x44] sm:$0xf]
      %v727 = vld [vmem:[%s4 + $0x48] sm:$0xf]
      %v728 = vld [vmem:[%s4 + $0x4c] sm:$0xf]
      %v729 = vld [vmem:[%s4 + $0x50] sm:$0xf]
      %v730 = vld [vmem:[%s4 + $0x54] sm:$0xf]
      %v731 = vld [vmem:[%s4 + $0x58] sm:$0xf]
      %v732 = vld [vmem:[%s4 + $0x5c] sm:$0xf]
      %v733 = vld [vmem:[%s4 + $0x60] sm:$0xf]
      %v734 = vld [vmem:[%s4 + $0x64] sm:$0xf]
      %v735 = vld [vmem:[%s4 + $0x68] sm:$0xf]
      %v736 = vld [vmem:[%s4 + $0x6c] sm:$0xf]
      %v737 = vld [vmem:[%s4 + $0x70] sm:$0xf]
      %v738 = vld [vmem:[%s4 + $0x74] sm:$0xf]
      %v739 = vld [vmem:[%s4 + $0x78] sm:$0xf]
      %v740 = vld [vmem:[%s4 + $0x7c] sm:$0xf]
      %v741 = vpack.c.bf16 %v682, %v679
      %v742 = vpack.c.bf16 %v690, %v687
      %v743 = vpack.c.bf16 %v698, %v695
      %v744 = vpack.c.bf16 %v706, %v703
      %v777 = vunpack.c.l.b16 %v709
      %v778 = vunpack.c.l.b16 %v710
      %v779 = vunpack.c.l.b16 %v711
      %v780 = vunpack.c.l.b16 %v712
      %v781 = vunpack.c.l.b16 %v713
      %v782 = vunpack.c.l.b16 %v714
      %v783 = vunpack.c.l.b16 %v715
      %v784 = vunpack.c.l.b16 %v716
      %v785 = vunpack.c.l.b16 %v717
      %v786 = vunpack.c.l.b16 %v718
      %v787 = vunpack.c.l.b16 %v719
      %v788 = vunpack.c.l.b16 %v720
      %v789 = vunpack.c.l.b16 %v721
      %v790 = vunpack.c.l.b16 %v722
      %v791 = vunpack.c.l.b16 %v723
      %v792 = vunpack.c.l.b16 %v724
      %v793 = vunpack.c.l.b16 %v725
      %v794 = vunpack.c.l.b16 %v726
      %v795 = vunpack.c.l.b16 %v727
      %v796 = vunpack.c.l.b16 %v728
      %v797 = vunpack.c.l.b16 %v729
      %v798 = vunpack.c.l.b16 %v730
      %v799 = vunpack.c.l.b16 %v731
      %v800 = vunpack.c.l.b16 %v732
      %v801 = vunpack.c.l.b16 %v733
      %v802 = vunpack.c.l.b16 %v734
      %v803 = vunpack.c.l.b16 %v735
      %v804 = vunpack.c.l.b16 %v736
      %v805 = vunpack.c.l.b16 %v737
      %v806 = vunpack.c.l.b16 %v738
      %v807 = vunpack.c.l.b16 %v739
      %v808 = vunpack.c.l.b16 %v740
      %v809 = vpack.c.b16 %v778, %v777
      %v810 = vpack.c.b16 %v780, %v779
      %v811 = vpack.c.b16 %v782, %v781
      %v812 = vpack.c.b16 %v784, %v783
      %v813 = vpack.c.b16 %v786, %v785
      %v814 = vpack.c.b16 %v788, %v787
      %v815 = vpack.c.b16 %v790, %v789
      %v816 = vpack.c.b16 %v792, %v791
      %v817 = vpack.c.b16 %v794, %v793
      %v818 = vpack.c.b16 %v796, %v795
      %v819 = vpack.c.b16 %v798, %v797
      %v820 = vpack.c.b16 %v800, %v799
      %v821 = vpack.c.b16 %v802, %v801
      %v822 = vpack.c.b16 %v804, %v803
      %v823 = vpack.c.b16 %v806, %v805
      %v824 = vpack.c.b16 %v808, %v807
      %vm825 = vcmask 523264
      %v827 = vsel %vm825, %v809, 0
      %v830 = vsel %vm825, %v810, 0
      %v833 = vsel %vm825, %v811, 0
      %v836 = vsel %vm825, %v812, 0
      %v839 = vsel %vm825, %v813, 0
      %v842 = vsel %vm825, %v814, 0
      %v845 = vsel %vm825, %v815, 0
      %v848 = vsel %vm825, %v816, 0
      %v851 = vsel %vm825, %v817, 0
      %v854 = vsel %vm825, %v818, 0
      %v857 = vsel %vm825, %v819, 0
      %v860 = vsel %vm825, %v820, 0
      %v863 = vsel %vm825, %v821, 0
      %v866 = vsel %vm825, %v822, 0
      %v869 = vsel %vm825, %v823, 0
      %v872 = vsel %vm825, %v824, 0
      %874 = vmatprep.subr.bf16.mxu0 0
      %875 = vmatpush1.bf16.msra.mxu0 %v741
      %876 = vmatprep.subr.bf16.mxu0 0
      %877 = vmatpush1.bf16.msra.mxu0 %v742
      %878 = vmatprep.subr.bf16.mxu0 0
      %879 = vmatpush1.bf16.msra.mxu0 %v743
      %880 = vmatprep.subr.bf16.mxu0 0
      %881 = vmatpush1.bf16.msra.mxu0 %v744
      %882 = vmatprep.subr.bf16.mxu0 0
      %883 = vmatpush1.bf16.msra.mxu0 0
      %884 = vmatprep.subr.bf16.mxu0 0
      %885 = vmatpush1.bf16.msra.mxu0 0
      %886 = vmatprep.subr.bf16.mxu0 0
      %887 = vmatpush1.bf16.msra.mxu0 0
      %888 = vmatprep.subr.bf16.mxu0 0
      %889 = vmatpush1.bf16.msra.mxu0 0
      %890 = vmatprep.subr.bf16.mxu0 0
      %891 = vmatpush1.bf16.msra.mxu0 0
      %892 = vmatprep.subr.bf16.mxu0 0
      %893 = vmatpush1.bf16.msra.mxu0 0
      %894 = vmatprep.subr.bf16.mxu0 0
      %895 = vmatpush1.bf16.msra.mxu0 0
      %896 = vmatprep.subr.bf16.mxu0 0
      %897 = vmatpush1.bf16.msra.mxu0 0
      %898 = vmatprep.subr.bf16.mxu0 0
      %899 = vmatpush1.bf16.msra.mxu0 0
      %900 = vmatprep.subr.bf16.mxu0 0
      %901 = vmatpush1.bf16.msra.mxu0 0
      %902 = vmatprep.subr.bf16.mxu0 0
      %903 = vmatpush1.bf16.msra.mxu0 0
      %904 = vmatprep.subr.bf16.mxu0 0
      %905 = vmatpush1.bf16.msra.mxu0 0
      %906 = vmatprep.mubr.bf16.mxu0 0
      %907 = vmatmul.mubr.bf16.gmra.mrb[0].mxu0 %v827
      %v908 = vpop.f32.mrb[0].mxu0
      %v909 = vadd.f32 0.0, %v908
      %v910 = vpop.f32.mrb[0].mxu0
      %v911 = vpop.f32.mrb[0].mxu0
      %v912 = vadd.f32 0.0, %v911
      %v913 = vpop.f32.mrb[0].mxu0
      %914 = vmatprep.mubr.bf16.mxu0 0
      %915 = vmatmul.mubr.bf16.gmra.mrb[0].mxu0 %v830
      %v916 = vpop.f32.mrb[0].mxu0
      %v917 = vadd.f32 0.0, %v916
      %v918 = vpop.f32.mrb[0].mxu0
      %v919 = vpop.f32.mrb[0].mxu0
      %v920 = vadd.f32 0.0, %v919
      %v921 = vpop.f32.mrb[0].mxu0
      %922 = vmatprep.mubr.bf16.mxu0 0
      %923 = vmatmul.mubr.bf16.gmra.mrb[0].mxu0 %v833
      %v924 = vpop.f32.mrb[0].mxu0
      %v925 = vadd.f32 0.0, %v924
      %v926 = vpop.f32.mrb[0].mxu0
      %v927 = vpop.f32.mrb[0].mxu0
      %v928 = vadd.f32 0.0, %v927
      %v929 = vpop.f32.mrb[0].mxu0
      %930 = vmatprep.mubr.bf16.mxu0 0
      %931 = vmatmul.mubr.bf16.gmra.mrb[0].mxu0 %v836
      %v932 = vpop.f32.mrb[0].mxu0
      %v933 = vadd.f32 0.0, %v932
      %v934 = vpop.f32.mrb[0].mxu0
      %v935 = vpop.f32.mrb[0].mxu0
      %v936 = vadd.f32 0.0, %v935
      %v937 = vpop.f32.mrb[0].mxu0
      %938 = vmatprep.mubr.bf16.mxu0 0
      %939 = vmatmul.mubr.bf16.gmra.mrb[0].mxu0 %v839
      %v940 = vpop.f32.mrb[0].mxu0
      %v941 = vadd.f32 0.0, %v940
      %v942 = vpop.f32.mrb[0].mxu0
      %v943 = vpop.f32.mrb[0].mxu0
      %v944 = vadd.f32 0.0, %v943
      %v945 = vpop.f32.mrb[0].mxu0
      %946 = vmatprep.mubr.bf16.mxu0 0
      %947 = vmatmul.mubr.bf16.gmra.mrb[0].mxu0 %v842
      %v948 = vpop.f32.mrb[0].mxu0
      %v949 = vadd.f32 0.0, %v948
      %v950 = vpop.f32.mrb[0].mxu0
      %v951 = vpop.f32.mrb[0].mxu0
      %v952 = vadd.f32 0.0, %v951
      %v953 = vpop.f32.mrb[0].mxu0
      %954 = vmatprep.mubr.bf16.mxu0 0
      %955 = vmatmul.mubr.bf16.gmra.mrb[0].mxu0 %v845
      %v956 = vpop.f32.mrb[0].mxu0
      %v957 = vadd.f32 0.0, %v956
      %v958 = vpop.f32.mrb[0].mxu0
      %v959 = vpop.f32.mrb[0].mxu0
      %v960 = vadd.f32 0.0, %v959
      %v961 = vpop.f32.mrb[0].mxu0
      %962 = vmatprep.mubr.bf16.mxu0 0
      %963 = vmatmul.mubr.bf16.gmra.mrb[0].mxu0 %v848
      %v964 = vpop.f32.mrb[0].mxu0
      %v965 = vadd.f32 0.0, %v964
      %v966 = vpop.f32.mrb[0].mxu0
      %v967 = vpop.f32.mrb[0].mxu0
      %v968 = vadd.f32 0.0, %v967
      %v969 = vpop.f32.mrb[0].mxu0
      %970 = vmatprep.mubr.bf16.mxu0 0
      %971 = vmatmul.mubr.bf16.gmra.mrb[0].mxu0 %v851
      %v972 = vpop.f32.mrb[0].mxu0
      %v973 = vadd.f32 0.0, %v972
      %v974 = vpop.f32.mrb[0].mxu0
      %v975 = vpop.f32.mrb[0].mxu0
      %v976 = vadd.f32 0.0, %v975
      %v977 = vpop.f32.mrb[0].mxu0
      %978 = vmatprep.mubr.bf16.mxu0 0
      %979 = vmatmul.mubr.bf16.gmra.mrb[0].mxu0 %v854
      %v980 = vpop.f32.mrb[0].mxu0
      %v981 = vadd.f32 0.0, %v980
      %v982 = vpop.f32.mrb[0].mxu0
      %v983 = vpop.f32.mrb[0].mxu0
      %v984 = vadd.f32 0.0, %v983
      %v985 = vpop.f32.mrb[0].mxu0
      %986 = vmatprep.mubr.bf16.mxu0 0
      %987 = vmatmul.mubr.bf16.gmra.mrb[0].mxu0 %v857
      %v988 = vpop.f32.mrb[0].mxu0
      %v989 = vadd.f32 0.0, %v988
      %v990 = vpop.f32.mrb[0].mxu0
      %v991 = vpop.f32.mrb[0].mxu0
      %v992 = vadd.f32 0.0, %v991
      %v993 = vpop.f32.mrb[0].mxu0
      %994 = vmatprep.mubr.bf16.mxu0 0
      %995 = vmatmul.mubr.bf16.gmra.mrb[0].mxu0 %v860
      %v996 = vpop.f32.mrb[0].mxu0
      %v997 = vadd.f32 0.0, %v996
      %v998 = vpop.f32.mrb[0].mxu0
      %v999 = vpop.f32.mrb[0].mxu0
      %v1000 = vadd.f32 0.0, %v999
      %v1001 = vpop.f32.mrb[0].mxu0
      %1002 = vmatprep.mubr.bf16.mxu0 0
      %1003 = vmatmul.mubr.bf16.gmra.mrb[0].mxu0 %v863
      %v1004 = vpop.f32.mrb[0].mxu0
      %v1005 = vadd.f32 0.0, %v1004
      %v1006 = vpop.f32.mrb[0].mxu0
      %v1007 = vpop.f32.mrb[0].mxu0
      %v1008 = vadd.f32 0.0, %v1007
      %v1009 = vpop.f32.mrb[0].mxu0
      %1010 = vmatprep.mubr.bf16.mxu0 0
      %1011 = vmatmul.mubr.bf16.gmra.mrb[0].mxu0 %v866
      %v1012 = vpop.f32.mrb[0].mxu0
      %v1013 = vadd.f32 0.0, %v1012
      %v1014 = vpop.f32.mrb[0].mxu0
      %v1015 = vpop.f32.mrb[0].mxu0
      %v1016 = vadd.f32 0.0, %v1015
      %v1017 = vpop.f32.mrb[0].mxu0
      %1018 = vmatprep.mubr.bf16.mxu0 0
      %1019 = vmatmul.mubr.bf16.gmra.mrb[0].mxu0 %v869
      %v1020 = vpop.f32.mrb[0].mxu0
      %v1021 = vadd.f32 0.0, %v1020
      %v1022 = vpop.f32.mrb[0].mxu0
      %v1023 = vpop.f32.mrb[0].mxu0
      %v1024 = vadd.f32 0.0, %v1023
      %v1025 = vpop.f32.mrb[0].mxu0
      %1026 = vmatprep.mubr.bf16.mxu0 0
      %1027 = vmatmul.mubr.bf16.gmra.mrb[0].mxu0 %v872
      %v1028 = vpop.f32.mrb[0].mxu0
      %v1029 = vadd.f32 0.0, %v1028
      %v1030 = vpop.f32.mrb[0].mxu0
      %v1031 = vpop.f32.mrb[0].mxu0
      %v1032 = vadd.f32 0.0, %v1031
      %v1033 = vpop.f32.mrb[0].mxu0
      %1034 = vdwg.mxu0
      %v1067 = vunpack.c.l.b16 %v553
      %v1068 = vunpack.c.l.b16 %v554
      %v1069 = vunpack.c.l.b16 %v555
      %v1070 = vunpack.c.l.b16 %v556
      %v1071 = vunpack.c.l.b16 %v557
      %v1072 = vunpack.c.l.b16 %v558
      %v1073 = vunpack.c.l.b16 %v559
      %v1074 = vunpack.c.l.b16 %v560
      %v1075 = vunpack.c.l.b16 %v561
      %v1076 = vunpack.c.l.b16 %v562
      %v1077 = vunpack.c.l.b16 %v563
      %v1078 = vunpack.c.l.b16 %v564
      %v1079 = vunpack.c.l.b16 %v565
      %v1080 = vunpack.c.l.b16 %v566
      %v1081 = vunpack.c.l.b16 %v567
      %v1082 = vunpack.c.l.b16 %v568
      %v1083 = vunpack.c.l.b16 %v569
      %v1084 = vunpack.c.l.b16 %v570
      %v1085 = vunpack.c.l.b16 %v571
      %v1086 = vunpack.c.l.b16 %v572
      %v1087 = vunpack.c.l.b16 %v573
      %v1088 = vunpack.c.l.b16 %v574
      %v1089 = vunpack.c.l.b16 %v575
      %v1090 = vunpack.c.l.b16 %v576
      %v1091 = vunpack.c.l.b16 %v577
      %v1092 = vunpack.c.l.b16 %v578
      %v1093 = vunpack.c.l.b16 %v579
      %v1094 = vunpack.c.l.b16 %v580
      %v1095 = vunpack.c.l.b16 %v581
      %v1096 = vunpack.c.l.b16 %v582
      %v1097 = vunpack.c.l.b16 %v583
      %v1098 = vunpack.c.l.b16 %v584
      %v1099 = vpack.c.b16 %v1068, %v1067
      %v1100 = vpack.c.b16 %v1070, %v1069
      %v1101 = vpack.c.b16 %v1072, %v1071
      %v1102 = vpack.c.b16 %v1074, %v1073
      %v1103 = vpack.c.b16 %v1076, %v1075
      %v1104 = vpack.c.b16 %v1078, %v1077
      %v1105 = vpack.c.b16 %v1080, %v1079
      %v1106 = vpack.c.b16 %v1082, %v1081
      %v1107 = vpack.c.b16 %v1084, %v1083
      %v1108 = vpack.c.b16 %v1086, %v1085
      %v1109 = vpack.c.b16 %v1088, %v1087
      %v1110 = vpack.c.b16 %v1090, %v1089
      %v1111 = vpack.c.b16 %v1092, %v1091
      %v1112 = vpack.c.b16 %v1094, %v1093
      %v1113 = vpack.c.b16 %v1096, %v1095
      %v1114 = vpack.c.b16 %v1098, %v1097
      %v1117 = vunpack.c.l.b16 %v585
      %v1118 = vunpack.c.l.b16 %v586
      %v1119 = vpack.c.b16 %v1118, %v1117
      %vm1121 = vcmask 130048
      %v1123 = vsel %vm1121, %v1099, 0
      %v1126 = vsel %vm1121, %v1100, 0
      %v1129 = vsel %vm1121, %v1101, 0
      %v1132 = vsel %vm1121, %v1102, 0
      %v1135 = vsel %vm1121, %v1103, 0
      %v1138 = vsel %vm1121, %v1104, 0
      %v1141 = vsel %vm1121, %v1105, 0
      %v1144 = vsel %vm1121, %v1106, 0
      %v1147 = vsel %vm1121, %v1107, 0
      %v1150 = vsel %vm1121, %v1108, 0
      %v1153 = vsel %vm1121, %v1109, 0
      %v1156 = vsel %vm1121, %v1110, 0
      %v1159 = vsel %vm1121, %v1111, 0
      %v1162 = vsel %vm1121, %v1112, 0
      %v1165 = vsel %vm1121, %v1113, 0
      %v1168 = vsel %vm1121, %v1114, 0
      %1170 = vmatprep.subr.bf16.mxu0 0
      %1171 = vmatpush1.bf16.msra.mxu0 %v1119
      %1172 = vmatprep.subr.bf16.mxu0 0
      %1173 = vmatpush1.bf16.msra.mxu0 0
      %1174 = vmatprep.subr.bf16.mxu0 0
      %1175 = vmatpush1.bf16.msra.mxu0 0
      %1176 = vmatprep.subr.bf16.mxu0 0
      %1177 = vmatpush1.bf16.msra.mxu0 0
      %1178 = vmatprep.subr.bf16.mxu0 0
      %1179 = vmatpush1.bf16.msra.mxu0 0
      %1180 = vmatprep.subr.bf16.mxu0 0
      %1181 = vmatpush1.bf16.msra.mxu0 0
      %1182 = vmatprep.subr.bf16.mxu0 0
      %1183 = vmatpush1.bf16.msra.mxu0 0
      %1184 = vmatprep.subr.bf16.mxu0 0
      %1185 = vmatpush1.bf16.msra.mxu0 0
      %1186 = vmatprep.subr.bf16.mxu0 0
      %1187 = vmatpush1.bf16.msra.mxu0 0
      %1188 = vmatprep.subr.bf16.mxu0 0
      %1189 = vmatpush1.bf16.msra.mxu0 0
      %1190 = vmatprep.subr.bf16.mxu0 0
      %1191 = vmatpush1.bf16.msra.mxu0 0
      %1192 = vmatprep.subr.bf16.mxu0 0
      %1193 = vmatpush1.bf16.msra.mxu0 0
      %1194 = vmatprep.subr.bf16.mxu0 0
      %1195 = vmatpush1.bf16.msra.mxu0 0
      %1196 = vmatprep.subr.bf16.mxu0 0
      %1197 = vmatpush1.bf16.msra.mxu0 0
      %1198 = vmatprep.subr.bf16.mxu0 0
      %1199 = vmatpush1.bf16.msra.mxu0 0
      %1200 = vmatprep.subr.bf16.mxu0 0
      %1201 = vmatpush1.bf16.msra.mxu0 0
      %1202 = vmatprep.mubr.bf16.mxu0 0
      %1203 = vmatmul.mubr.bf16.gmra.mrb[0].mxu0 %v1123
      %v1204 = vpop.f32.mrb[0].mxu0
      %v1205 = vadd.f32 %v909, %v1204
      %v1206 = vpop.f32.mrb[0].mxu0
      %v1207 = vpop.f32.mrb[0].mxu0
      %v1208 = vadd.f32 %v912, %v1207
      %v1209 = vpop.f32.mrb[0].mxu0
      %1210 = vmatprep.mubr.bf16.mxu0 0
      %1211 = vmatmul.mubr.bf16.gmra.mrb[0].mxu0 %v1126
      %v1212 = vpop.f32.mrb[0].mxu0
      %v1213 = vadd.f32 %v917, %v1212
      %v1214 = vpop.f32.mrb[0].mxu0
      %v1215 = vpop.f32.mrb[0].mxu0
      %v1216 = vadd.f32 %v920, %v1215
      %v1217 = vpop.f32.mrb[0].mxu0
      %1218 = vmatprep.mubr.bf16.mxu0 0
      %1219 = vmatmul.mubr.bf16.gmra.mrb[0].mxu0 %v1129
      %v1220 = vpop.f32.mrb[0].mxu0
      %v1221 = vadd.f32 %v925, %v1220
      %v1222 = vpop.f32.mrb[0].mxu0
      %v1223 = vpop.f32.mrb[0].mxu0
      %v1224 = vadd.f32 %v928, %v1223
      %v1225 = vpop.f32.mrb[0].mxu0
      %1226 = vmatprep.mubr.bf16.mxu0 0
      %1227 = vmatmul.mubr.bf16.gmra.mrb[0].mxu0 %v1132
      %v1228 = vpop.f32.mrb[0].mxu0
      %v1229 = vadd.f32 %v933, %v1228
      %v1230 = vpop.f32.mrb[0].mxu0
      %v1231 = vpop.f32.mrb[0].mxu0
      %v1232 = vadd.f32 %v936, %v1231
      %v1233 = vpop.f32.mrb[0].mxu0
      %1234 = vmatprep.mubr.bf16.mxu0 0
      %1235 = vmatmul.mubr.bf16.gmra.mrb[0].mxu0 %v1135
      %v1236 = vpop.f32.mrb[0].mxu0
      %v1237 = vadd.f32 %v941, %v1236
      %v1238 = vpop.f32.mrb[0].mxu0
      %v1239 = vpop.f32.mrb[0].mxu0
      %v1240 = vadd.f32 %v944, %v1239
      %v1241 = vpop.f32.mrb[0].mxu0
      %1242 = vmatprep.mubr.bf16.mxu0 0
      %1243 = vmatmul.mubr.bf16.gmra.mrb[0].mxu0 %v1138
      %v1244 = vpop.f32.mrb[0].mxu0
      %v1245 = vadd.f32 %v949, %v1244
      %v1246 = vpop.f32.mrb[0].mxu0
      %v1247 = vpop.f32.mrb[0].mxu0
      %v1248 = vadd.f32 %v952, %v1247
      %v1249 = vpop.f32.mrb[0].mxu0
      %1250 = vmatprep.mubr.bf16.mxu0 0
      %1251 = vmatmul.mubr.bf16.gmra.mrb[0].mxu0 %v1141
      %v1252 = vpop.f32.mrb[0].mxu0
      %v1253 = vadd.f32 %v957, %v1252
      %v1254 = vpop.f32.mrb[0].mxu0
      %v1255 = vpop.f32.mrb[0].mxu0
      %v1256 = vadd.f32 %v960, %v1255
      %v1257 = vpop.f32.mrb[0].mxu0
      %1258 = vmatprep.mubr.bf16.mxu0 0
      %1259 = vmatmul.mubr.bf16.gmra.mrb[0].mxu0 %v1144
      %v1260 = vpop.f32.mrb[0].mxu0
      %v1261 = vadd.f32 %v965, %v1260
      %v1262 = vpop.f32.mrb[0].mxu0
      %v1263 = vpop.f32.mrb[0].mxu0
      %v1264 = vadd.f32 %v968, %v1263
      %v1265 = vpop.f32.mrb[0].mxu0
      %1266 = vmatprep.mubr.bf16.mxu0 0
      %1267 = vmatmul.mubr.bf16.gmra.mrb[0].mxu0 %v1147
      %v1268 = vpop.f32.mrb[0].mxu0
      %v1269 = vadd.f32 %v973, %v1268
      %v1270 = vpop.f32.mrb[0].mxu0
      %v1271 = vpop.f32.mrb[0].mxu0
      %v1272 = vadd.f32 %v976, %v1271
      %v1273 = vpop.f32.mrb[0].mxu0
      %1274 = vmatprep.mubr.bf16.mxu0 0
      %1275 = vmatmul.mubr.bf16.gmra.mrb[0].mxu0 %v1150
      %v1276 = vpop.f32.mrb[0].mxu0
      %v1277 = vadd.f32 %v981, %v1276
      %v1278 = vpop.f32.mrb[0].mxu0
      %v1279 = vpop.f32.mrb[0].mxu0
      %v1280 = vadd.f32 %v984, %v1279
      %v1281 = vpop.f32.mrb[0].mxu0
      %1282 = vmatprep.mubr.bf16.mxu0 0
      %1283 = vmatmul.mubr.bf16.gmra.mrb[0].mxu0 %v1153
      %v1284 = vpop.f32.mrb[0].mxu0
      %v1285 = vadd.f32 %v989, %v1284
      %v1286 = vpop.f32.mrb[0].mxu0
      %v1287 = vpop.f32.mrb[0].mxu0
      %v1288 = vadd.f32 %v992, %v1287
      %v1289 = vpop.f32.mrb[0].mxu0
      %1290 = vmatprep.mubr.bf16.mxu0 0
      %1291 = vmatmul.mubr.bf16.gmra.mrb[0].mxu0 %v1156
      %v1292 = vpop.f32.mrb[0].mxu0
      %v1293 = vadd.f32 %v997, %v1292
      %v1294 = vpop.f32.mrb[0].mxu0
      %v1295 = vpop.f32.mrb[0].mxu0
      %v1296 = vadd.f32 %v1000, %v1295
      %v1297 = vpop.f32.mrb[0].mxu0
      %1298 = vmatprep.mubr.bf16.mxu0 0
      %1299 = vmatmul.mubr.bf16.gmra.mrb[0].mxu0 %v1159
      %v1300 = vpop.f32.mrb[0].mxu0
      %v1301 = vadd.f32 %v1005, %v1300
      %v1302 = vpop.f32.mrb[0].mxu0
      %v1303 = vpop.f32.mrb[0].mxu0
      %v1304 = vadd.f32 %v1008, %v1303
      %v1305 = vpop.f32.mrb[0].mxu0
      %1306 = vmatprep.mubr.bf16.mxu0 0
      %1307 = vmatmul.mubr.bf16.gmra.mrb[0].mxu0 %v1162
      %v1308 = vpop.f32.mrb[0].mxu0
      %v1309 = vadd.f32 %v1013, %v1308
      %v1310 = vpop.f32.mrb[0].mxu0
      %v1311 = vpop.f32.mrb[0].mxu0
      %v1312 = vadd.f32 %v1016, %v1311
      %v1313 = vpop.f32.mrb[0].mxu0
      %1314 = vmatprep.mubr.bf16.mxu0 0
      %1315 = vmatmul.mubr.bf16.gmra.mrb[0].mxu0 %v1165
      %v1316 = vpop.f32.mrb[0].mxu0
      %v1317 = vadd.f32 %v1021, %v1316
      %v1318 = vpop.f32.mrb[0].mxu0
      %v1319 = vpop.f32.mrb[0].mxu0
      %v1320 = vadd.f32 %v1024, %v1319
      %v1321 = vpop.f32.mrb[0].mxu0
      %1322 = vmatprep.mubr.bf16.mxu0 0
      %1323 = vmatmul.mubr.bf16.gmra.mrb[0].mxu0 %v1168
      %v1324 = vpop.f32.mrb[0].mxu0
      %v1325 = vadd.f32 %v1029, %v1324
      %v1326 = vpop.f32.mrb[0].mxu0
      %v1327 = vpop.f32.mrb[0].mxu0
      %v1328 = vadd.f32 %v1032, %v1327
      %v1329 = vpop.f32.mrb[0].mxu0
      %1330 = vdwg.mxu0
      %v1331 = vld [vmem:[%s542] sm:$0xf]
      %v1332 = vld [vmem:[%s542 + $0x4] sm:$0xf]
      %v1333 = vld [vmem:[%s9] sm:$0xf]
      %v1334 = vld [vmem:[%s9 + $0x4] sm:$0xf]
      %v1335 = vld [vmem:[%s9 + $0x8] sm:$0xf]
      %v1336 = vld [vmem:[%s9 + $0xc] sm:$0xf]
      %v1337 = vld [vmem:[%s9 + $0x10] sm:$0xf]
      %v1338 = vld [vmem:[%s9 + $0x14] sm:$0xf]
      %v1339 = vld [vmem:[%s9 + $0x18] sm:$0xf]
      %v1340 = vld [vmem:[%s9 + $0x1c] sm:$0xf]
      %v1343 = vunpack.c.l.b16 %v1331
      %v1344 = vunpack.c.l.b16 %v1332
      %v1345 = vpack.c.b16 %v1344, %v1343
      %v1354 = vunpack.c.l.b16 %v1333
      %v1355 = vunpack.c.l.b16 %v1334
      %v1356 = vunpack.c.l.b16 %v1335
      %v1357 = vunpack.c.l.b16 %v1336
      %v1358 = vunpack.c.l.b16 %v1337
      %v1359 = vunpack.c.l.b16 %v1338
      %v1360 = vunpack.c.l.b16 %v1339
      %v1361 = vunpack.c.l.b16 %v1340
      %v1362 = vpack.c.b16 %v1355, %v1354
      %v1363 = vpack.c.b16 %v1357, %v1356
      %v1364 = vpack.c.b16 %v1359, %v1358
      %v1365 = vpack.c.b16 %v1361, %v1360
      %v1371 = vsel %vm825, %v1345, 0
      %1373 = vmatprep.subr.bf16.mxu0 0
      %1374 = vmatpush1.bf16.msra.mxu0 %v1362
      %1375 = vmatprep.subr.bf16.mxu0 0
      %1376 = vmatpush1.bf16.msra.mxu0 %v1363
      %1377 = vmatprep.subr.bf16.mxu0 0
      %1378 = vmatpush1.bf16.msra.mxu0 %v1364
      %1379 = vmatprep.subr.bf16.mxu0 0
      %1380 = vmatpush1.bf16.msra.mxu0 %v1365
      %1381 = vmatprep.subr.bf16.mxu0 0
      %1382 = vmatpush1.bf16.msra.mxu0 0
      %1383 = vmatprep.subr.bf16.mxu0 0
      %1384 = vmatpush1.bf16.msra.mxu0 0
      %1385 = vmatprep.subr.bf16.mxu0 0
      %1386 = vmatpush1.bf16.msra.mxu0 0
      %1387 = vmatprep.subr.bf16.mxu0 0
      %1388 = vmatpush1.bf16.msra.mxu0 0
      %1389 = vmatprep.subr.bf16.mxu0 0
      %1390 = vmatpush1.bf16.msra.mxu0 0
      %1391 = vmatprep.subr.bf16.mxu0 0
      %1392 = vmatpush1.bf16.msra.mxu0 0
      %1393 = vmatprep.subr.bf16.mxu0 0
      %1394 = vmatpush1.bf16.msra.mxu0 0
      %1395 = vmatprep.subr.bf16.mxu0 0
      %1396 = vmatpush1.bf16.msra.mxu0 0
      %1397 = vmatprep.subr.bf16.mxu0 0
      %1398 = vmatpush1.bf16.msra.mxu0 0
      %1399 = vmatprep.subr.bf16.mxu0 0
      %1400 = vmatpush1.bf16.msra.mxu0 0
      %1401 = vmatprep.subr.bf16.mxu0 0
      %1402 = vmatpush1.bf16.msra.mxu0 0
      %1403 = vmatprep.subr.bf16.mxu0 0
      %1404 = vmatpush1.bf16.msra.mxu0 0
      %1405 = vmatprep.mubr.bf16.mxu0 0
      %1406 = vmatmul.mubr.bf16.gmra.mrb[0].mxu0 %v1371
      %v1407 = vpop.f32.mrb[0].mxu0
      %v1408 = vadd.f32 0.0, %v1407
      %v1409 = vpop.f32.mrb[0].mxu0
      %v1410 = vpop.f32.mrb[0].mxu0
      %v1411 = vadd.f32 0.0, %v1410
      %v1412 = vpop.f32.mrb[0].mxu0
      %1413 = vdwg.mxu0
      %v1414 = vld [vmem:[%s5] sm:$0xf]
      %v1415 = vld [vmem:[%s5 + $0x4] sm:$0xf]
      %v1416 = vld [vmem:[%s5 + $0x8] sm:$0xf]
      %v1417 = vld [vmem:[%s5 + $0xc] sm:$0xf]
      %v1418 = vld [vmem:[%s5 + $0x10] sm:$0xf]
      %v1419 = vld [vmem:[%s5 + $0x14] sm:$0xf]
      %v1420 = vld [vmem:[%s5 + $0x18] sm:$0xf]
      %v1421 = vld [vmem:[%s5 + $0x1c] sm:$0xf]
      %v1422 = vld [vmem:[%s5 + $0x20] sm:$0xf]
      %v1423 = vld [vmem:[%s5 + $0x24] sm:$0xf]
      %v1424 = vld [vmem:[%s5 + $0x28] sm:$0xf]
      %v1425 = vld [vmem:[%s5 + $0x2c] sm:$0xf]
      %v1426 = vld [vmem:[%s5 + $0x30] sm:$0xf]
      %v1427 = vld [vmem:[%s5 + $0x34] sm:$0xf]
      %v1428 = vld [vmem:[%s5 + $0x38] sm:$0xf]
      %v1429 = vld [vmem:[%s5 + $0x3c] sm:$0xf]
      %v1430 = vld [vmem:[%s5 + $0x40] sm:$0xf]
      %v1431 = vld [vmem:[%s5 + $0x44] sm:$0xf]
      %v1432 = vld [vmem:[%s5 + $0x48] sm:$0xf]
      %v1433 = vld [vmem:[%s5 + $0x4c] sm:$0xf]
      %v1434 = vld [vmem:[%s5 + $0x50] sm:$0xf]
      %v1435 = vld [vmem:[%s5 + $0x54] sm:$0xf]
      %v1436 = vld [vmem:[%s5 + $0x58] sm:$0xf]
      %v1437 = vld [vmem:[%s5 + $0x5c] sm:$0xf]
      %v1438 = vld [vmem:[%s5 + $0x60] sm:$0xf]
      %v1439 = vld [vmem:[%s5 + $0x64] sm:$0xf]
      %v1440 = vld [vmem:[%s5 + $0x68] sm:$0xf]
      %v1441 = vld [vmem:[%s5 + $0x6c] sm:$0xf]
      %v1442 = vld [vmem:[%s5 + $0x70] sm:$0xf]
      %v1443 = vld [vmem:[%s5 + $0x74] sm:$0xf]
      %v1444 = vld [vmem:[%s5 + $0x78] sm:$0xf]
      %v1445 = vld [vmem:[%s5 + $0x7c] sm:$0xf]
      %v1446 = vpack.c.bf16 %v1411, %v1408
      %v1479 = vunpack.c.l.b16 %v1414
      %v1480 = vunpack.c.l.b16 %v1415
      %v1481 = vunpack.c.l.b16 %v1416
      %v1482 = vunpack.c.l.b16 %v1417
      %v1483 = vunpack.c.l.b16 %v1418
      %v1484 = vunpack.c.l.b16 %v1419
      %v1485 = vunpack.c.l.b16 %v1420
      %v1486 = vunpack.c.l.b16 %v1421
      %v1487 = vunpack.c.l.b16 %v1422
      %v1488 = vunpack.c.l.b16 %v1423
      %v1489 = vunpack.c.l.b16 %v1424
      %v1490 = vunpack.c.l.b16 %v1425
      %v1491 = vunpack.c.l.b16 %v1426
      %v1492 = vunpack.c.l.b16 %v1427
      %v1493 = vunpack.c.l.b16 %v1428
      %v1494 = vunpack.c.l.b16 %v1429
      %v1495 = vunpack.c.l.b16 %v1430
      %v1496 = vunpack.c.l.b16 %v1431
      %v1497 = vunpack.c.l.b16 %v1432
      %v1498 = vunpack.c.l.b16 %v1433
      %v1499 = vunpack.c.l.b16 %v1434
      %v1500 = vunpack.c.l.b16 %v1435
      %v1501 = vunpack.c.l.b16 %v1436
      %v1502 = vunpack.c.l.b16 %v1437
      %v1503 = vunpack.c.l.b16 %v1438
      %v1504 = vunpack.c.l.b16 %v1439
      %v1505 = vunpack.c.l.b16 %v1440
      %v1506 = vunpack.c.l.b16 %v1441
      %v1507 = vunpack.c.l.b16 %v1442
      %v1508 = vunpack.c.l.b16 %v1443
      %v1509 = vunpack.c.l.b16 %v1444
      %v1510 = vunpack.c.l.b16 %v1445
      %v1511 = vpack.c.b16 %v1480, %v1479
      %v1512 = vpack.c.b16 %v1482, %v1481
      %v1513 = vpack.c.b16 %v1484, %v1483
      %v1514 = vpack.c.b16 %v1486, %v1485
      %v1515 = vpack.c.b16 %v1488, %v1487
      %v1516 = vpack.c.b16 %v1490, %v1489
      %v1517 = vpack.c.b16 %v1492, %v1491
      %v1518 = vpack.c.b16 %v1494, %v1493
      %v1519 = vpack.c.b16 %v1496, %v1495
      %v1520 = vpack.c.b16 %v1498, %v1497
      %v1521 = vpack.c.b16 %v1500, %v1499
      %v1522 = vpack.c.b16 %v1502, %v1501
      %v1523 = vpack.c.b16 %v1504, %v1503
      %v1524 = vpack.c.b16 %v1506, %v1505
      %v1525 = vpack.c.b16 %v1508, %v1507
      %v1526 = vpack.c.b16 %v1510, %v1509
      %v1528 = vsel %vm1121, %v1511, 0
      %v1531 = vsel %vm1121, %v1512, 0
      %v1534 = vsel %vm1121, %v1513, 0
      %v1537 = vsel %vm1121, %v1514, 0
      %v1540 = vsel %vm1121, %v1515, 0
      %v1543 = vsel %vm1121, %v1516, 0
      %v1546 = vsel %vm1121, %v1517, 0
      %v1549 = vsel %vm1121, %v1518, 0
      %v1552 = vsel %vm1121, %v1519, 0
      %v1555 = vsel %vm1121, %v1520, 0
      %v1558 = vsel %vm1121, %v1521, 0
      %v1561 = vsel %vm1121, %v1522, 0
      %v1564 = vsel %vm1121, %v1523, 0
      %v1567 = vsel %vm1121, %v1524, 0
      %v1570 = vsel %vm1121, %v1525, 0
      %v1573 = vsel %vm1121, %v1526, 0
      %1575 = vmatprep.subr.bf16.mxu0 0
      %1576 = vmatpush1.bf16.msra.mxu0 %v1446
      %1577 = vmatprep.subr.bf16.mxu0 0
      %1578 = vmatpush1.bf16.msra.mxu0 0
      %1579 = vmatprep.subr.bf16.mxu0 0
      %1580 = vmatpush1.bf16.msra.mxu0 0
      %1581 = vmatprep.subr.bf16.mxu0 0
      %1582 = vmatpush1.bf16.msra.mxu0 0
      %1583 = vmatprep.subr.bf16.mxu0 0
      %1584 = vmatpush1.bf16.msra.mxu0 0
      %1585 = vmatprep.subr.bf16.mxu0 0
      %1586 = vmatpush1.bf16.msra.mxu0 0
      %1587 = vmatprep.subr.bf16.mxu0 0
      %1588 = vmatpush1.bf16.msra.mxu0 0
      %1589 = vmatprep.subr.bf16.mxu0 0
      %1590 = vmatpush1.bf16.msra.mxu0 0
      %1591 = vmatprep.subr.bf16.mxu0 0
      %1592 = vmatpush1.bf16.msra.mxu0 0
      %1593 = vmatprep.subr.bf16.mxu0 0
      %1594 = vmatpush1.bf16.msra.mxu0 0
      %1595 = vmatprep.subr.bf16.mxu0 0
      %1596 = vmatpush1.bf16.msra.mxu0 0
      %1597 = vmatprep.subr.bf16.mxu0 0
      %1598 = vmatpush1.bf16.msra.mxu0 0
      %1599 = vmatprep.subr.bf16.mxu0 0
      %1600 = vmatpush1.bf16.msra.mxu0 0
      %1601 = vmatprep.subr.bf16.mxu0 0
      %1602 = vmatpush1.bf16.msra.mxu0 0
      %1603 = vmatprep.subr.bf16.mxu0 0
      %1604 = vmatpush1.bf16.msra.mxu0 0
      %1605 = vmatprep.subr.bf16.mxu0 0
      %1606 = vmatpush1.bf16.msra.mxu0 0
      %1607 = vmatprep.mubr.bf16.mxu0 0
      %1608 = vmatmul.mubr.bf16.gmra.mrb[0].mxu0 %v1528
      %v1609 = vpop.f32.mrb[0].mxu0
      %v1610 = vadd.f32 0.0, %v1609
      %v1611 = vpop.f32.mrb[0].mxu0
      %v1612 = vpop.f32.mrb[0].mxu0
      %v1613 = vadd.f32 0.0, %v1612
      %v1614 = vpop.f32.mrb[0].mxu0
      %1615 = vmatprep.mubr.bf16.mxu0 0
      %1616 = vmatmul.mubr.bf16.gmra.mrb[0].mxu0 %v1531
      %v1617 = vpop.f32.mrb[0].mxu0
      %v1618 = vadd.f32 0.0, %v1617
      %v1619 = vpop.f32.mrb[0].mxu0
      %v1620 = vpop.f32.mrb[0].mxu0
      %v1621 = vadd.f32 0.0, %v1620
      %v1622 = vpop.f32.mrb[0].mxu0
      %1623 = vmatprep.mubr.bf16.mxu0 0
      %1624 = vmatmul.mubr.bf16.gmra.mrb[0].mxu0 %v1534
      %v1625 = vpop.f32.mrb[0].mxu0
      %v1626 = vadd.f32 0.0, %v1625
      %v1627 = vpop.f32.mrb[0].mxu0
      %v1628 = vpop.f32.mrb[0].mxu0
      %v1629 = vadd.f32 0.0, %v1628
      %v1630 = vpop.f32.mrb[0].mxu0
      %1631 = vmatprep.mubr.bf16.mxu0 0
      %1632 = vmatmul.mubr.bf16.gmra.mrb[0].mxu0 %v1537
      %v1633 = vpop.f32.mrb[0].mxu0
      %v1634 = vadd.f32 0.0, %v1633
      %v1635 = vpop.f32.mrb[0].mxu0
      %v1636 = vpop.f32.mrb[0].mxu0
      %v1637 = vadd.f32 0.0, %v1636
      %v1638 = vpop.f32.mrb[0].mxu0
      %1639 = vmatprep.mubr.bf16.mxu0 0
      %1640 = vmatmul.mubr.bf16.gmra.mrb[0].mxu0 %v1540
      %v1641 = vpop.f32.mrb[0].mxu0
      %v1642 = vadd.f32 0.0, %v1641
      %v1643 = vpop.f32.mrb[0].mxu0
      %v1644 = vpop.f32.mrb[0].mxu0
      %v1645 = vadd.f32 0.0, %v1644
      %v1646 = vpop.f32.mrb[0].mxu0
      %1647 = vmatprep.mubr.bf16.mxu0 0
      %1648 = vmatmul.mubr.bf16.gmra.mrb[0].mxu0 %v1543
      %v1649 = vpop.f32.mrb[0].mxu0
      %v1650 = vadd.f32 0.0, %v1649
      %v1651 = vpop.f32.mrb[0].mxu0
      %v1652 = vpop.f32.mrb[0].mxu0
      %v1653 = vadd.f32 0.0, %v1652
      %v1654 = vpop.f32.mrb[0].mxu0
      %1655 = vmatprep.mubr.bf16.mxu0 0
      %1656 = vmatmul.mubr.bf16.gmra.mrb[0].mxu0 %v1546
      %v1657 = vpop.f32.mrb[0].mxu0
      %v1658 = vadd.f32 0.0, %v1657
      %v1659 = vpop.f32.mrb[0].mxu0
      %v1660 = vpop.f32.mrb[0].mxu0
      %v1661 = vadd.f32 0.0, %v1660
      %v1662 = vpop.f32.mrb[0].mxu0
      %1663 = vmatprep.mubr.bf16.mxu0 0
      %1664 = vmatmul.mubr.bf16.gmra.mrb[0].mxu0 %v1549
      %v1665 = vpop.f32.mrb[0].mxu0
      %v1666 = vadd.f32 0.0, %v1665
      %v1667 = vpop.f32.mrb[0].mxu0
      %v1668 = vpop.f32.mrb[0].mxu0
      %v1669 = vadd.f32 0.0, %v1668
      %v1670 = vpop.f32.mrb[0].mxu0
      %1671 = vmatprep.mubr.bf16.mxu0 0
      %1672 = vmatmul.mubr.bf16.gmra.mrb[0].mxu0 %v1552
      %v1673 = vpop.f32.mrb[0].mxu0
      %v1674 = vadd.f32 0.0, %v1673
      %v1675 = vpop.f32.mrb[0].mxu0
      %v1676 = vpop.f32.mrb[0].mxu0
      %v1677 = vadd.f32 0.0, %v1676
      %v1678 = vpop.f32.mrb[0].mxu0
      %1679 = vmatprep.mubr.bf16.mxu0 0
      %1680 = vmatmul.mubr.bf16.gmra.mrb[0].mxu0 %v1555
      %v1681 = vpop.f32.mrb[0].mxu0
      %v1682 = vadd.f32 0.0, %v1681
      %v1683 = vpop.f32.mrb[0].mxu0
      %v1684 = vpop.f32.mrb[0].mxu0
      %v1685 = vadd.f32 0.0, %v1684
      %v1686 = vpop.f32.mrb[0].mxu0
      %1687 = vmatprep.mubr.bf16.mxu0 0
      %1688 = vmatmul.mubr.bf16.gmra.mrb[0].mxu0 %v1558
      %v1689 = vpop.f32.mrb[0].mxu0
      %v1690 = vadd.f32 0.0, %v1689
      %v1691 = vpop.f32.mrb[0].mxu0
      %v1692 = vpop.f32.mrb[0].mxu0
      %v1693 = vadd.f32 0.0, %v1692
      %v1694 = vpop.f32.mrb[0].mxu0
      %1695 = vmatprep.mubr.bf16.mxu0 0
      %1696 = vmatmul.mubr.bf16.gmra.mrb[0].mxu0 %v1561
      %v1697 = vpop.f32.mrb[0].mxu0
      %v1698 = vadd.f32 0.0, %v1697
      %v1699 = vpop.f32.mrb[0].mxu0
      %v1700 = vpop.f32.mrb[0].mxu0
      %v1701 = vadd.f32 0.0, %v1700
      %v1702 = vpop.f32.mrb[0].mxu0
      %1703 = vmatprep.mubr.bf16.mxu0 0
      %1704 = vmatmul.mubr.bf16.gmra.mrb[0].mxu0 %v1564
      %v1705 = vpop.f32.mrb[0].mxu0
      %v1706 = vadd.f32 0.0, %v1705
      %v1707 = vpop.f32.mrb[0].mxu0
      %v1708 = vpop.f32.mrb[0].mxu0
      %v1709 = vadd.f32 0.0, %v1708
      %v1710 = vpop.f32.mrb[0].mxu0
      %1711 = vmatprep.mubr.bf16.mxu0 0
      %1712 = vmatmul.mubr.bf16.gmra.mrb[0].mxu0 %v1567
      %v1713 = vpop.f32.mrb[0].mxu0
      %v1714 = vadd.f32 0.0, %v1713
      %v1715 = vpop.f32.mrb[0].mxu0
      %v1716 = vpop.f32.mrb[0].mxu0
      %v1717 = vadd.f32 0.0, %v1716
      %v1718 = vpop.f32.mrb[0].mxu0
      %1719 = vmatprep.mubr.bf16.mxu0 0
      %1720 = vmatmul.mubr.bf16.gmra.mrb[0].mxu0 %v1570
      %v1721 = vpop.f32.mrb[0].mxu0
      %v1722 = vadd.f32 0.0, %v1721
      %v1723 = vpop.f32.mrb[0].mxu0
      %v1724 = vpop.f32.mrb[0].mxu0
      %v1725 = vadd.f32 0.0, %v1724
      %v1726 = vpop.f32.mrb[0].mxu0
      %1727 = vmatprep.mubr.bf16.mxu0 0
      %1728 = vmatmul.mubr.bf16.gmra.mrb[0].mxu0 %v1573
      %v1729 = vpop.f32.mrb[0].mxu0
      %v1730 = vadd.f32 0.0, %v1729
      %v1731 = vpop.f32.mrb[0].mxu0
      %v1732 = vpop.f32.mrb[0].mxu0
      %v1733 = vadd.f32 0.0, %v1732
      %v1734 = vpop.f32.mrb[0].mxu0
      %1735 = vdwg.mxu0
      %v1736 = vadd.f32 %v1205, %v1610
      %v1737 = vadd.f32 %v1208, %v1613
      %v1738 = vadd.f32 %v1213, %v1618
      %v1739 = vadd.f32 %v1216, %v1621
      %v1740 = vadd.f32 %v1221, %v1626
      %v1741 = vadd.f32 %v1224, %v1629
      %v1742 = vadd.f32 %v1229, %v1634
      %v1743 = vadd.f32 %v1232, %v1637
      %v1744 = vadd.f32 %v1237, %v1642
      %v1745 = vadd.f32 %v1240, %v1645
      %v1746 = vadd.f32 %v1245, %v1650
      %v1747 = vadd.f32 %v1248, %v1653
      %v1748 = vadd.f32 %v1253, %v1658
      %v1749 = vadd.f32 %v1256, %v1661
      %v1750 = vadd.f32 %v1261, %v1666
      %v1751 = vadd.f32 %v1264, %v1669
      %v1752 = vadd.f32 %v1269, %v1674
      %v1753 = vadd.f32 %v1272, %v1677
      %v1754 = vadd.f32 %v1277, %v1682
      %v1755 = vadd.f32 %v1280, %v1685
      %v1756 = vadd.f32 %v1285, %v1690
      %v1757 = vadd.f32 %v1288, %v1693
      %v1758 = vadd.f32 %v1293, %v1698
      %v1759 = vadd.f32 %v1296, %v1701
      %v1760 = vadd.f32 %v1301, %v1706
      %v1761 = vadd.f32 %v1304, %v1709
      %v1762 = vadd.f32 %v1309, %v1714
      %v1763 = vadd.f32 %v1312, %v1717
      %v1764 = vadd.f32 %v1317, %v1722
      %v1765 = vadd.f32 %v1320, %v1725
      %v1766 = vadd.f32 %v1325, %v1730
      %v1767 = vadd.f32 %v1328, %v1733
      %v1768 = vld [vmem:[%s546] sm:$0x3]
      %v1769 = vld [vmem:[%s10] sm:$0xf]
      %v1770 = vld [vmem:[%s10 + $0x4] sm:$0xf]
      %v1771 = vld [vmem:[%s10 + $0x8] sm:$0xf]
      %v1772 = vld [vmem:[%s10 + $0xc] sm:$0xf]
      %v1773 = vld [vmem:[%s10 + $0x10] sm:$0xf]
      %v1774 = vld [vmem:[%s10 + $0x14] sm:$0xf]
      %v1775 = vld [vmem:[%s10 + $0x18] sm:$0xf]
      %v1776 = vld [vmem:[%s10 + $0x1c] sm:$0xf]
      %v1777 = vld [vmem:[%s10 + $0x20] sm:$0xf]
      %v1778 = vld [vmem:[%s10 + $0x24] sm:$0xf]
      %v1779 = vld [vmem:[%s10 + $0x28] sm:$0xf]
      %v1780 = vld [vmem:[%s10 + $0x2c] sm:$0xf]
      %v1781 = vld [vmem:[%s10 + $0x30] sm:$0xf]
      %v1782 = vld [vmem:[%s10 + $0x34] sm:$0xf]
      %v1783 = vld [vmem:[%s10 + $0x38] sm:$0xf]
      %v1784 = vld [vmem:[%s10 + $0x3c] sm:$0xf]
      %v1801 = vunpack.c.l.b16 %v1769
      %v1802 = vunpack.c.l.b16 %v1770
      %v1803 = vunpack.c.l.b16 %v1771
      %v1804 = vunpack.c.l.b16 %v1772
      %v1805 = vunpack.c.l.b16 %v1773
      %v1806 = vunpack.c.l.b16 %v1774
      %v1807 = vunpack.c.l.b16 %v1775
      %v1808 = vunpack.c.l.b16 %v1776
      %v1809 = vunpack.c.l.b16 %v1777
      %v1810 = vunpack.c.l.b16 %v1778
      %v1811 = vunpack.c.l.b16 %v1779
      %v1812 = vunpack.c.l.b16 %v1780
      %v1813 = vunpack.c.l.b16 %v1781
      %v1814 = vunpack.c.l.b16 %v1782
      %v1815 = vunpack.c.l.b16 %v1783
      %v1816 = vunpack.c.l.b16 %v1784
      %v1817 = vpack.c.b16 %v1802, %v1801
      %v1818 = vpack.c.b16 %v1804, %v1803
      %v1819 = vpack.c.b16 %v1806, %v1805
      %v1820 = vpack.c.b16 %v1808, %v1807
      %v1821 = vpack.c.b16 %v1810, %v1809
      %v1822 = vpack.c.b16 %v1812, %v1811
      %v1823 = vpack.c.b16 %v1814, %v1813
      %v1824 = vpack.c.b16 %v1816, %v1815
      %1833 = vmatprep.subr.bf16.mxu0 0
      %1834 = vmatpush1.bf16.msra.mxu0 %v1817
      %1835 = vmatprep.subr.bf16.mxu0 0
      %1836 = vmatpush1.bf16.msra.mxu0 %v1818
      %1837 = vmatprep.subr.bf16.mxu0 0
      %1838 = vmatpush1.bf16.msra.mxu0 %v1819
      %1839 = vmatprep.subr.bf16.mxu0 0
      %1840 = vmatpush1.bf16.msra.mxu0 %v1820
      %1841 = vmatprep.subr.bf16.mxu0 0
      %1842 = vmatpush1.bf16.msra.mxu0 %v1821
      %1843 = vmatprep.subr.bf16.mxu0 0
      %1844 = vmatpush1.bf16.msra.mxu0 %v1822
      %1845 = vmatprep.subr.bf16.mxu0 0
      %1846 = vmatpush1.bf16.msra.mxu0 %v1823
      %1847 = vmatprep.subr.bf16.mxu0 0
      %1848 = vmatpush1.bf16.msra.mxu0 %v1824
      %1849 = vmatprep.subr.bf16.mxu0 0
      %1850 = vmatpush1.bf16.msra.mxu0 0
      %1851 = vmatprep.subr.bf16.mxu0 0
      %1852 = vmatpush1.bf16.msra.mxu0 0
      %1853 = vmatprep.subr.bf16.mxu0 0
      %1854 = vmatpush1.bf16.msra.mxu0 0
      %1855 = vmatprep.subr.bf16.mxu0 0
      %1856 = vmatpush1.bf16.msra.mxu0 0
      %1857 = vmatprep.subr.bf16.mxu0 0
      %1858 = vmatpush1.bf16.msra.mxu0 0
      %1859 = vmatprep.subr.bf16.mxu0 0
      %1860 = vmatpush1.bf16.msra.mxu0 0
      %1861 = vmatprep.subr.bf16.mxu0 0
      %1862 = vmatpush1.bf16.msra.mxu0 0
      %1863 = vmatprep.subr.bf16.mxu0 0
      %1864 = vmatpush1.bf16.msra.mxu0 0
      %1865 = vmatprep.mubr.bf16.mxu0 0
      %1866 = vmatmul.mubr.bf16.gmra.mrb[0].mxu0 %v1768
      %v1867 = vpop.f32.mrb[0].mxu0
      %v1868 = vadd.f32 0.0, %v1867
      %v1869 = vpop.f32.mrb[0].mxu0
      %v1870 = vpop.f32.mrb[0].mxu0
      %v1871 = vpop.f32.mrb[0].mxu0
      %1872 = vdwg.mxu0
      %v1873 = vld [vmem:[%s6] sm:$0xf]
      %v1874 = vld [vmem:[%s6 + $0x4] sm:$0xf]
      %v1875 = vld [vmem:[%s6 + $0x8] sm:$0xf]
      %v1876 = vld [vmem:[%s6 + $0xc] sm:$0xf]
      %v1877 = vld [vmem:[%s6 + $0x10] sm:$0xf]
      %v1878 = vld [vmem:[%s6 + $0x14] sm:$0xf]
      %v1879 = vld [vmem:[%s6 + $0x18] sm:$0xf]
      %v1880 = vld [vmem:[%s6 + $0x1c] sm:$0xf]
      %v1881 = vld [vmem:[%s6 + $0x20] sm:$0xf]
      %v1882 = vld [vmem:[%s6 + $0x24] sm:$0xf]
      %v1883 = vld [vmem:[%s6 + $0x28] sm:$0xf]
      %v1884 = vld [vmem:[%s6 + $0x2c] sm:$0xf]
      %v1885 = vld [vmem:[%s6 + $0x30] sm:$0xf]
      %v1886 = vld [vmem:[%s6 + $0x34] sm:$0xf]
      %v1887 = vld [vmem:[%s6 + $0x38] sm:$0xf]
      %v1888 = vld [vmem:[%s6 + $0x3c] sm:$0xf]
      %v1889 = vld [vmem:[%s6 + $0x40] sm:$0xf]
      %v1890 = vld [vmem:[%s6 + $0x44] sm:$0xf]
      %v1891 = vld [vmem:[%s6 + $0x48] sm:$0xf]
      %v1892 = vld [vmem:[%s6 + $0x4c] sm:$0xf]
      %v1893 = vld [vmem:[%s6 + $0x50] sm:$0xf]
      %v1894 = vld [vmem:[%s6 + $0x54] sm:$0xf]
      %v1895 = vld [vmem:[%s6 + $0x58] sm:$0xf]
      %v1896 = vld [vmem:[%s6 + $0x5c] sm:$0xf]
      %v1897 = vld [vmem:[%s6 + $0x60] sm:$0xf]
      %v1898 = vld [vmem:[%s6 + $0x64] sm:$0xf]
      %v1899 = vld [vmem:[%s6 + $0x68] sm:$0xf]
      %v1900 = vld [vmem:[%s6 + $0x6c] sm:$0xf]
      %v1901 = vld [vmem:[%s6 + $0x70] sm:$0xf]
      %v1902 = vld [vmem:[%s6 + $0x74] sm:$0xf]
      %v1903 = vld [vmem:[%s6 + $0x78] sm:$0xf]
      %v1904 = vld [vmem:[%s6 + $0x7c] sm:$0xf]
      %v1905 = vpack.c.bf16 %v1868, %v1868
      %v1938 = vunpack.c.l.b16 %v1873
      %v1939 = vunpack.c.l.b16 %v1874
      %v1940 = vunpack.c.l.b16 %v1875
      %v1941 = vunpack.c.l.b16 %v1876
      %v1942 = vunpack.c.l.b16 %v1877
      %v1943 = vunpack.c.l.b16 %v1878
      %v1944 = vunpack.c.l.b16 %v1879
      %v1945 = vunpack.c.l.b16 %v1880
      %v1946 = vunpack.c.l.b16 %v1881
      %v1947 = vunpack.c.l.b16 %v1882
      %v1948 = vunpack.c.l.b16 %v1883
      %v1949 = vunpack.c.l.b16 %v1884
      %v1950 = vunpack.c.l.b16 %v1885
      %v1951 = vunpack.c.l.b16 %v1886
      %v1952 = vunpack.c.l.b16 %v1887
      %v1953 = vunpack.c.l.b16 %v1888
      %v1954 = vunpack.c.l.b16 %v1889
      %v1955 = vunpack.c.l.b16 %v1890
      %v1956 = vunpack.c.l.b16 %v1891
      %v1957 = vunpack.c.l.b16 %v1892
      %v1958 = vunpack.c.l.b16 %v1893
      %v1959 = vunpack.c.l.b16 %v1894
      %v1960 = vunpack.c.l.b16 %v1895
      %v1961 = vunpack.c.l.b16 %v1896
      %v1962 = vunpack.c.l.b16 %v1897
      %v1963 = vunpack.c.l.b16 %v1898
      %v1964 = vunpack.c.l.b16 %v1899
      %v1965 = vunpack.c.l.b16 %v1900
      %v1966 = vunpack.c.l.b16 %v1901
      %v1967 = vunpack.c.l.b16 %v1902
      %v1968 = vunpack.c.l.b16 %v1903
      %v1969 = vunpack.c.l.b16 %v1904
      %v1970 = vpack.c.b16 %v1939, %v1938
      %v1971 = vpack.c.b16 %v1941, %v1940
      %v1972 = vpack.c.b16 %v1943, %v1942
      %v1973 = vpack.c.b16 %v1945, %v1944
      %v1974 = vpack.c.b16 %v1947, %v1946
      %v1975 = vpack.c.b16 %v1949, %v1948
      %v1976 = vpack.c.b16 %v1951, %v1950
      %v1977 = vpack.c.b16 %v1953, %v1952
      %v1978 = vpack.c.b16 %v1955, %v1954
      %v1979 = vpack.c.b16 %v1957, %v1956
      %v1980 = vpack.c.b16 %v1959, %v1958
      %v1981 = vpack.c.b16 %v1961, %v1960
      %v1982 = vpack.c.b16 %v1963, %v1962
      %v1983 = vpack.c.b16 %v1965, %v1964
      %v1984 = vpack.c.b16 %v1967, %v1966
      %v1985 = vpack.c.b16 %v1969, %v1968
      %vm1986 = vcmask 31744
      %v1988 = vsel %vm1986, %v1970, 0
      %v1991 = vsel %vm1986, %v1971, 0
      %v1994 = vsel %vm1986, %v1972, 0
      %v1997 = vsel %vm1986, %v1973, 0
      %v2000 = vsel %vm1986, %v1974, 0
      %v2003 = vsel %vm1986, %v1975, 0
      %v2006 = vsel %vm1986, %v1976, 0
      %v2009 = vsel %vm1986, %v1977, 0
      %v2012 = vsel %vm1986, %v1978, 0
      %v2015 = vsel %vm1986, %v1979, 0
      %v2018 = vsel %vm1986, %v1980, 0
      %v2021 = vsel %vm1986, %v1981, 0
      %v2024 = vsel %vm1986, %v1982, 0
      %v2027 = vsel %vm1986, %v1983, 0
      %v2030 = vsel %vm1986, %v1984, 0
      %v2033 = vsel %vm1986, %v1985, 0
      %vm2035 = vcmask 1041408
      %v2037 = vsel %vm2035, %v1905, 0
      %2039 = vmatprep.subr.bf16.mxu0 0
      %2040 = vmatpush1.bf16.msra.mxu0 %v2037
      %2041 = vmatprep.subr.bf16.mxu0 0
      %2042 = vmatpush1.bf16.msra.mxu0 0
      %2043 = vmatprep.subr.bf16.mxu0 0
      %2044 = vmatpush1.bf16.msra.mxu0 0
      %2045 = vmatprep.subr.bf16.mxu0 0
      %2046 = vmatpush1.bf16.msra.mxu0 0
      %2047 = vmatprep.subr.bf16.mxu0 0
      %2048 = vmatpush1.bf16.msra.mxu0 0
      %2049 = vmatprep.subr.bf16.mxu0 0
      %2050 = vmatpush1.bf16.msra.mxu0 0
      %2051 = vmatprep.subr.bf16.mxu0 0
      %2052 = vmatpush1.bf16.msra.mxu0 0
      %2053 = vmatprep.subr.bf16.mxu0 0
      %2054 = vmatpush1.bf16.msra.mxu0 0
      %2055 = vmatprep.subr.bf16.mxu0 0
      %2056 = vmatpush1.bf16.msra.mxu0 0
      %2057 = vmatprep.subr.bf16.mxu0 0
      %2058 = vmatpush1.bf16.msra.mxu0 0
      %2059 = vmatprep.subr.bf16.mxu0 0
      %2060 = vmatpush1.bf16.msra.mxu0 0
      %2061 = vmatprep.subr.bf16.mxu0 0
      %2062 = vmatpush1.bf16.msra.mxu0 0
      %2063 = vmatprep.subr.bf16.mxu0 0
      %2064 = vmatpush1.bf16.msra.mxu0 0
      %2065 = vmatprep.subr.bf16.mxu0 0
      %2066 = vmatpush1.bf16.msra.mxu0 0
      %2067 = vmatprep.subr.bf16.mxu0 0
      %2068 = vmatpush1.bf16.msra.mxu0 0
      %2069 = vmatprep.subr.bf16.mxu0 0
      %2070 = vmatpush1.bf16.msra.mxu0 0
      %2071 = vmatprep.mubr.bf16.mxu0 0
      %2072 = vmatmul.mubr.bf16.gmra.mrb[0].mxu0 %v1988
      %v2073 = vpop.f32.mrb[0].mxu0
      %v2074 = vadd.f32 0.0, %v2073
      %v2075 = vpop.f32.mrb[0].mxu0
      %v2076 = vpop.f32.mrb[0].mxu0
      %v2077 = vadd.f32 0.0, %v2076
      %v2078 = vpop.f32.mrb[0].mxu0
      %2079 = vmatprep.mubr.bf16.mxu0 0
      %2080 = vmatmul.mubr.bf16.gmra.mrb[0].mxu0 %v1991
      %v2081 = vpop.f32.mrb[0].mxu0
      %v2082 = vadd.f32 0.0, %v2081
      %v2083 = vpop.f32.mrb[0].mxu0
      %v2084 = vpop.f32.mrb[0].mxu0
      %v2085 = vadd.f32 0.0, %v2084
      %v2086 = vpop.f32.mrb[0].mxu0
      %2087 = vmatprep.mubr.bf16.mxu0 0
      %2088 = vmatmul.mubr.bf16.gmra.mrb[0].mxu0 %v1994
      %v2089 = vpop.f32.mrb[0].mxu0
      %v2090 = vadd.f32 0.0, %v2089
      %v2091 = vpop.f32.mrb[0].mxu0
      %v2092 = vpop.f32.mrb[0].mxu0
      %v2093 = vadd.f32 0.0, %v2092
      %v2094 = vpop.f32.mrb[0].mxu0
      %2095 = vmatprep.mubr.bf16.mxu0 0
      %2096 = vmatmul.mubr.bf16.gmra.mrb[0].mxu0 %v1997
      %v2097 = vpop.f32.mrb[0].mxu0
      %v2098 = vadd.f32 0.0, %v2097
      %v2099 = vpop.f32.mrb[0].mxu0
      %v2100 = vpop.f32.mrb[0].mxu0
      %v2101 = vadd.f32 0.0, %v2100
      %v2102 = vpop.f32.mrb[0].mxu0
      %2103 = vmatprep.mubr.bf16.mxu0 0
      %2104 = vmatmul.mubr.bf16.gmra.mrb[0].mxu0 %v2000
      %v2105 = vpop.f32.mrb[0].mxu0
      %v2106 = vadd.f32 0.0, %v2105
      %v2107 = vpop.f32.mrb[0].mxu0
      %v2108 = vpop.f32.mrb[0].mxu0
      %v2109 = vadd.f32 0.0, %v2108
      %v2110 = vpop.f32.mrb[0].mxu0
      %2111 = vmatprep.mubr.bf16.mxu0 0
      %2112 = vmatmul.mubr.bf16.gmra.mrb[0].mxu0 %v2003
      %v2113 = vpop.f32.mrb[0].mxu0
      %v2114 = vadd.f32 0.0, %v2113
      %v2115 = vpop.f32.mrb[0].mxu0
      %v2116 = vpop.f32.mrb[0].mxu0
      %v2117 = vadd.f32 0.0, %v2116
      %v2118 = vpop.f32.mrb[0].mxu0
      %2119 = vmatprep.mubr.bf16.mxu0 0
      %2120 = vmatmul.mubr.bf16.gmra.mrb[0].mxu0 %v2006
      %v2121 = vpop.f32.mrb[0].mxu0
      %v2122 = vadd.f32 0.0, %v2121
      %v2123 = vpop.f32.mrb[0].mxu0
      %v2124 = vpop.f32.mrb[0].mxu0
      %v2125 = vadd.f32 0.0, %v2124
      %v2126 = vpop.f32.mrb[0].mxu0
      %2127 = vmatprep.mubr.bf16.mxu0 0
      %2128 = vmatmul.mubr.bf16.gmra.mrb[0].mxu0 %v2009
      %v2129 = vpop.f32.mrb[0].mxu0
      %v2130 = vadd.f32 0.0, %v2129
      %v2131 = vpop.f32.mrb[0].mxu0
      %v2132 = vpop.f32.mrb[0].mxu0
      %v2133 = vadd.f32 0.0, %v2132
      %v2134 = vpop.f32.mrb[0].mxu0
      %2135 = vmatprep.mubr.bf16.mxu0 0
      %2136 = vmatmul.mubr.bf16.gmra.mrb[0].mxu0 %v2012
      %v2137 = vpop.f32.mrb[0].mxu0
      %v2138 = vadd.f32 0.0, %v2137
      %v2139 = vpop.f32.mrb[0].mxu0
      %v2140 = vpop.f32.mrb[0].mxu0
      %v2141 = vadd.f32 0.0, %v2140
      %v2142 = vpop.f32.mrb[0].mxu0
      %2143 = vmatprep.mubr.bf16.mxu0 0
      %2144 = vmatmul.mubr.bf16.gmra.mrb[0].mxu0 %v2015
      %v2145 = vpop.f32.mrb[0].mxu0
      %v2146 = vadd.f32 0.0, %v2145
      %v2147 = vpop.f32.mrb[0].mxu0
      %v2148 = vpop.f32.mrb[0].mxu0
      %v2149 = vadd.f32 0.0, %v2148
      %v2150 = vpop.f32.mrb[0].mxu0
      %2151 = vmatprep.mubr.bf16.mxu0 0
      %2152 = vmatmul.mubr.bf16.gmra.mrb[0].mxu0 %v2018
      %v2153 = vpop.f32.mrb[0].mxu0
      %v2154 = vadd.f32 0.0, %v2153
      %v2155 = vpop.f32.mrb[0].mxu0
      %v2156 = vpop.f32.mrb[0].mxu0
      %v2157 = vadd.f32 0.0, %v2156
      %v2158 = vpop.f32.mrb[0].mxu0
      %2159 = vmatprep.mubr.bf16.mxu0 0
      %2160 = vmatmul.mubr.bf16.gmra.mrb[0].mxu0 %v2021
      %v2161 = vpop.f32.mrb[0].mxu0
      %v2162 = vadd.f32 0.0, %v2161
      %v2163 = vpop.f32.mrb[0].mxu0
      %v2164 = vpop.f32.mrb[0].mxu0
      %v2165 = vadd.f32 0.0, %v2164
      %v2166 = vpop.f32.mrb[0].mxu0
      %2167 = vmatprep.mubr.bf16.mxu0 0
      %2168 = vmatmul.mubr.bf16.gmra.mrb[0].mxu0 %v2024
      %v2169 = vpop.f32.mrb[0].mxu0
      %v2170 = vadd.f32 0.0, %v2169
      %v2171 = vpop.f32.mrb[0].mxu0
      %v2172 = vpop.f32.mrb[0].mxu0
      %v2173 = vadd.f32 0.0, %v2172
      %v2174 = vpop.f32.mrb[0].mxu0
      %2175 = vmatprep.mubr.bf16.mxu0 0
      %2176 = vmatmul.mubr.bf16.gmra.mrb[0].mxu0 %v2027
      %v2177 = vpop.f32.mrb[0].mxu0
      %v2178 = vadd.f32 0.0, %v2177
      %v2179 = vpop.f32.mrb[0].mxu0
      %v2180 = vpop.f32.mrb[0].mxu0
      %v2181 = vadd.f32 0.0, %v2180
      %v2182 = vpop.f32.mrb[0].mxu0
      %2183 = vmatprep.mubr.bf16.mxu0 0
      %2184 = vmatmul.mubr.bf16.gmra.mrb[0].mxu0 %v2030
      %v2185 = vpop.f32.mrb[0].mxu0
      %v2186 = vadd.f32 0.0, %v2185
      %v2187 = vpop.f32.mrb[0].mxu0
      %v2188 = vpop.f32.mrb[0].mxu0
      %v2189 = vadd.f32 0.0, %v2188
      %v2190 = vpop.f32.mrb[0].mxu0
      %2191 = vmatprep.mubr.bf16.mxu0 0
      %2192 = vmatmul.mubr.bf16.gmra.mrb[0].mxu0 %v2033
      %v2193 = vpop.f32.mrb[0].mxu0
      %v2194 = vadd.f32 0.0, %v2193
      %v2195 = vpop.f32.mrb[0].mxu0
      %v2196 = vpop.f32.mrb[0].mxu0
      %v2197 = vadd.f32 0.0, %v2196
      %v2198 = vpop.f32.mrb[0].mxu0
      %2199 = vdwg.mxu0
      %v2200 = vadd.f32 %v1736, %v2074
      %v2201 = vadd.f32 %v1737, %v2077
      %v2202 = vadd.f32 %v1738, %v2082
      %v2203 = vadd.f32 %v1739, %v2085
      %v2204 = vadd.f32 %v1740, %v2090
      %v2205 = vadd.f32 %v1741, %v2093
      %v2206 = vadd.f32 %v1742, %v2098
      %v2207 = vadd.f32 %v1743, %v2101
      %v2208 = vadd.f32 %v1744, %v2106
      %v2209 = vadd.f32 %v1745, %v2109
      %v2210 = vadd.f32 %v1746, %v2114
      %v2211 = vadd.f32 %v1747, %v2117
      %v2212 = vadd.f32 %v1748, %v2122
      %v2213 = vadd.f32 %v1749, %v2125
      %v2214 = vadd.f32 %v1750, %v2130
      %v2215 = vadd.f32 %v1751, %v2133
      %v2216 = vadd.f32 %v1752, %v2138
      %v2217 = vadd.f32 %v1753, %v2141
      %v2218 = vadd.f32 %v1754, %v2146
      %v2219 = vadd.f32 %v1755, %v2149
      %v2220 = vadd.f32 %v1756, %v2154
      %v2221 = vadd.f32 %v1757, %v2157
      %v2222 = vadd.f32 %v1758, %v2162
      %v2223 = vadd.f32 %v1759, %v2165
      %v2224 = vadd.f32 %v1760, %v2170
      %v2225 = vadd.f32 %v1761, %v2173
      %v2226 = vadd.f32 %v1762, %v2178
      %v2227 = vadd.f32 %v1763, %v2181
      %v2228 = vadd.f32 %v1764, %v2186
      %v2229 = vadd.f32 %v1765, %v2189
      %v2230 = vadd.f32 %v1766, %v2194
      %v2231 = vadd.f32 %v1767, %v2197
      %v2232 = vld [vmem:[%s11] sm:$0x1]
      %v2234 = vlaneseq
      %v2235 = vshrl.u32 %v2234, 7
      %v2236 = vsub.s32 0, %v2235
      %v2237 = vrot.slane %v2232, %v2236
      %v2239 = vmul.f32 %v2200, %v2237
      %v2240 = vmul.f32 %v2201, %v2237
      %v2241 = vmul.f32 %v2202, %v2237
      %v2242 = vmul.f32 %v2203, %v2237
      %v2243 = vmul.f32 %v2204, %v2237
      %v2244 = vmul.f32 %v2205, %v2237
      %v2245 = vmul.f32 %v2206, %v2237
      %v2246 = vmul.f32 %v2207, %v2237
      %v2247 = vmul.f32 %v2208, %v2237
      %v2248 = vmul.f32 %v2209, %v2237
      %v2249 = vmul.f32 %v2210, %v2237
      %v2250 = vmul.f32 %v2211, %v2237
      %v2251 = vmul.f32 %v2212, %v2237
      %v2252 = vmul.f32 %v2213, %v2237
      %v2253 = vmul.f32 %v2214, %v2237
      %v2254 = vmul.f32 %v2215, %v2237
      %v2255 = vmul.f32 %v2216, %v2237
      %v2256 = vmul.f32 %v2217, %v2237
      %v2257 = vmul.f32 %v2218, %v2237
      %v2258 = vmul.f32 %v2219, %v2237
      %v2259 = vmul.f32 %v2220, %v2237
      %v2260 = vmul.f32 %v2221, %v2237
      %v2261 = vmul.f32 %v2222, %v2237
      %v2262 = vmul.f32 %v2223, %v2237
      %v2263 = vmul.f32 %v2224, %v2237
      %v2264 = vmul.f32 %v2225, %v2237
      %v2265 = vmul.f32 %v2226, %v2237
      %v2266 = vmul.f32 %v2227, %v2237
      %v2267 = vmul.f32 %v2228, %v2237
      %v2268 = vmul.f32 %v2229, %v2237
      %v2269 = vmul.f32 %v2230, %v2237
      %v2270 = vmul.f32 %v2231, %v2237
      %v2271 = vld [vmem:[%s12] sm:$0x1]
      %v2273 = vlaneseq
      %v2274 = vshrl.u32 %v2273, 7
      %v2275 = vsub.s32 0, %v2274
      %v2276 = vrot.slane %v2271, %v2275
      %v2278 = vadd.f32 %v2239, %v2276
      %v2279 = vadd.f32 %v2240, %v2276
      %v2280 = vadd.f32 %v2241, %v2276
      %v2281 = vadd.f32 %v2242, %v2276
      %v2282 = vadd.f32 %v2243, %v2276
      %v2283 = vadd.f32 %v2244, %v2276
      %v2284 = vadd.f32 %v2245, %v2276
      %v2285 = vadd.f32 %v2246, %v2276
      %v2286 = vadd.f32 %v2247, %v2276
      %v2287 = vadd.f32 %v2248, %v2276
      %v2288 = vadd.f32 %v2249, %v2276
      %v2289 = vadd.f32 %v2250, %v2276
      %v2290 = vadd.f32 %v2251, %v2276
      %v2291 = vadd.f32 %v2252, %v2276
      %v2292 = vadd.f32 %v2253, %v2276
      %v2293 = vadd.f32 %v2254, %v2276
      %v2294 = vadd.f32 %v2255, %v2276
      %v2295 = vadd.f32 %v2256, %v2276
      %v2296 = vadd.f32 %v2257, %v2276
      %v2297 = vadd.f32 %v2258, %v2276
      %v2298 = vadd.f32 %v2259, %v2276
      %v2299 = vadd.f32 %v2260, %v2276
      %v2300 = vadd.f32 %v2261, %v2276
      %v2301 = vadd.f32 %v2262, %v2276
      %v2302 = vadd.f32 %v2263, %v2276
      %v2303 = vadd.f32 %v2264, %v2276
      %v2304 = vadd.f32 %v2265, %v2276
      %v2305 = vadd.f32 %v2266, %v2276
      %v2306 = vadd.f32 %v2267, %v2276
      %v2307 = vadd.f32 %v2268, %v2276
      %v2308 = vadd.f32 %v2269, %v2276
      %v2309 = vadd.f32 %v2270, %v2276
      %v2310 = vmax.f32 %v2278, 0.0
      %v2311 = vmax.f32 %v2279, 0.0
      %v2312 = vmax.f32 %v2280, 0.0
      %v2313 = vmax.f32 %v2281, 0.0
      %v2314 = vmax.f32 %v2282, 0.0
      %v2315 = vmax.f32 %v2283, 0.0
      %v2316 = vmax.f32 %v2284, 0.0
      %v2317 = vmax.f32 %v2285, 0.0
      %v2318 = vmax.f32 %v2286, 0.0
      %v2319 = vmax.f32 %v2287, 0.0
      %v2320 = vmax.f32 %v2288, 0.0
      %v2321 = vmax.f32 %v2289, 0.0
      %v2322 = vmax.f32 %v2290, 0.0
      %v2323 = vmax.f32 %v2291, 0.0
      %v2324 = vmax.f32 %v2292, 0.0
      %v2325 = vmax.f32 %v2293, 0.0
      %v2326 = vmax.f32 %v2294, 0.0
      %v2327 = vmax.f32 %v2295, 0.0
      %v2328 = vmax.f32 %v2296, 0.0
      %v2329 = vmax.f32 %v2297, 0.0
      %v2330 = vmax.f32 %v2298, 0.0
      %v2331 = vmax.f32 %v2299, 0.0
      %v2332 = vmax.f32 %v2300, 0.0
      %v2333 = vmax.f32 %v2301, 0.0
      %v2334 = vmax.f32 %v2302, 0.0
      %v2335 = vmax.f32 %v2303, 0.0
      %v2336 = vmax.f32 %v2304, 0.0
      %v2337 = vmax.f32 %v2305, 0.0
      %v2338 = vmax.f32 %v2306, 0.0
      %v2339 = vmax.f32 %v2307, 0.0
      %v2340 = vmax.f32 %v2308, 0.0
      %v2341 = vmax.f32 %v2309, 0.0
      %v2342 = vld [vmem:[%s13] sm:$0xf]
      %v2343 = vpack.c.bf16 %v2311, %v2310
      %v2344 = vpack.c.bf16 %v2313, %v2312
      %v2345 = vpack.c.bf16 %v2315, %v2314
      %v2346 = vpack.c.bf16 %v2317, %v2316
      %v2347 = vpack.c.bf16 %v2319, %v2318
      %v2348 = vpack.c.bf16 %v2321, %v2320
      %v2349 = vpack.c.bf16 %v2323, %v2322
      %v2350 = vpack.c.bf16 %v2325, %v2324
      %v2351 = vpack.c.bf16 %v2327, %v2326
      %v2352 = vpack.c.bf16 %v2329, %v2328
      %v2353 = vpack.c.bf16 %v2331, %v2330
      %v2354 = vpack.c.bf16 %v2333, %v2332
      %v2355 = vpack.c.bf16 %v2335, %v2334
      %v2356 = vpack.c.bf16 %v2337, %v2336
      %v2357 = vpack.c.bf16 %v2339, %v2338
      %v2358 = vpack.c.bf16 %v2341, %v2340
      %v2359 = vld [vmem:[%s14] sm:$0xff]
      %2361 = vset.pattern.permute.xlu0 0
      %2362 = vperm.xlu0 %2361, %v2359
      %v2363 = vpop.permute.xlu0 %2362
      %v2366 = vsel %vm631, %v2342, 0
      %v2369 = vsel %vm631, %v2343, 0
      %v2372 = vsel %vm631, %v2344, 0
      %v2375 = vsel %vm631, %v2345, 0
      %v2378 = vsel %vm631, %v2346, 0
      %v2381 = vsel %vm631, %v2347, 0
      %v2384 = vsel %vm631, %v2348, 0
      %v2387 = vsel %vm631, %v2349, 0
      %v2390 = vsel %vm631, %v2350, 0
      %v2393 = vsel %vm631, %v2351, 0
      %v2396 = vsel %vm631, %v2352, 0
      %v2399 = vsel %vm631, %v2353, 0
      %v2402 = vsel %vm631, %v2354, 0
      %v2405 = vsel %vm631, %v2355, 0
      %v2408 = vsel %vm631, %v2356, 0
      %v2411 = vsel %vm631, %v2357, 0
      %v2414 = vsel %vm631, %v2358, 0
      %2416 = vmatprep.subr.bf16.mxu0 0
      %2417 = vmatpush1.bf16.xpose.msra.mxu0 %v2369
      %2418 = vmatprep.subr.bf16.mxu0 0
      %2419 = vmatpush1.bf16.xpose.msra.mxu0 %v2372
      %2420 = vmatprep.subr.bf16.mxu0 0
      %2421 = vmatpush1.bf16.xpose.msra.mxu0 %v2375
      %2422 = vmatprep.subr.bf16.mxu0 0
      %2423 = vmatpush1.bf16.xpose.msra.mxu0 %v2378
      %2424 = vmatprep.subr.bf16.mxu0 0
      %2425 = vmatpush1.bf16.xpose.msra.mxu0 %v2381
      %2426 = vmatprep.subr.bf16.mxu0 0
      %2427 = vmatpush1.bf16.xpose.msra.mxu0 %v2384
      %2428 = vmatprep.subr.bf16.mxu0 0
      %2429 = vmatpush1.bf16.xpose.msra.mxu0 %v2387
      %2430 = vmatprep.subr.bf16.mxu0 0
      %2431 = vmatpush1.bf16.xpose.msra.mxu0 %v2390
      %2432 = vmatprep.subr.bf16.mxu0 0
      %2433 = vmatpush1.bf16.xpose.msra.mxu0 %v2393
      %2434 = vmatprep.subr.bf16.mxu0 0
      %2435 = vmatpush1.bf16.xpose.msra.mxu0 %v2396
      %2436 = vmatprep.subr.bf16.mxu0 0
      %2437 = vmatpush1.bf16.xpose.msra.mxu0 %v2399
      %2438 = vmatprep.subr.bf16.mxu0 0
      %2439 = vmatpush1.bf16.xpose.msra.mxu0 %v2402
      %2440 = vmatprep.subr.bf16.mxu0 0
      %2441 = vmatpush1.bf16.xpose.msra.mxu0 %v2405
      %2442 = vmatprep.subr.bf16.mxu0 0
      %2443 = vmatpush1.bf16.xpose.msra.mxu0 %v2408
      %2444 = vmatprep.subr.bf16.mxu0 0
      %2445 = vmatpush1.bf16.xpose.msra.mxu0 %v2411
      %2446 = vmatprep.subr.bf16.mxu0 0
      %2447 = vmatpush1.bf16.xpose.msra.mxu0 %v2414
      %2448 = vmatprep.mubr.bf16.mxu0 0
      %2449 = vmatmul.mubr.bf16.gmra.mrb[0].mxu0 %v2366
      %v2450 = vpop.f32.mrb[0].mxu0
      %v2451 = vadd.f32 %v2363, %v2450
      %v2452 = vpop.f32.mrb[0].mxu0
      %v2453 = vadd.f32 %v2363, %v2452
      %v2454 = vpop.f32.mrb[0].mxu0
      %v2455 = vpop.f32.mrb[0].mxu0
      %2456 = vdwg.mxu0
      %2457 = vst [vmem:[%s551] sm:$0xff] %v2451
      %2458 = vst [vmem:[%s551 + $0x8] sm:$0xff] %v2453
      %p2459 = scmp.lt.s32.totalorder %s26, 1
      %s2460 = scalar_select %p2459, %s26, 1
      %s2461 = smul.addr %s2460, 2
      %s2462 = smul.addr %s2461, 8
      %s2463 = scalar_lea.vmem %s15, %s2462
      // Predicated region
      $region81: #{seg_forward.6} parent=79 // pred_check
        %p2464 = pneg %p379
      $region82: #{seg_forward.6} parent=79 // pred_check_branch
        %2466 = sbr.rel (%p2464) target = $region84
      $region83: #{seg_forward.6} parent=79 // pred_region
        _
      $region84: #{seg_forward.6} parent=79 // pred_fallthru
        _
    $region80: #{seg_forward.6} parent=5 // pred_fallthru
      _
    %p2467 = scmp.le.s32.totalorder 2, %s21
    // Predicated region
    $region85: #{seg_forward.6} parent=5 // pred_check
      %p2468 = pneg %p2467
    $region86: #{seg_forward.6} parent=5 // pred_check_branch
      %2470 = sbr.rel (%p2468) target = $region88
    $region87: #{seg_forward.6} parent=5 // pred_region
      %s2471 = ssub.s32 %s21, 2
      // Predicated region
      $region89: #{seg_forward.6} parent=87 // pred_check
        %p2472 = pneg %p385
      $region90: #{seg_forward.6} parent=87 // pred_check_branch
        %2474 = sbr.rel (%p2472) target = $region92
      $region91: #{seg_forward.6} parent=87 // pred_region
        %p2475 = scmp.lt.s32.totalorder %s27, 1
        %s2476 = scalar_select %p2475, %s27, 1
        %s2477 = smul.addr %s2476, 2
        %s2478 = smul.addr %s2477, 8
        %s2479 = scalar_lea.vmem %s15, %s2478
      $region92: #{seg_forward.6} parent=87 // pred_fallthru
        _
    $region88: #{seg_forward.6} parent=5 // pred_fallthru
      _
  $region6: #{seg_forward.6} parent=0 // loop_footer
    %s25 = sadd.s32 1, %s21
  $region7: #{seg_forward.6} parent=0 // loop_footer_branch
    %20 = sbr.rel target = $region3
  $region8: #{seg_forward.6} parent=0 // loop_exit
    _

// kernel: seg_forward.7
$region0: #{seg_forward.7}
  #allocation0 [shape = 'u32[]', space=smem, size = 0x4, offset = 0x4, fixed_abs, tag = 'smem constant byte address 0x4 - core index']
  #allocation1 [shape = 'u32[144,128]{1,0:T(1,128)}', space=vmem, size = 0x12000, scoped, tag = 'internal scratch']
  %s0 = inlined_call_operand.vmem [shape: f32[2,128,16], index: 0, kind: input, shape index: {}]
  %s1 = inlined_call_operand.vmem [shape: bf16[16,64], index: 1, kind: input, shape index: {}]
  %s2 = inlined_call_operand.vmem [shape: bf16[8,64,16], index: 2, kind: input, shape index: {}]
  %s3 = inlined_call_operand.hbm [shape: f32[2,8,64,64], index: 3, kind: output, shape index: {}]
  %s4 = sld [smem:[#allocation0]]
  $region45: #{seg_forward.7} parent=0
    _
  %s6 = ssub.s32 1, %s4
  %s7 = scalar_select 0, %s6, %s4
  $region1: #{seg_forward.7} parent=0
    #allocation2 [shape = 'u8[524288]{0}', space=vmem, size = 0x80000, scoped, tag = 'output window, operand 0']
    #allocation3 [shape = 's32[2]{0}', space=sflag, size = 0x8, scoped, tag = 'scoped memory for seg_forward.7']
    %8 = vsyncpa [#allocation3], 0
    %s9 = scalar_lea.sflag [#allocation3], 1
    %10 = vsyncpa %s9, 0
    loop: start=0, step=1, limit=4
    $region2: #{seg_forward.7} parent=1 // loop_pre_header
      _
    $region3: #{seg_forward.7} parent=1 // loop_header
      %s12 = sphi 0, %s16
      %p13 = scmp.ge.s32.totalorder %s12, 4
      %s22 = sphi 0, %s24
      %s25 = sphi 0, %s22
      %s26 = sphi 0, %s25
      %s42 = sphi 0, %s26
      %s46 = sphi 0, %s46
      %s48 = sphi 0, %s46
      %s49 = sphi 0, %s48
      %s63 = sphi 0, %s49
      %s67 = sphi 0, %s67
      %s69 = sphi 0, %s67
      %s70 = sphi 0, %s69
      %s84 = sphi 0, %s70
      %s90 = sphi 0, %s92
      %s93 = sphi 0, %s90
      %s94 = sphi 0, %s93
      %s110 = sphi 0, %s94
    $region4: #{seg_forward.7} parent=1 // loop_header_branch
      %15 = sbr.rel (%p13) target = $region8
    $region5: #{seg_forward.7} parent=1 // loop_body
      %s17 = ssub.s32 %s12, 1
      %s18 = ssub.s32 %s12, 2
      %s19 = sadd.s32 %s12, 1
      %s20 = ssub.s32 %s12, %s19
      %p21 = scmp.eq.s32.totalorder %s20, 0
      %s23 = sadd.s32 %s22, 1
      %s24 = scalar_select %p21, %s22, %s23
      %p27 = pneg %p21
      %p28 = scmp.eq.s32.totalorder %s12, 1
      %p29 = por %p27, %p28
      %p30 = scmp.ne.s32.totalorder %s22, %s25
      %p31 = scmp.eq.s32.totalorder %s12, 0
      %p32 = por %p30, %p31
      %p33 = scmp.ne.s32.totalorder %s22, %s25
      %p34 = scmp.eq.s32.totalorder %s17, 1
      %p35 = por %p33, %p34
      %p36 = scmp.ne.s32.totalorder %s25, %s26
      %p37 = scmp.eq.s32.totalorder %s17, 0
      %p38 = por %p36, %p37
      %p39 = scmp.ne.s32.totalorder %s25, %s26
      %p40 = scmp.eq.s32.totalorder %s18, 1
      %p41 = por %p39, %p40
      %p43 = scmp.ne.s32.totalorder %s26, %s42
      %p44 = scmp.eq.s32.totalorder %s18, 0
      %p45 = por %p43, %p44
      %s47 = sadd.s32 %s46, 1
      %p50 = scmp.eq.s32.totalorder %s12, 1
      %p51 = scmp.ne.s32.totalorder %s46, %s48
      %p52 = scmp.eq.s32.totalorder %s12, 0
      %p53 = por %p51, %p52
      %p54 = scmp.ne.s32.totalorder %s46, %s48
      %p55 = scmp.eq.s32.totalorder %s17, 1
      %p56 = por %p54, %p55
      %p57 = scmp.ne.s32.totalorder %s48, %s49
      %p58 = scmp.eq.s32.totalorder %s17, 0
      %p59 = por %p57, %p58
      %p60 = scmp.ne.s32.totalorder %s48, %s49
      %p61 = scmp.eq.s32.totalorder %s18, 1
      %p62 = por %p60, %p61
      %p64 = scmp.ne.s32.totalorder %s49, %s63
      %p65 = scmp.eq.s32.totalorder %s18, 0
      %p66 = por %p64, %p65
      %s68 = sadd.s32 %s67, 1
      %p71 = scmp.eq.s32.totalorder %s12, 1
      %p72 = scmp.ne.s32.totalorder %s67, %s69
      %p73 = scmp.eq.s32.totalorder %s12, 0
      %p74 = por %p72, %p73
      %p75 = scmp.ne.s32.totalorder %s67, %s69
      %p76 = scmp.eq.s32.totalorder %s17, 1
      %p77 = por %p75, %p76
      %p78 = scmp.ne.s32.totalorder %s69, %s70
      %p79 = scmp.eq.s32.totalorder %s17, 0
      %p80 = por %p78, %p79
      %p81 = scmp.ne.s32.totalorder %s69, %s70
      %p82 = scmp.eq.s32.totalorder %s18, 1
      %p83 = por %p81, %p82
      %p85 = scmp.ne.s32.totalorder %s70, %s84
      %p86 = scmp.eq.s32.totalorder %s18, 0
      %p87 = por %p85, %p86
      %s88 = ssub.s32 %s12, %s19
      %p89 = scmp.eq.s32.totalorder %s88, 0
      %s91 = sadd.s32 %s90, 1
      %s92 = scalar_select %p89, %s90, %s91
      %p95 = pneg %p89
      %p96 = scmp.eq.s32.totalorder %s12, 1
      %p97 = por %p95, %p96
      %p98 = scmp.ne.s32.totalorder %s90, %s93
      %p99 = scmp.eq.s32.totalorder %s12, 0
      %p100 = por %p98, %p99
      %p101 = scmp.ne.s32.totalorder %s90, %s93
      %p102 = scmp.eq.s32.totalorder %s17, 1
      %p103 = por %p101, %p102
      %p104 = scmp.ne.s32.totalorder %s93, %s94
      %p105 = scmp.eq.s32.totalorder %s17, 0
      %p106 = por %p104, %p105
      %p107 = scmp.ne.s32.totalorder %s93, %s94
      %p108 = scmp.eq.s32.totalorder %s18, 1
      %p109 = por %p107, %p108
      %p111 = scmp.ne.s32.totalorder %s94, %s110
      %p112 = scmp.eq.s32.totalorder %s18, 0
      %p113 = por %p111, %p112
      %p114 = scmp.le.s32.totalorder 1, %s12
      %p115 = scmp.lt.s32.totalorder %s12, 3
      %p116 = pnand %p114, %p115
      %p117 = pneg %p116
      // Predicated region
      $region9: #{seg_forward.7} parent=5 // pred_check
        _
      $region10: #{seg_forward.7} parent=5 // pred_check_branch
        %119 = sbr.rel (%p116) target = $region12
      $region11: #{seg_forward.7} parent=5 // pred_region
        %s120 = ssub.s32 %s12, 1
        // Predicated region
        $region13: #{seg_forward.7} parent=11 // pred_check
          %p121 = pneg %p59
        $region14: #{seg_forward.7} parent=11 // pred_check_branch
          %123 = sbr.rel (%p121) target = $region16
        $region15: #{seg_forward.7} parent=11 // pred_region
          _
        $region16: #{seg_forward.7} parent=11 // pred_fallthru
          _
        // Predicated region
        $region17: #{seg_forward.7} parent=11 // pred_check
          %p124 = pneg %p80
        $region18: #{seg_forward.7} parent=11 // pred_check_branch
          %126 = sbr.rel (%p124) target = $region20
        $region19: #{seg_forward.7} parent=11 // pred_region
          _
        $region20: #{seg_forward.7} parent=11 // pred_fallthru
          _
      $region12: #{seg_forward.7} parent=5 // pred_fallthru
        _
      %p127 = scmp.lt.s32.totalorder %s12, 2
      // Predicated region
      $region21: #{seg_forward.7} parent=5 // pred_check
        %p128 = pneg %p127
      $region22: #{seg_forward.7} parent=5 // pred_check_branch
        %130 = sbr.rel (%p128) target = $region24
      $region23: #{seg_forward.7} parent=5 // pred_region
        // Predicated region
        $region25: #{seg_forward.7} parent=23 // pred_check
          %p131 = pneg %p32
        $region26: #{seg_forward.7} parent=23 // pred_check_branch
          %133 = sbr.rel (%p131) target = $region28
        $region27: #{seg_forward.7} parent=23 // pred_region
          %p134 = scmp.lt.s32.totalorder %s12, 1
          %s135 = scalar_select %p134, %s12, 1
          %s136 = smul.addr %s135, 16
          %s137 = smul.addr %s136, 8
          %s138 = scalar_lea.vmem %s0, %s137
        $region28: #{seg_forward.7} parent=23 // pred_fallthru
          _
      $region24: #{seg_forward.7} parent=5 // pred_fallthru
        _
      %p139 = scmp.le.s32.totalorder 1, %s12
      %p140 = scmp.lt.s32.totalorder %s12, 3
      %p141 = pnand %p139, %p140
      %p142 = pneg %p141
      // Predicated region
      $region29: #{seg_forward.7} parent=5 // pred_check
        _
      $region30: #{seg_forward.7} parent=5 // pred_check_branch
        %144 = sbr.rel (%p141) target = $region32
      $region31: #{seg_forward.7} parent=5 // pred_region
        %s145 = ssub.s32 %s12, 1
        %p146 = scmp.lt.s32.totalorder %s17, 1
        %s147 = scalar_select %p146, %s17, 1
        %s148 = smul.addr %s147, 16
        %s149 = smul.addr %s148, 8
        %s150 = scalar_lea.vmem %s0, %s149
        %p151 = pneg %p38
        %p152 = pneg %p35
        %p153 = pneg %p59
        %p154 = pneg %p56
        %p155 = pneg %p80
        %p156 = pneg %p77
        %p157 = pneg %p106
        %p158 = pneg %p103
        %s159 = sand.u32 %s93, 1
        %s160 = scalar_lea.sflag [#allocation3], %s159
        %s161 = sand.u32 %s93, 1
        %s162 = smul.addr %s161, 512
        %s163 = scalar_lea.vmem [#allocation2], %s162
        %p164 = scmp.lt.s32.totalorder %s17, 1
        %s165 = scalar_select %p164, %s17, 1
        %s166 = smul.addr %s165, 16
        %s167 = smul.addr %s166, 8
        %s168 = scalar_lea.vmem %s0, %s167
        %v170 = vld [vmem:[%s168] sm:$0xff]
        %v171 = vld [vmem:[%s168 + $0x8] sm:$0xff]
        %v172 = vld [vmem:[%s168 + $0x10] sm:$0xff]
        %v173 = vld [vmem:[%s168 + $0x18] sm:$0xff]
        %v174 = vld [vmem:[%s168 + $0x20] sm:$0xff]
        %v175 = vld [vmem:[%s168 + $0x28] sm:$0xff]
        %v176 = vld [vmem:[%s168 + $0x30] sm:$0xff]
        %v177 = vld [vmem:[%s168 + $0x38] sm:$0xff]
        %v178 = vld [vmem:[%s168 + $0x40] sm:$0xff]
        %v179 = vld [vmem:[%s168 + $0x48] sm:$0xff]
        %v180 = vld [vmem:[%s168 + $0x50] sm:$0xff]
        %v181 = vld [vmem:[%s168 + $0x58] sm:$0xff]
        %v182 = vld [vmem:[%s168 + $0x60] sm:$0xff]
        %v183 = vld [vmem:[%s168 + $0x68] sm:$0xff]
        %v184 = vld [vmem:[%s168 + $0x70] sm:$0xff]
        %v185 = vld [vmem:[%s168 + $0x78] sm:$0xff]
        %v186 = vpack.c.bf16 %v171, %v170
        %v187 = vpack.c.bf16 %v173, %v172
        %v188 = vpack.c.bf16 %v175, %v174
        %v189 = vpack.c.bf16 %v177, %v176
        %v190 = vpack.c.bf16 %v179, %v178
        %v191 = vpack.c.bf16 %v181, %v180
        %v192 = vpack.c.bf16 %v183, %v182
        %v193 = vpack.c.bf16 %v185, %v184
        %v194 = vld [vmem:[%s1] sm:$0xf]
        %v195 = vld [vmem:[%s1 + $0x4] sm:$0xf]
        %v198 = vunpack.c.l.b16 %v194
        %v199 = vunpack.c.l.b16 %v195
        %v200 = vpack.c.b16 %v199, %v198
        %vm202 = vcmask 130048
        %v204 = vsel %vm202, %v186, 0
        %v207 = vsel %vm202, %v187, 0
        %v210 = vsel %vm202, %v188, 0
        %v213 = vsel %vm202, %v189, 0
        %v216 = vsel %vm202, %v190, 0
        %v219 = vsel %vm202, %v191, 0
        %v222 = vsel %vm202, %v192, 0
        %v225 = vsel %vm202, %v193, 0
        %227 = vmatprep.subr.bf16.mxu0 0
        %228 = vmatpush1.bf16.msra.mxu0 %v200
        %229 = vmatprep.subr.bf16.mxu0 0
        %230 = vmatpush1.bf16.msra.mxu0 0
        %231 = vmatprep.subr.bf16.mxu0 0
        %232 = vmatpush1.bf16.msra.mxu0 0
        %233 = vmatprep.subr.bf16.mxu0 0
        %234 = vmatpush1.bf16.msra.mxu0 0
        %235 = vmatprep.subr.bf16.mxu0 0
        %236 = vmatpush1.bf16.msra.mxu0 0
        %237 = vmatprep.subr.bf16.mxu0 0
        %238 = vmatpush1.bf16.msra.mxu0 0
        %239 = vmatprep.subr.bf16.mxu0 0
        %240 = vmatpush1.bf16.msra.mxu0 0
        %241 = vmatprep.subr.bf16.mxu0 0
        %242 = vmatpush1.bf16.msra.mxu0 0
        %243 = vmatprep.subr.bf16.mxu0 0
        %244 = vmatpush1.bf16.msra.mxu0 0
        %245 = vmatprep.subr.bf16.mxu0 0
        %246 = vmatpush1.bf16.msra.mxu0 0
        %247 = vmatprep.subr.bf16.mxu0 0
        %248 = vmatpush1.bf16.msra.mxu0 0
        %249 = vmatprep.subr.bf16.mxu0 0
        %250 = vmatpush1.bf16.msra.mxu0 0
        %251 = vmatprep.subr.bf16.mxu0 0
        %252 = vmatpush1.bf16.msra.mxu0 0
        %253 = vmatprep.subr.bf16.mxu0 0
        %254 = vmatpush1.bf16.msra.mxu0 0
        %255 = vmatprep.subr.bf16.mxu0 0
        %256 = vmatpush1.bf16.msra.mxu0 0
        %257 = vmatprep.subr.bf16.mxu0 0
        %258 = vmatpush1.bf16.msra.mxu0 0
        %259 = vmatprep.mubr.bf16.mxu0 0
        %260 = vmatmul.mubr.bf16.gmra.mrb[0].mxu0 %v204
        %v261 = vpop.f32.mrb[0].mxu0
        %v262 = vadd.f32 0.0, %v261
        %v263 = vpop.f32.mrb[0].mxu0
        %v264 = vpop.f32.mrb[0].mxu0
        %v265 = vadd.f32 0.0, %v264
        %v266 = vpop.f32.mrb[0].mxu0
        %267 = vmatprep.mubr.bf16.mxu0 0
        %268 = vmatmul.mubr.bf16.gmra.mrb[0].mxu0 %v207
        %v269 = vpop.f32.mrb[0].mxu0
        %v270 = vadd.f32 0.0, %v269
        %v271 = vpop.f32.mrb[0].mxu0
        %v272 = vpop.f32.mrb[0].mxu0
        %v273 = vadd.f32 0.0, %v272
        %v274 = vpop.f32.mrb[0].mxu0
        %275 = vmatprep.mubr.bf16.mxu0 0
        %276 = vmatmul.mubr.bf16.gmra.mrb[0].mxu0 %v210
        %v277 = vpop.f32.mrb[0].mxu0
        %v278 = vadd.f32 0.0, %v277
        %v279 = vpop.f32.mrb[0].mxu0
        %v280 = vpop.f32.mrb[0].mxu0
        %v281 = vadd.f32 0.0, %v280
        %v282 = vpop.f32.mrb[0].mxu0
        %283 = vmatprep.mubr.bf16.mxu0 0
        %284 = vmatmul.mubr.bf16.gmra.mrb[0].mxu0 %v213
        %v285 = vpop.f32.mrb[0].mxu0
        %v286 = vadd.f32 0.0, %v285
        %v287 = vpop.f32.mrb[0].mxu0
        %v288 = vpop.f32.mrb[0].mxu0
        %v289 = vadd.f32 0.0, %v288
        %v290 = vpop.f32.mrb[0].mxu0
        %291 = vmatprep.mubr.bf16.mxu0 0
        %292 = vmatmul.mubr.bf16.gmra.mrb[0].mxu0 %v216
        %v293 = vpop.f32.mrb[0].mxu0
        %v294 = vadd.f32 0.0, %v293
        %v295 = vpop.f32.mrb[0].mxu0
        %v296 = vpop.f32.mrb[0].mxu0
        %v297 = vadd.f32 0.0, %v296
        %v298 = vpop.f32.mrb[0].mxu0
        %299 = vmatprep.mubr.bf16.mxu0 0
        %300 = vmatmul.mubr.bf16.gmra.mrb[0].mxu0 %v219
        %v301 = vpop.f32.mrb[0].mxu0
        %v302 = vadd.f32 0.0, %v301
        %v303 = vpop.f32.mrb[0].mxu0
        %v304 = vpop.f32.mrb[0].mxu0
        %v305 = vadd.f32 0.0, %v304
        %v306 = vpop.f32.mrb[0].mxu0
        %307 = vmatprep.mubr.bf16.mxu0 0
        %308 = vmatmul.mubr.bf16.gmra.mrb[0].mxu0 %v222
        %v309 = vpop.f32.mrb[0].mxu0
        %v310 = vadd.f32 0.0, %v309
        %v311 = vpop.f32.mrb[0].mxu0
        %v312 = vpop.f32.mrb[0].mxu0
        %v313 = vadd.f32 0.0, %v312
        %v314 = vpop.f32.mrb[0].mxu0
        %315 = vmatprep.mubr.bf16.mxu0 0
        %316 = vmatmul.mubr.bf16.gmra.mrb[0].mxu0 %v225
        %v317 = vpop.f32.mrb[0].mxu0
        %v318 = vadd.f32 0.0, %v317
        %v319 = vpop.f32.mrb[0].mxu0
        %v320 = vpop.f32.mrb[0].mxu0
        %v321 = vadd.f32 0.0, %v320
        %v322 = vpop.f32.mrb[0].mxu0
        %323 = vdwg.mxu0
        %v324 = vpack.c.bf16 %v265, %v262
        %v325 = vpack.c.bf16 %v273, %v270
        %v326 = vpack.c.bf16 %v281, %v278
        %v327 = vpack.c.bf16 %v289, %v286
        %v328 = vpack.c.bf16 %v297, %v294
        %v329 = vpack.c.bf16 %v305, %v302
        %v330 = vpack.c.bf16 %v313, %v310
        %v331 = vpack.c.bf16 %v321, %v318
        %v332 = vld [vmem:[%s2] sm:$0xf]
        %v333 = vld [vmem:[%s2 + $0x4] sm:$0xf]
        %v334 = vld [vmem:[%s2 + $0x8] sm:$0xf]
        %v335 = vld [vmem:[%s2 + $0xc] sm:$0xf]
        %v336 = vld [vmem:[%s2 + $0x10] sm:$0xf]
        %v337 = vld [vmem:[%s2 + $0x14] sm:$0xf]
        %v338 = vld [vmem:[%s2 + $0x18] sm:$0xf]
        %v339 = vld [vmem:[%s2 + $0x1c] sm:$0xf]
        %v340 = vld [vmem:[%s2 + $0x20] sm:$0xf]
        %v341 = vld [vmem:[%s2 + $0x24] sm:$0xf]
        %v342 = vld [vmem:[%s2 + $0x28] sm:$0xf]
        %v343 = vld [vmem:[%s2 + $0x2c] sm:$0xf]
        %v344 = vld [vmem:[%s2 + $0x30] sm:$0xf]
        %v345 = vld [vmem:[%s2 + $0x34] sm:$0xf]
        %v346 = vld [vmem:[%s2 + $0x38] sm:$0xf]
        %v347 = vld [vmem:[%s2 + $0x3c] sm:$0xf]
        %v348 = vld [vmem:[%s2 + $0x40] sm:$0xf]
        %v349 = vld [vmem:[%s2 + $0x44] sm:$0xf]
        %v350 = vld [vmem:[%s2 + $0x48] sm:$0xf]
        %v351 = vld [vmem:[%s2 + $0x4c] sm:$0xf]
        %v352 = vld [vmem:[%s2 + $0x50] sm:$0xf]
        %v353 = vld [vmem:[%s2 + $0x54] sm:$0xf]
        %v354 = vld [vmem:[%s2 + $0x58] sm:$0xf]
        %v355 = vld [vmem:[%s2 + $0x5c] sm:$0xf]
        %v356 = vld [vmem:[%s2 + $0x60] sm:$0xf]
        %v357 = vld [vmem:[%s2 + $0x64] sm:$0xf]
        %v358 = vld [vmem:[%s2 + $0x68] sm:$0xf]
        %v359 = vld [vmem:[%s2 + $0x6c] sm:$0xf]
        %v360 = vld [vmem:[%s2 + $0x70] sm:$0xf]
        %v361 = vld [vmem:[%s2 + $0x74] sm:$0xf]
        %v362 = vld [vmem:[%s2 + $0x78] sm:$0xf]
        %v363 = vld [vmem:[%s2 + $0x7c] sm:$0xf]
        %v364 = vld [vmem:[%s2 + $0x80] sm:$0xf]
        %v365 = vld [vmem:[%s2 + $0x84] sm:$0xf]
        %v366 = vld [vmem:[%s2 + $0x88] sm:$0xf]
        %v367 = vld [vmem:[%s2 + $0x8c] sm:$0xf]
        %v368 = vld [vmem:[%s2 + $0x90] sm:$0xf]
        %v369 = vld [vmem:[%s2 + $0x94] sm:$0xf]
        %v370 = vld [vmem:[%s2 + $0x98] sm:$0xf]
        %v371 = vld [vmem:[%s2 + $0x9c] sm:$0xf]
        %v372 = vld [vmem:[%s2 + $0xa0] sm:$0xf]
        %v373 = vld [vmem:[%s2 + $0xa4] sm:$0xf]
        %v374 = vld [vmem:[%s2 + $0xa8] sm:$0xf]
        %v375 = vld [vmem:[%s2 + $0xac] sm:$0xf]
        %v376 = vld [vmem:[%s2 + $0xb0] sm:$0xf]
        %v377 = vld [vmem:[%s2 + $0xb4] sm:$0xf]
        %v378 = vld [vmem:[%s2 + $0xb8] sm:$0xf]
        %v379 = vld [vmem:[%s2 + $0xbc] sm:$0xf]
        %v380 = vld [vmem:[%s2 + $0xc0] sm:$0xf]
        %v381 = vld [vmem:[%s2 + $0xc4] sm:$0xf]
        %v382 = vld [vmem:[%s2 + $0xc8] sm:$0xf]
        %v383 = vld [vmem:[%s2 + $0xcc] sm:$0xf]
        %v384 = vld [vmem:[%s2 + $0xd0] sm:$0xf]
        %v385 = vld [vmem:[%s2 + $0xd4] sm:$0xf]
        %v386 = vld [vmem:[%s2 + $0xd8] sm:$0xf]
        %v387 = vld [vmem:[%s2 + $0xdc] sm:$0xf]
        %v388 = vld [vmem:[%s2 + $0xe0] sm:$0xf]
        %v389 = vld [vmem:[%s2 + $0xe4] sm:$0xf]
        %v390 = vld [vmem:[%s2 + $0xe8] sm:$0xf]
        %v391 = vld [vmem:[%s2 + $0xec] sm:$0xf]
        %v392 = vld [vmem:[%s2 + $0xf0] sm:$0xf]
        %v393 = vld [vmem:[%s2 + $0xf4] sm:$0xf]
        %v394 = vld [vmem:[%s2 + $0xf8] sm:$0xf]
        %v395 = vld [vmem:[%s2 + $0xfc] sm:$0xf]
        %v404 = vunpack.c.l.b16 %v332
        %v405 = vunpack.c.l.b16 %v333
        %v406 = vunpack.c.l.b16 %v334
        %v407 = vunpack.c.l.b16 %v335
        %v408 = vunpack.c.l.b16 %v336
        %v409 = vunpack.c.l.b16 %v337
        %v410 = vunpack.c.l.b16 %v338
        %v411 = vunpack.c.l.b16 %v339
        %v412 = vpack.c.b16 %v405, %v404
        %v413 = vpack.c.b16 %v407, %v406
        %v414 = vpack.c.b16 %v409, %v408
        %v415 = vpack.c.b16 %v411, %v410
        %v417 = vsel %vm202, %v412, 0
        %v420 = vsel %vm202, %v413, 0
        %v423 = vsel %vm202, %v414, 0
        %v426 = vsel %vm202, %v415, 0
        %428 = vmatprep.subr.bf16.mxu0 0
        %429 = vmatpush1.bf16.msra.mxu0 %v324
        %430 = vmatprep.subr.bf16.mxu0 0
        %431 = vmatpush1.bf16.msra.mxu0 0
        %432 = vmatprep.subr.bf16.mxu0 0
        %433 = vmatpush1.bf16.msra.mxu0 0
        %434 = vmatprep.subr.bf16.mxu0 0
        %435 = vmatpush1.bf16.msra.mxu0 0
        %436 = vmatprep.subr.bf16.mxu0 0
        %437 = vmatpush1.bf16.msra.mxu0 0
        %438 = vmatprep.subr.bf16.mxu0 0
        %439 = vmatpush1.bf16.msra.mxu0 0
        %440 = vmatprep.subr.bf16.mxu0 0
        %441 = vmatpush1.bf16.msra.mxu0 0
        %442 = vmatprep.subr.bf16.mxu0 0
        %443 = vmatpush1.bf16.msra.mxu0 0
        %444 = vmatprep.subr.bf16.mxu0 0
        %445 = vmatpush1.bf16.msra.mxu0 0
        %446 = vmatprep.subr.bf16.mxu0 0
        %447 = vmatpush1.bf16.msra.mxu0 0
        %448 = vmatprep.subr.bf16.mxu0 0
        %449 = vmatpush1.bf16.msra.mxu0 0
        %450 = vmatprep.subr.bf16.mxu0 0
        %451 = vmatpush1.bf16.msra.mxu0 0
        %452 = vmatprep.subr.bf16.mxu0 0
        %453 = vmatpush1.bf16.msra.mxu0 0
        %454 = vmatprep.subr.bf16.mxu0 0
        %455 = vmatpush1.bf16.msra.mxu0 0
        %456 = vmatprep.subr.bf16.mxu0 0
        %457 = vmatpush1.bf16.msra.mxu0 0
        %458 = vmatprep.subr.bf16.mxu0 0
        %459 = vmatpush1.bf16.msra.mxu0 0
        %460 = vmatprep.mubr.bf16.mxu0 0
        %461 = vmatmul.mubr.bf16.gmra.mrb[0].mxu0 %v417
        %v462 = vpop.f32.mrb[0].mxu0
        %v463 = vadd.f32 0.0, %v462
        %v464 = vpop.f32.mrb[0].mxu0
        %v465 = vpop.f32.mrb[0].mxu0
        %v466 = vadd.f32 0.0, %v465
        %v467 = vpop.f32.mrb[0].mxu0
        %468 = vmatprep.mubr.bf16.mxu0 0
        %469 = vmatmul.mubr.bf16.gmra.mrb[0].mxu0 %v420
        %v470 = vpop.f32.mrb[0].mxu0
        %v471 = vadd.f32 0.0, %v470
        %v472 = vpop.f32.mrb[0].mxu0
        %v473 = vpop.f32.mrb[0].mxu0
        %v474 = vadd.f32 0.0, %v473
        %v475 = vpop.f32.mrb[0].mxu0
        %476 = vmatprep.mubr.bf16.mxu0 0
        %477 = vmatmul.mubr.bf16.gmra.mrb[0].mxu0 %v423
        %v478 = vpop.f32.mrb[0].mxu0
        %v479 = vadd.f32 0.0, %v478
        %v480 = vpop.f32.mrb[0].mxu0
        %v481 = vpop.f32.mrb[0].mxu0
        %v482 = vadd.f32 0.0, %v481
        %v483 = vpop.f32.mrb[0].mxu0
        %484 = vmatprep.mubr.bf16.mxu0 0
        %485 = vmatmul.mubr.bf16.gmra.mrb[0].mxu0 %v426
        %v486 = vpop.f32.mrb[0].mxu0
        %v487 = vadd.f32 0.0, %v486
        %v488 = vpop.f32.mrb[0].mxu0
        %v489 = vpop.f32.mrb[0].mxu0
        %v490 = vadd.f32 0.0, %v489
        %v491 = vpop.f32.mrb[0].mxu0
        %492 = vdwg.mxu0
        %v501 = vunpack.c.l.b16 %v340
        %v502 = vunpack.c.l.b16 %v341
        %v503 = vunpack.c.l.b16 %v342
        %v504 = vunpack.c.l.b16 %v343
        %v505 = vunpack.c.l.b16 %v344
        %v506 = vunpack.c.l.b16 %v345
        %v507 = vunpack.c.l.b16 %v346
        %v508 = vunpack.c.l.b16 %v347
        %v509 = vpack.c.b16 %v502, %v501
        %v510 = vpack.c.b16 %v504, %v503
        %v511 = vpack.c.b16 %v506, %v505
        %v512 = vpack.c.b16 %v508, %v507
        %v514 = vsel %vm202, %v509, 0
        %v517 = vsel %vm202, %v510, 0
        %v520 = vsel %vm202, %v511, 0
        %v523 = vsel %vm202, %v512, 0
        %525 = vmatprep.subr.bf16.mxu0 0
        %526 = vmatpush1.bf16.msra.mxu0 %v325
        %527 = vmatprep.subr.bf16.mxu0 0
        %528 = vmatpush1.bf16.msra.mxu0 0
        %529 = vmatprep.subr.bf16.mxu0 0
        %530 = vmatpush1.bf16.msra.mxu0 0
        %531 = vmatprep.subr.bf16.mxu0 0
        %532 = vmatpush1.bf16.msra.mxu0 0
        %533 = vmatprep.subr.bf16.mxu0 0
        %534 = vmatpush1.bf16.msra.mxu0 0
        %535 = vmatprep.subr.bf16.mxu0 0
        %536 = vmatpush1.bf16.msra.mxu0 0
        %537 = vmatprep.subr.bf16.mxu0 0
        %538 = vmatpush1.bf16.msra.mxu0 0
        %539 = vmatprep.subr.bf16.mxu0 0
        %540 = vmatpush1.bf16.msra.mxu0 0
        %541 = vmatprep.subr.bf16.mxu0 0
        %542 = vmatpush1.bf16.msra.mxu0 0
        %543 = vmatprep.subr.bf16.mxu0 0
        %544 = vmatpush1.bf16.msra.mxu0 0
        %545 = vmatprep.subr.bf16.mxu0 0
        %546 = vmatpush1.bf16.msra.mxu0 0
        %547 = vmatprep.subr.bf16.mxu0 0
        %548 = vmatpush1.bf16.msra.mxu0 0
        %549 = vmatprep.subr.bf16.mxu0 0
        %550 = vmatpush1.bf16.msra.mxu0 0
        %551 = vmatprep.subr.bf16.mxu0 0
        %552 = vmatpush1.bf16.msra.mxu0 0
        %553 = vmatprep.subr.bf16.mxu0 0
        %554 = vmatpush1.bf16.msra.mxu0 0
        %555 = vmatprep.subr.bf16.mxu0 0
        %556 = vmatpush1.bf16.msra.mxu0 0
        %557 = vmatprep.mubr.bf16.mxu0 0
        %558 = vmatmul.mubr.bf16.gmra.mrb[0].mxu0 %v514
        %v559 = vpop.f32.mrb[0].mxu0
        %v560 = vadd.f32 0.0, %v559
        %v561 = vpop.f32.mrb[0].mxu0
        %v562 = vpop.f32.mrb[0].mxu0
        %v563 = vadd.f32 0.0, %v562
        %v564 = vpop.f32.mrb[0].mxu0
        %565 = vmatprep.mubr.bf16.mxu0 0
        %566 = vmatmul.mubr.bf16.gmra.mrb[0].mxu0 %v517
        %v567 = vpop.f32.mrb[0].mxu0
        %v568 = vadd.f32 0.0, %v567
        %v569 = vpop.f32.mrb[0].mxu0
        %v570 = vpop.f32.mrb[0].mxu0
        %v571 = vadd.f32 0.0, %v570
        %v572 = vpop.f32.mrb[0].mxu0
        %573 = vmatprep.mubr.bf16.mxu0 0
        %574 = vmatmul.mubr.bf16.gmra.mrb[0].mxu0 %v520
        %v575 = vpop.f32.mrb[0].mxu0
        %v576 = vadd.f32 0.0, %v575
        %v577 = vpop.f32.mrb[0].mxu0
        %v578 = vpop.f32.mrb[0].mxu0
        %v579 = vadd.f32 0.0, %v578
        %v580 = vpop.f32.mrb[0].mxu0
        %581 = vmatprep.mubr.bf16.mxu0 0
        %582 = vmatmul.mubr.bf16.gmra.mrb[0].mxu0 %v523
        %v583 = vpop.f32.mrb[0].mxu0
        %v584 = vadd.f32 0.0, %v583
        %v585 = vpop.f32.mrb[0].mxu0
        %v586 = vpop.f32.mrb[0].mxu0
        %v587 = vadd.f32 0.0, %v586
        %v588 = vpop.f32.mrb[0].mxu0
        %589 = vdwg.mxu0
        %v598 = vunpack.c.l.b16 %v348
        %v599 = vunpack.c.l.b16 %v349
        %v600 = vunpack.c.l.b16 %v350
        %v601 = vunpack.c.l.b16 %v351
        %v602 = vunpack.c.l.b16 %v352
        %v603 = vunpack.c.l.b16 %v353
        %v604 = vunpack.c.l.b16 %v354
        %v605 = vunpack.c.l.b16 %v355
        %v606 = vpack.c.b16 %v599, %v598
        %v607 = vpack.c.b16 %v601, %v600
        %v608 = vpack.c.b16 %v603, %v602
        %v609 = vpack.c.b16 %v605, %v604
        %v611 = vsel %vm202, %v606, 0
        %v614 = vsel %vm202, %v607, 0
        %v617 = vsel %vm202, %v608, 0
        %v620 = vsel %vm202, %v609, 0
        %622 = vmatprep.subr.bf16.mxu0 0
        %623 = vmatpush1.bf16.msra.mxu0 %v326
        %624 = vmatprep.subr.bf16.mxu0 0
        %625 = vmatpush1.bf16.msra.mxu0 0
        %626 = vmatprep.subr.bf16.mxu0 0
        %627 = vmatpush1.bf16.msra.mxu0 0
        %628 = vmatprep.subr.bf16.mxu0 0
        %629 = vmatpush1.bf16.msra.mxu0 0
        %630 = vmatprep.subr.bf16.mxu0 0
        %631 = vmatpush1.bf16.msra.mxu0 0
        %632 = vmatprep.subr.bf16.mxu0 0
        %633 = vmatpush1.bf16.msra.mxu0 0
        %634 = vmatprep.subr.bf16.mxu0 0
        %635 = vmatpush1.bf16.msra.mxu0 0
        %636 = vmatprep.subr.bf16.mxu0 0
        %637 = vmatpush1.bf16.msra.mxu0 0
        %638 = vmatprep.subr.bf16.mxu0 0
        %639 = vmatpush1.bf16.msra.mxu0 0
        %640 = vmatprep.subr.bf16.mxu0 0
        %641 = vmatpush1.bf16.msra.mxu0 0
        %642 = vmatprep.subr.bf16.mxu0 0
        %643 = vmatpush1.bf16.msra.mxu0 0
        %644 = vmatprep.subr.bf16.mxu0 0
        %645 = vmatpush1.bf16.msra.mxu0 0
        %646 = vmatprep.subr.bf16.mxu0 0
        %647 = vmatpush1.bf16.msra.mxu0 0
        %648 = vmatprep.subr.bf16.mxu0 0
        %649 = vmatpush1.bf16.msra.mxu0 0
        %650 = vmatprep.subr.bf16.mxu0 0
        %651 = vmatpush1.bf16.msra.mxu0 0
        %652 = vmatprep.subr.bf16.mxu0 0
        %653 = vmatpush1.bf16.msra.mxu0 0
        %654 = vmatprep.mubr.bf16.mxu0 0
        %655 = vmatmul.mubr.bf16.gmra.mrb[0].mxu0 %v611
        %v656 = vpop.f32.mrb[0].mxu0
        %v657 = vadd.f32 0.0, %v656
        %v658 = vpop.f32.mrb[0].mxu0
        %v659 = vpop.f32.mrb[0].mxu0
        %v660 = vadd.f32 0.0, %v659
        %v661 = vpop.f32.mrb[0].mxu0
        %662 = vmatprep.mubr.bf16.mxu0 0
        %663 = vmatmul.mubr.bf16.gmra.mrb[0].mxu0 %v614
        %v664 = vpop.f32.mrb[0].mxu0
        %v665 = vadd.f32 0.0, %v664
        %v666 = vpop.f32.mrb[0].mxu0
        %v667 = vpop.f32.mrb[0].mxu0
        %v668 = vadd.f32 0.0, %v667
        %v669 = vpop.f32.mrb[0].mxu0
        %670 = vmatprep.mubr.bf16.mxu0 0
        %671 = vmatmul.mubr.bf16.gmra.mrb[0].mxu0 %v617
        %v672 = vpop.f32.mrb[0].mxu0
        %v673 = vadd.f32 0.0, %v672
        %v674 = vpop.f32.mrb[0].mxu0
        %v675 = vpop.f32.mrb[0].mxu0
        %v676 = vadd.f32 0.0, %v675
        %v677 = vpop.f32.mrb[0].mxu0
        %678 = vmatprep.mubr.bf16.mxu0 0
        %679 = vmatmul.mubr.bf16.gmra.mrb[0].mxu0 %v620
        %v680 = vpop.f32.mrb[0].mxu0
        %v681 = vadd.f32 0.0, %v680
        %v682 = vpop.f32.mrb[0].mxu0
        %v683 = vpop.f32.mrb[0].mxu0
        %v684 = vadd.f32 0.0, %v683
        %v685 = vpop.f32.mrb[0].mxu0
        %686 = vdwg.mxu0
        %v695 = vunpack.c.l.b16 %v356
        %v696 = vunpack.c.l.b16 %v357
        %v697 = vunpack.c.l.b16 %v358
        %v698 = vunpack.c.l.b16 %v359
        %v699 = vunpack.c.l.b16 %v360
        %v700 = vunpack.c.l.b16 %v361
        %v701 = vunpack.c.l.b16 %v362
        %v702 = vunpack.c.l.b16 %v363
        %v703 = vpack.c.b16 %v696, %v695
        %v704 = vpack.c.b16 %v698, %v697
        %v705 = vpack.c.b16 %v700, %v699
        %v706 = vpack.c.b16 %v702, %v701
        %v708 = vsel %vm202, %v703, 0
        %v711 = vsel %vm202, %v704, 0
        %v714 = vsel %vm202, %v705, 0
        %v717 = vsel %vm202, %v706, 0
        %719 = vmatprep.subr.bf16.mxu0 0
        %720 = vmatpush1.bf16.msra.mxu0 %v327
        %721 = vmatprep.subr.bf16.mxu0 0
        %722 = vmatpush1.bf16.msra.mxu0 0
        %723 = vmatprep.subr.bf16.mxu0 0
        %724 = vmatpush1.bf16.msra.mxu0 0
        %725 = vmatprep.subr.bf16.mxu0 0
        %726 = vmatpush1.bf16.msra.mxu0 0
        %727 = vmatprep.subr.bf16.mxu0 0
        %728 = vmatpush1.bf16.msra.mxu0 0
        %729 = vmatprep.subr.bf16.mxu0 0
        %730 = vmatpush1.bf16.msra.mxu0 0
        %731 = vmatprep.subr.bf16.mxu0 0
        %732 = vmatpush1.bf16.msra.mxu0 0
        %733 = vmatprep.subr.bf16.mxu0 0
        %734 = vmatpush1.bf16.msra.mxu0 0
        %735 = vmatprep.subr.bf16.mxu0 0
        %736 = vmatpush1.bf16.msra.mxu0 0
        %737 = vmatprep.subr.bf16.mxu0 0
        %738 = vmatpush1.bf16.msra.mxu0 0
        %739 = vmatprep.subr.bf16.mxu0 0
        %740 = vmatpush1.bf16.msra.mxu0 0
        %741 = vmatprep.subr.bf16.mxu0 0
        %742 = vmatpush1.bf16.msra.mxu0 0
        %743 = vmatprep.subr.bf16.mxu0 0
        %744 = vmatpush1.bf16.msra.mxu0 0
        %745 = vmatprep.subr.bf16.mxu0 0
        %746 = vmatpush1.bf16.msra.mxu0 0
        %747 = vmatprep.subr.bf16.mxu0 0
        %748 = vmatpush1.bf16.msra.mxu0 0
        %749 = vmatprep.subr.bf16.mxu0 0
        %750 = vmatpush1.bf16.msra.mxu0 0
        %751 = vmatprep.mubr.bf16.mxu0 0
        %752 = vmatmul.mubr.bf16.gmra.mrb[0].mxu0 %v708
        %v753 = vpop.f32.mrb[0].mxu0
        %v754 = vadd.f32 0.0, %v753
        %v755 = vpop.f32.mrb[0].mxu0
        %v756 = vpop.f32.mrb[0].mxu0
        %v757 = vadd.f32 0.0, %v756
        %v758 = vpop.f32.mrb[0].mxu0
        %759 = vmatprep.mubr.bf16.mxu0 0
        %760 = vmatmul.mubr.bf16.gmra.mrb[0].mxu0 %v711
        %v761 = vpop.f32.mrb[0].mxu0
        %v762 = vadd.f32 0.0, %v761
        %v763 = vpop.f32.mrb[0].mxu0
        %v764 = vpop.f32.mrb[0].mxu0
        %v765 = vadd.f32 0.0, %v764
        %v766 = vpop.f32.mrb[0].mxu0
        %767 = vmatprep.mubr.bf16.mxu0 0
        %768 = vmatmul.mubr.bf16.gmra.mrb[0].mxu0 %v714
        %v769 = vpop.f32.mrb[0].mxu0
        %v770 = vadd.f32 0.0, %v769
        %v771 = vpop.f32.mrb[0].mxu0
        %v772 = vpop.f32.mrb[0].mxu0
        %v773 = vadd.f32 0.0, %v772
        %v774 = vpop.f32.mrb[0].mxu0
        %775 = vmatprep.mubr.bf16.mxu0 0
        %776 = vmatmul.mubr.bf16.gmra.mrb[0].mxu0 %v717
        %v777 = vpop.f32.mrb[0].mxu0
        %v778 = vadd.f32 0.0, %v777
        %v779 = vpop.f32.mrb[0].mxu0
        %v780 = vpop.f32.mrb[0].mxu0
        %v781 = vadd.f32 0.0, %v780
        %v782 = vpop.f32.mrb[0].mxu0
        %783 = vdwg.mxu0
        %v792 = vunpack.c.l.b16 %v364
        %v793 = vunpack.c.l.b16 %v365
        %v794 = vunpack.c.l.b16 %v366
        %v795 = vunpack.c.l.b16 %v367
        %v796 = vunpack.c.l.b16 %v368
        %v797 = vunpack.c.l.b16 %v369
        %v798 = vunpack.c.l.b16 %v370
        %v799 = vunpack.c.l.b16 %v371
        %v800 = vpack.c.b16 %v793, %v792
        %v801 = vpack.c.b16 %v795, %v794
        %v802 = vpack.c.b16 %v797, %v796
        %v803 = vpack.c.b16 %v799, %v798
        %v805 = vsel %vm202, %v800, 0
        %v808 = vsel %vm202, %v801, 0
        %v811 = vsel %vm202, %v802, 0
        %v814 = vsel %vm202, %v803, 0
        %816 = vmatprep.subr.bf16.mxu0 0
        %817 = vmatpush1.bf16.msra.mxu0 %v328
        %818 = vmatprep.subr.bf16.mxu0 0
        %819 = vmatpush1.bf16.msra.mxu0 0
        %820 = vmatprep.subr.bf16.mxu0 0
        %821 = vmatpush1.bf16.msra.mxu0 0
        %822 = vmatprep.subr.bf16.mxu0 0
        %823 = vmatpush1.bf16.msra.mxu0 0
        %824 = vmatprep.subr.bf16.mxu0 0
        %825 = vmatpush1.bf16.msra.mxu0 0
        %826 = vmatprep.subr.bf16.mxu0 0
        %827 = vmatpush1.bf16.msra.mxu0 0
        %828 = vmatprep.subr.bf16.mxu0 0
        %829 = vmatpush1.bf16.msra.mxu0 0
        %830 = vmatprep.subr.bf16.mxu0 0
        %831 = vmatpush1.bf16.msra.mxu0 0
        %832 = vmatprep.subr.bf16.mxu0 0
        %833 = vmatpush1.bf16.msra.mxu0 0
        %834 = vmatprep.subr.bf16.mxu0 0
        %835 = vmatpush1.bf16.msra.mxu0 0
        %836 = vmatprep.subr.bf16.mxu0 0
        %837 = vmatpush1.bf16.msra.mxu0 0
        %838 = vmatprep.subr.bf16.mxu0 0
        %839 = vmatpush1.bf16.msra.mxu0 0
        %840 = vmatprep.subr.bf16.mxu0 0
        %841 = vmatpush1.bf16.msra.mxu0 0
        %842 = vmatprep.subr.bf16.mxu0 0
        %843 = vmatpush1.bf16.msra.mxu0 0
        %844 = vmatprep.subr.bf16.mxu0 0
        %845 = vmatpush1.bf16.msra.mxu0 0
        %846 = vmatprep.subr.bf16.mxu0 0
        %847 = vmatpush1.bf16.msra.mxu0 0
        %848 = vmatprep.mubr.bf16.mxu0 0
        %849 = vmatmul.mubr.bf16.gmra.mrb[0].mxu0 %v805
        %v850 = vpop.f32.mrb[0].mxu0
        %v851 = vadd.f32 0.0, %v850
        %v852 = vpop.f32.mrb[0].mxu0
        %v853 = vpop.f32.mrb[0].mxu0
        %v854 = vadd.f32 0.0, %v853
        %v855 = vpop.f32.mrb[0].mxu0
        %856 = vmatprep.mubr.bf16.mxu0 0
        %857 = vmatmul.mubr.bf16.gmra.mrb[0].mxu0 %v808
        %v858 = vpop.f32.mrb[0].mxu0
        %v859 = vadd.f32 0.0, %v858
        %v860 = vpop.f32.mrb[0].mxu0
        %v861 = vpop.f32.mrb[0].mxu0
        %v862 = vadd.f32 0.0, %v861
        %v863 = vpop.f32.mrb[0].mxu0
        %864 = vmatprep.mubr.bf16.mxu0 0
        %865 = vmatmul.mubr.bf16.gmra.mrb[0].mxu0 %v811
        %v866 = vpop.f32.mrb[0].mxu0
        %v867 = vadd.f32 0.0, %v866
        %v868 = vpop.f32.mrb[0].mxu0
        %v869 = vpop.f32.mrb[0].mxu0
        %v870 = vadd.f32 0.0, %v869
        %v871 = vpop.f32.mrb[0].mxu0
        %872 = vmatprep.mubr.bf16.mxu0 0
        %873 = vmatmul.mubr.bf16.gmra.mrb[0].mxu0 %v814
        %v874 = vpop.f32.mrb[0].mxu0
        %v875 = vadd.f32 0.0, %v874
        %v876 = vpop.f32.mrb[0].mxu0
        %v877 = vpop.f32.mrb[0].mxu0
        %v878 = vadd.f32 0.0, %v877
        %v879 = vpop.f32.mrb[0].mxu0
        %880 = vdwg.mxu0
        %v889 = vunpack.c.l.b16 %v372
        %v890 = vunpack.c.l.b16 %v373
        %v891 = vunpack.c.l.b16 %v374
        %v892 = vunpack.c.l.b16 %v375
        %v893 = vunpack.c.l.b16 %v376
        %v894 = vunpack.c.l.b16 %v377
        %v895 = vunpack.c.l.b16 %v378
        %v896 = vunpack.c.l.b16 %v379
        %v897 = vpack.c.b16 %v890, %v889
        %v898 = vpack.c.b16 %v892, %v891
        %v899 = vpack.c.b16 %v894, %v893
        %v900 = vpack.c.b16 %v896, %v895
        %v902 = vsel %vm202, %v897, 0
        %v905 = vsel %vm202, %v898, 0
        %v908 = vsel %vm202, %v899, 0
        %v911 = vsel %vm202, %v900, 0
        %913 = vmatprep.subr.bf16.mxu0 0
        %914 = vmatpush1.bf16.msra.mxu0 %v329
        %915 = vmatprep.subr.bf16.mxu0 0
        %916 = vmatpush1.bf16.msra.mxu0 0
        %917 = vmatprep.subr.bf16.mxu0 0
        %918 = vmatpush1.bf16.msra.mxu0 0
        %919 = vmatprep.subr.bf16.mxu0 0
        %920 = vmatpush1.bf16.msra.mxu0 0
        %921 = vmatprep.subr.bf16.mxu0 0
        %922 = vmatpush1.bf16.msra.mxu0 0
        %923 = vmatprep.subr.bf16.mxu0 0
        %924 = vmatpush1.bf16.msra.mxu0 0
        %925 = vmatprep.subr.bf16.mxu0 0
        %926 = vmatpush1.bf16.msra.mxu0 0
        %927 = vmatprep.subr.bf16.mxu0 0
        %928 = vmatpush1.bf16.msra.mxu0 0
        %929 = vmatprep.subr.bf16.mxu0 0
        %930 = vmatpush1.bf16.msra.mxu0 0
        %931 = vmatprep.subr.bf16.mxu0 0
        %932 = vmatpush1.bf16.msra.mxu0 0
        %933 = vmatprep.subr.bf16.mxu0 0
        %934 = vmatpush1.bf16.msra.mxu0 0
        %935 = vmatprep.subr.bf16.mxu0 0
        %936 = vmatpush1.bf16.msra.mxu0 0
        %937 = vmatprep.subr.bf16.mxu0 0
        %938 = vmatpush1.bf16.msra.mxu0 0
        %939 = vmatprep.subr.bf16.mxu0 0
        %940 = vmatpush1.bf16.msra.mxu0 0
        %941 = vmatprep.subr.bf16.mxu0 0
        %942 = vmatpush1.bf16.msra.mxu0 0
        %943 = vmatprep.subr.bf16.mxu0 0
        %944 = vmatpush1.bf16.msra.mxu0 0
        %945 = vmatprep.mubr.bf16.mxu0 0
        %946 = vmatmul.mubr.bf16.gmra.mrb[0].mxu0 %v902
        %v947 = vpop.f32.mrb[0].mxu0
        %v948 = vadd.f32 0.0, %v947
        %v949 = vpop.f32.mrb[0].mxu0
        %v950 = vpop.f32.mrb[0].mxu0
        %v951 = vadd.f32 0.0, %v950
        %v952 = vpop.f32.mrb[0].mxu0
        %953 = vmatprep.mubr.bf16.mxu0 0
        %954 = vmatmul.mubr.bf16.gmra.mrb[0].mxu0 %v905
        %v955 = vpop.f32.mrb[0].mxu0
        %v956 = vadd.f32 0.0, %v955
        %v957 = vpop.f32.mrb[0].mxu0
        %v958 = vpop.f32.mrb[0].mxu0
        %v959 = vadd.f32 0.0, %v958
        %v960 = vpop.f32.mrb[0].mxu0
        %961 = vmatprep.mubr.bf16.mxu0 0
        %962 = vmatmul.mubr.bf16.gmra.mrb[0].mxu0 %v908
        %v963 = vpop.f32.mrb[0].mxu0
        %v964 = vadd.f32 0.0, %v963
        %v965 = vpop.f32.mrb[0].mxu0
        %v966 = vpop.f32.mrb[0].mxu0
        %v967 = vadd.f32 0.0, %v966
        %v968 = vpop.f32.mrb[0].mxu0
        %969 = vmatprep.mubr.bf16.mxu0 0
        %970 = vmatmul.mubr.bf16.gmra.mrb[0].mxu0 %v911
        %v971 = vpop.f32.mrb[0].mxu0
        %v972 = vadd.f32 0.0, %v971
        %v973 = vpop.f32.mrb[0].mxu0
        %v974 = vpop.f32.mrb[0].mxu0
        %v975 = vadd.f32 0.0, %v974
        %v976 = vpop.f32.mrb[0].mxu0
        %977 = vdwg.mxu0
        %v986 = vunpack.c.l.b16 %v380
        %v987 = vunpack.c.l.b16 %v381
        %v988 = vunpack.c.l.b16 %v382
        %v989 = vunpack.c.l.b16 %v383
        %v990 = vunpack.c.l.b16 %v384
        %v991 = vunpack.c.l.b16 %v385
        %v992 = vunpack.c.l.b16 %v386
        %v993 = vunpack.c.l.b16 %v387
        %v994 = vpack.c.b16 %v987, %v986
        %v995 = vpack.c.b16 %v989, %v988
        %v996 = vpack.c.b16 %v991, %v990
        %v997 = vpack.c.b16 %v993, %v992
        %v999 = vsel %vm202, %v994, 0
        %v1002 = vsel %vm202, %v995, 0
        %v1005 = vsel %vm202, %v996, 0
        %v1008 = vsel %vm202, %v997, 0
        %1010 = vmatprep.subr.bf16.mxu0 0
        %1011 = vmatpush1.bf16.msra.mxu0 %v330
        %1012 = vmatprep.subr.bf16.mxu0 0
        %1013 = vmatpush1.bf16.msra.mxu0 0
        %1014 = vmatprep.subr.bf16.mxu0 0
        %1015 = vmatpush1.bf16.msra.mxu0 0
        %1016 = vmatprep.subr.bf16.mxu0 0
        %1017 = vmatpush1.bf16.msra.mxu0 0
        %1018 = vmatprep.subr.bf16.mxu0 0
        %1019 = vmatpush1.bf16.msra.mxu0 0
        %1020 = vmatprep.subr.bf16.mxu0 0
        %1021 = vmatpush1.bf16.msra.mxu0 0
        %1022 = vmatprep.subr.bf16.mxu0 0
        %1023 = vmatpush1.bf16.msra.mxu0 0
        %1024 = vmatprep.subr.bf16.mxu0 0
        %1025 = vmatpush1.bf16.msra.mxu0 0
        %1026 = vmatprep.subr.bf16.mxu0 0
        %1027 = vmatpush1.bf16.msra.mxu0 0
        %1028 = vmatprep.subr.bf16.mxu0 0
        %1029 = vmatpush1.bf16.msra.mxu0 0
        %1030 = vmatprep.subr.bf16.mxu0 0
        %1031 = vmatpush1.bf16.msra.mxu0 0
        %1032 = vmatprep.subr.bf16.mxu0 0
        %1033 = vmatpush1.bf16.msra.mxu0 0
        %1034 = vmatprep.subr.bf16.mxu0 0
        %1035 = vmatpush1.bf16.msra.mxu0 0
        %1036 = vmatprep.subr.bf16.mxu0 0
        %1037 = vmatpush1.bf16.msra.mxu0 0
        %1038 = vmatprep.subr.bf16.mxu0 0
        %1039 = vmatpush1.bf16.msra.mxu0 0
        %1040 = vmatprep.subr.bf16.mxu0 0
        %1041 = vmatpush1.bf16.msra.mxu0 0
        %1042 = vmatprep.mubr.bf16.mxu0 0
        %1043 = vmatmul.mubr.bf16.gmra.mrb[0].mxu0 %v999
        %v1044 = vpop.f32.mrb[0].mxu0
        %v1045 = vadd.f32 0.0, %v1044
        %v1046 = vpop.f32.mrb[0].mxu0
        %v1047 = vpop.f32.mrb[0].mxu0
        %v1048 = vadd.f32 0.0, %v1047
        %v1049 = vpop.f32.mrb[0].mxu0
        %1050 = vmatprep.mubr.bf16.mxu0 0
        %1051 = vmatmul.mubr.bf16.gmra.mrb[0].mxu0 %v1002
        %v1052 = vpop.f32.mrb[0].mxu0
        %v1053 = vadd.f32 0.0, %v1052
        %v1054 = vpop.f32.mrb[0].mxu0
        %v1055 = vpop.f32.mrb[0].mxu0
        %v1056 = vadd.f32 0.0, %v1055
        %v1057 = vpop.f32.mrb[0].mxu0
        %1058 = vmatprep.mubr.bf16.mxu0 0
        %1059 = vmatmul.mubr.bf16.gmra.mrb[0].mxu0 %v1005
        %v1060 = vpop.f32.mrb[0].mxu0
        %v1061 = vadd.f32 0.0, %v1060
        %v1062 = vpop.f32.mrb[0].mxu0
        %v1063 = vpop.f32.mrb[0].mxu0
        %v1064 = vadd.f32 0.0, %v1063
        %v1065 = vpop.f32.mrb[0].mxu0
        %1066 = vmatprep.mubr.bf16.mxu0 0
        %1067 = vmatmul.mubr.bf16.gmra.mrb[0].mxu0 %v1008
        %v1068 = vpop.f32.mrb[0].mxu0
        %v1069 = vadd.f32 0.0, %v1068
        %v1070 = vpop.f32.mrb[0].mxu0
        %v1071 = vpop.f32.mrb[0].mxu0
        %v1072 = vadd.f32 0.0, %v1071
        %v1073 = vpop.f32.mrb[0].mxu0
        %1074 = vdwg.mxu0
        %v1083 = vunpack.c.l.b16 %v388
        %v1084 = vunpack.c.l.b16 %v389
        %v1085 = vunpack.c.l.b16 %v390
        %v1086 = vunpack.c.l.b16 %v391
        %v1087 = vunpack.c.l.b16 %v392
        %v1088 = vunpack.c.l.b16 %v393
        %v1089 = vunpack.c.l.b16 %v394
        %v1090 = vunpack.c.l.b16 %v395
        %v1091 = vpack.c.b16 %v1084, %v1083
        %v1092 = vpack.c.b16 %v1086, %v1085
        %v1093 = vpack.c.b16 %v1088, %v1087
        %v1094 = vpack.c.b16 %v1090, %v1089
        %v1096 = vsel %vm202, %v1091, 0
        %v1099 = vsel %vm202, %v1092, 0
        %v1102 = vsel %vm202, %v1093, 0
        %v1105 = vsel %vm202, %v1094, 0
        %1107 = vmatprep.subr.bf16.mxu0 0
        %1108 = vmatpush1.bf16.msra.mxu0 %v331
        %1109 = vmatprep.subr.bf16.mxu0 0
        %1110 = vmatpush1.bf16.msra.mxu0 0
        %1111 = vmatprep.subr.bf16.mxu0 0
        %1112 = vmatpush1.bf16.msra.mxu0 0
        %1113 = vmatprep.subr.bf16.mxu0 0
        %1114 = vmatpush1.bf16.msra.mxu0 0
        %1115 = vmatprep.subr.bf16.mxu0 0
        %1116 = vmatpush1.bf16.msra.mxu0 0
        %1117 = vmatprep.subr.bf16.mxu0 0
        %1118 = vmatpush1.bf16.msra.mxu0 0
        %1119 = vmatprep.subr.bf16.mxu0 0
        %1120 = vmatpush1.bf16.msra.mxu0 0
        %1121 = vmatprep.subr.bf16.mxu0 0
        %1122 = vmatpush1.bf16.msra.mxu0 0
        %1123 = vmatprep.subr.bf16.mxu0 0
        %1124 = vmatpush1.bf16.msra.mxu0 0
        %1125 = vmatprep.subr.bf16.mxu0 0
        %1126 = vmatpush1.bf16.msra.mxu0 0
        %1127 = vmatprep.subr.bf16.mxu0 0
        %1128 = vmatpush1.bf16.msra.mxu0 0
        %1129 = vmatprep.subr.bf16.mxu0 0
        %1130 = vmatpush1.bf16.msra.mxu0 0
        %1131 = vmatprep.subr.bf16.mxu0 0
        %1132 = vmatpush1.bf16.msra.mxu0 0
        %1133 = vmatprep.subr.bf16.mxu0 0
        %1134 = vmatpush1.bf16.msra.mxu0 0
        %1135 = vmatprep.subr.bf16.mxu0 0
        %1136 = vmatpush1.bf16.msra.mxu0 0
        %1137 = vmatprep.subr.bf16.mxu0 0
        %1138 = vmatpush1.bf16.msra.mxu0 0
        %1139 = vmatprep.mubr.bf16.mxu0 0
        %1140 = vmatmul.mubr.bf16.gmra.mrb[0].mxu0 %v1096
        %v1141 = vpop.f32.mrb[0].mxu0
        %v1142 = vadd.f32 0.0, %v1141
        %v1143 = vpop.f32.mrb[0].mxu0
        %v1144 = vpop.f32.mrb[0].mxu0
        %v1145 = vadd.f32 0.0, %v1144
        %v1146 = vpop.f32.mrb[0].mxu0
        %1147 = vmatprep.mubr.bf16.mxu0 0
        %1148 = vmatmul.mubr.bf16.gmra.mrb[0].mxu0 %v1099
        %v1149 = vpop.f32.mrb[0].mxu0
        %v1150 = vadd.f32 0.0, %v1149
        %v1151 = vpop.f32.mrb[0].mxu0
        %v1152 = vpop.f32.mrb[0].mxu0
        %v1153 = vadd.f32 0.0, %v1152
        %v1154 = vpop.f32.mrb[0].mxu0
        %1155 = vmatprep.mubr.bf16.mxu0 0
        %1156 = vmatmul.mubr.bf16.gmra.mrb[0].mxu0 %v1102
        %v1157 = vpop.f32.mrb[0].mxu0
        %v1158 = vadd.f32 0.0, %v1157
        %v1159 = vpop.f32.mrb[0].mxu0
        %v1160 = vpop.f32.mrb[0].mxu0
        %v1161 = vadd.f32 0.0, %v1160
        %v1162 = vpop.f32.mrb[0].mxu0
        %1163 = vmatprep.mubr.bf16.mxu0 0
        %1164 = vmatmul.mubr.bf16.gmra.mrb[0].mxu0 %v1105
        %v1165 = vpop.f32.mrb[0].mxu0
        %v1166 = vadd.f32 0.0, %v1165
        %v1167 = vpop.f32.mrb[0].mxu0
        %v1168 = vpop.f32.mrb[0].mxu0
        %v1169 = vadd.f32 0.0, %v1168
        %v1170 = vpop.f32.mrb[0].mxu0
        %1171 = vdwg.mxu0
        %vm1172 = vcmask 523264
        %1173 = vst.msk [vmem:[%s163] sm:$0xff] %vm1172, %v463
        %1174 = vst.msk [vmem:[%s163 + $0x8] sm:$0xff] %vm1172, %v466
        %1175 = vst.msk [vmem:[%s163 + $0x10] sm:$0xff] %vm1172, %v471
        %1176 = vst.msk [vmem:[%s163 + $0x18] sm:$0xff] %vm1172, %v474
        %1177 = vst.msk [vmem:[%s163 + $0x20] sm:$0xff] %vm1172, %v479
        %1178 = vst.msk [vmem:[%s163 + $0x28] sm:$0xff] %vm1172, %v482
        %1179 = vst.msk [vmem:[%s163 + $0x30] sm:$0xff] %vm1172, %v487
        %1180 = vst.msk [vmem:[%s163 + $0x38] sm:$0xff] %vm1172, %v490
        %1181 = vst.msk [vmem:[%s163 + $0x40] sm:$0xff] %vm1172, %v560
        %1182 = vst.msk [vmem:[%s163 + $0x48] sm:$0xff] %vm1172, %v563
        %1183 = vst.msk [vmem:[%s163 + $0x50] sm:$0xff] %vm1172, %v568
        %1184 = vst.msk [vmem:[%s163 + $0x58] sm:$0xff] %vm1172, %v571
        %1185 = vst.msk [vmem:[%s163 + $0x60] sm:$0xff] %vm1172, %v576
        %1186 = vst.msk [vmem:[%s163 + $0x68] sm:$0xff] %vm1172, %v579
        %1187 = vst.msk [vmem:[%s163 + $0x70] sm:$0xff] %vm1172, %v584
        %1188 = vst.msk [vmem:[%s163 + $0x78] sm:$0xff] %vm1172, %v587
        %1189 = vst.msk [vmem:[%s163 + $0x80] sm:$0xff] %vm1172, %v657
        %1190 = vst.msk [vmem:[%s163 + $0x88] sm:$0xff] %vm1172, %v660
        %1191 = vst.msk [vmem:[%s163 + $0x90] sm:$0xff] %vm1172, %v665
        %1192 = vst.msk [vmem:[%s163 + $0x98] sm:$0xff] %vm1172, %v668
        %1193 = vst.msk [vmem:[%s163 + $0xa0] sm:$0xff] %vm1172, %v673
        %1194 = vst.msk [vmem:[%s163 + $0xa8] sm:$0xff] %vm1172, %v676
        %1195 = vst.msk [vmem:[%s163 + $0xb0] sm:$0xff] %vm1172, %v681
        %1196 = vst.msk [vmem:[%s163 + $0xb8] sm:$0xff] %vm1172, %v684
        %1197 = vst.msk [vmem:[%s163 + $0xc0] sm:$0xff] %vm1172, %v754
        %1198 = vst.msk [vmem:[%s163 + $0xc8] sm:$0xff] %vm1172, %v757
        %1199 = vst.msk [vmem:[%s163 + $0xd0] sm:$0xff] %vm1172, %v762
        %1200 = vst.msk [vmem:[%s163 + $0xd8] sm:$0xff] %vm1172, %v765
        %1201 = vst.msk [vmem:[%s163 + $0xe0] sm:$0xff] %vm1172, %v770
        %1202 = vst.msk [vmem:[%s163 + $0xe8] sm:$0xff] %vm1172, %v773
        %1203 = vst.msk [vmem:[%s163 + $0xf0] sm:$0xff] %vm1172, %v778
        %1204 = vst.msk [vmem:[%s163 + $0xf8] sm:$0xff] %vm1172, %v781
        %1205 = vst.msk [vmem:[%s163 + $0x100] sm:$0xff] %vm1172, %v851
        %1206 = vst.msk [vmem:[%s163 + $0x108] sm:$0xff] %vm1172, %v854
        %1207 = vst.msk [vmem:[%s163 + $0x110] sm:$0xff] %vm1172, %v859
        %1208 = vst.msk [vmem:[%s163 + $0x118] sm:$0xff] %vm1172, %v862
        %1209 = vst.msk [vmem:[%s163 + $0x120] sm:$0xff] %vm1172, %v867
        %1210 = vst.msk [vmem:[%s163 + $0x128] sm:$0xff] %vm1172, %v870
        %1211 = vst.msk [vmem:[%s163 + $0x130] sm:$0xff] %vm1172, %v875
        %1212 = vst.msk [vmem:[%s163 + $0x138] sm:$0xff] %vm1172, %v878
        %1213 = vst.msk [vmem:[%s163 + $0x140] sm:$0xff] %vm1172, %v948
        %1214 = vst.msk [vmem:[%s163 + $0x148] sm:$0xff] %vm1172, %v951
        %1215 = vst.msk [vmem:[%s163 + $0x150] sm:$0xff] %vm1172, %v956
        %1216 = vst.msk [vmem:[%s163 + $0x158] sm:$0xff] %vm1172, %v959
        %1217 = vst.msk [vmem:[%s163 + $0x160] sm:$0xff] %vm1172, %v964
        %1218 = vst.msk [vmem:[%s163 + $0x168] sm:$0xff] %vm1172, %v967
        %1219 = vst.msk [vmem:[%s163 + $0x170] sm:$0xff] %vm1172, %v972
        %1220 = vst.msk [vmem:[%s163 + $0x178] sm:$0xff] %vm1172, %v975
        %1221 = vst.msk [vmem:[%s163 + $0x180] sm:$0xff] %vm1172, %v1045
        %1222 = vst.msk [vmem:[%s163 + $0x188] sm:$0xff] %vm1172, %v1048
        %1223 = vst.msk [vmem:[%s163 + $0x190] sm:$0xff] %vm1172, %v1053
        %1224 = vst.msk [vmem:[%s163 + $0x198] sm:$0xff] %vm1172, %v1056
        %1225 = vst.msk [vmem:[%s163 + $0x1a0] sm:$0xff] %vm1172, %v1061
        %1226 = vst.msk [vmem:[%s163 + $0x1a8] sm:$0xff] %vm1172, %v1064
        %1227 = vst.msk [vmem:[%s163 + $0x1b0] sm:$0xff] %vm1172, %v1069
        %1228 = vst.msk [vmem:[%s163 + $0x1b8] sm:$0xff] %vm1172, %v1072
        %1229 = vst.msk [vmem:[%s163 + $0x1c0] sm:$0xff] %vm1172, %v1142
        %1230 = vst.msk [vmem:[%s163 + $0x1c8] sm:$0xff] %vm1172, %v1145
        %1231 = vst.msk [vmem:[%s163 + $0x1d0] sm:$0xff] %vm1172, %v1150
        %1232 = vst.msk [vmem:[%s163 + $0x1d8] sm:$0xff] %vm1172, %v1153
        %1233 = vst.msk [vmem:[%s163 + $0x1e0] sm:$0xff] %vm1172, %v1158
        %1234 = vst.msk [vmem:[%s163 + $0x1e8] sm:$0xff] %vm1172, %v1161
        %1235 = vst.msk [vmem:[%s163 + $0x1f0] sm:$0xff] %vm1172, %v1166
        %1236 = vst.msk [vmem:[%s163 + $0x1f8] sm:$0xff] %vm1172, %v1169
        %s1237 = sand.u32 %s93, 1
        %s1238 = scalar_lea.sflag [#allocation3], %s1237
        %s1239 = sand.u32 %s93, 1
        %s1240 = smul.addr %s1239, 512
        %s1241 = scalar_lea.vmem [#allocation2], %s1240
        // Predicated region
        $region33: #{seg_forward.7} parent=31 // pred_check
          %p1242 = pneg %p103
        $region34: #{seg_forward.7} parent=31 // pred_check_branch
          %1244 = sbr.rel (%p1242) target = $region36
        $region35: #{seg_forward.7} parent=31 // pred_region
          %s1246 = ssub.s32 8192, 8192
          %1247 = vsyncadd %s1238, %s1246
          %s1248 = smul.addr %s17, 64
          %s1249 = smul.addr %s1248, 128
          %s1250 = scalar_lea.hbm %s3, %s1249
          %s1251 = sshll.u32 %s1241, 4
          %s1252 = int_to_ptr.vmem [resolvable:$true] %s1251
          %1257 = dma.vmem_to_hbm [thread:$0]  %s1252, 8192, %s1250, %s1238, 128, 128, 8
        $region36: #{seg_forward.7} parent=31 // pred_fallthru
          _
      $region32: #{seg_forward.7} parent=5 // pred_fallthru
        _
      %p1258 = scmp.le.s32.totalorder 2, %s12
      // Predicated region
      $region37: #{seg_forward.7} parent=5 // pred_check
        %p1259 = pneg %p1258
      $region38: #{seg_forward.7} parent=5 // pred_check_branch
        %1261 = sbr.rel (%p1259) target = $region40
      $region39: #{seg_forward.7} parent=5 // pred_region
        %s1262 = ssub.s32 %s12, 2
        // Predicated region
        $region41: #{seg_forward.7} parent=39 // pred_check
          %p1263 = pneg %p109
        $region42: #{seg_forward.7} parent=39 // pred_check_branch
          %1265 = sbr.rel (%p1263) target = $region44
        $region43: #{seg_forward.7} parent=39 // pred_region
          %s1266 = sand.u32 %s94, 1
          %s1267 = scalar_lea.sflag [#allocation3], %s1266
          %s1268 = sand.u32 %s94, 1
          %s1269 = smul.addr %s1268, 512
          %s1270 = scalar_lea.vmem [#allocation2], %s1269
          %1271 = dma.done %s1267, 8192
        $region44: #{seg_forward.7} parent=39 // pred_fallthru
          _
      $region40: #{seg_forward.7} parent=5 // pred_fallthru
        _
    $region6: #{seg_forward.7} parent=1 // loop_footer
      %s16 = sadd.s32 1, %s12
    $region7: #{seg_forward.7} parent=1 // loop_footer_branch
      %11 = sbr.rel target = $region3
    $region8: #{seg_forward.7} parent=1 // loop_exit
      _
    %1272 = vsyncpa [#allocation3], 1
    %s1273 = scalar_lea.sflag [#allocation3], 1
    %1274 = vsyncpa %s1273, 1

</llo_original>
